<compile_context>
chip_gen: v7x
topology: tpu7x:2x2x1
jax: 0.10.0
libtpu: 0.0.40
codegen_flags: <defaults>
</compile_context>

<pallas_src>
import functools

import jax
import jax.numpy as jnp
from jax import lax
from jax.experimental import pallas as pl
from jax.experimental.pallas import tpu as pltpu


def _round_up(x, m):
    return ((x + m - 1) // m) * m


def lstm_nli_kernel(x_ref, w_ih_ref, w_hh_ref, b_ref, w_out_ref, b_out_ref,
                    out_ref, xw_ref, *, seq_len, batch_pad, hidden_pad, unroll):
    """Hoisted input projection + in-kernel LSTM recurrence + linear head + softmax."""
    Bp = batch_pad
    Hp = hidden_pad
    wdt = w_ih_ref.dtype

    # (1) Hoisted input projection for all timesteps / batch rows: one MXU pass,
    #     result resident in VMEM scratch across the recurrence.  Layout is
    #     time-major: rows [t*Bp : (t+1)*Bp] hold timestep t for every sequence.
    xw_ref[...] = (
        jnp.dot(x_ref[...].astype(wdt), w_ih_ref[...],
                preferred_element_type=jnp.float32)
        + b_ref[...])

    def sigmoid(z):
        # One EUP tanh instead of exp + reciprocal (2 EUP passes); the affine part
        # lands in the 4 VALU slots, which have slack.
        return 0.5 * jnp.tanh(0.5 * z) + 0.5

    # (2) Sequential recurrence; h/c are (Bp, Hp) loop carries.
    def step(t, carry):
        h, c = carry
        row = pl.multiple_of(t * Bp, Bp)                 # sublane-aligned slice start
        gates = xw_ref[pl.ds(row, Bp), :] + jnp.dot(
            h.astype(wdt), w_hh_ref[...], preferred_element_type=jnp.float32)
        # Hp is a multiple of 128, so these slices are lane-aligned vreg blocks.
        i = sigmoid(gates[:, 0 * Hp:1 * Hp])
        f = sigmoid(gates[:, 1 * Hp:2 * Hp])
        g = jnp.tanh(gates[:, 2 * Hp:3 * Hp])
        o = sigmoid(gates[:, 3 * Hp:4 * Hp])
        c_new = f * c + i * g
        h_new = o * jnp.tanh(c_new)
        return h_new, c_new

    h0 = jnp.zeros((Bp, Hp), jnp.float32)
    c0 = jnp.zeros((Bp, Hp), jnp.float32)
    h, _ = lax.fori_loop(0, seq_len, step, (h0, c0), unroll=unroll)

    # (3) hidden2tag on lstm_out[-1], then softmax over the label dim.  Padded
    #     label lanes carry a -1e9 bias so exp() underflows to exactly 0 and the
    #     softmax over the real labels is unchanged; output slab is lane-dense.
    logits = (jnp.dot(h.astype(wdt), w_out_ref[...],
                      preferred_element_type=jnp.float32)
              + b_out_ref[...])
    m = jnp.max(logits, axis=1, keepdims=True)
    e = jnp.exp(logits - m)
    out_ref[...] = e / jnp.sum(e, axis=1, keepdims=True)


def _build_pallas_call(kernel, *, T, Bp, E, Hp, Lp, single_buffer, vmem_limit):
    def spec(shape):
        if single_buffer:
            # grid=(1,): nothing to pipeline, so don't pay 2x VMEM per input.
            return pl.BlockSpec(shape, lambda i: (0, 0),
                                pipeline_mode=pl.Buffered(1))
        return pl.BlockSpec(shape, lambda i: (0, 0))

    return pl.pallas_call(
        kernel,
        out_shape=jax.ShapeDtypeStruct((Bp, Lp), jnp.float32),
        grid_spec=pltpu.PrefetchScalarGridSpec(
            num_scalar_prefetch=0,
            grid=(1,),  # single invocation; recurrence lives inside the kernel
            in_specs=[
                spec((T * Bp, E)),       # whole sequence batch, time-major
                spec((E, 4 * Hp)),       # W_ih^T (gate-padded)
                spec((Hp, 4 * Hp)),      # W_hh^T (gate-padded)
                spec((1, 4 * Hp)),       # b_ih + b_hh
                spec((Hp, Lp)),          # hidden2tag W^T (label-padded)
                spec((1, Lp)),           # hidden2tag bias (-1e9 on padded labels)
            ],
            out_specs=pl.BlockSpec((Bp, Lp), lambda i: (0, 0)),
            scratch_shapes=[
                pltpu.VMEM((T * Bp, 4 * Hp), jnp.float32),  # hoisted x @ W_ih + b
            ],
        ),
        compiler_params=pltpu.CompilerParams(
            dimension_semantics=("arbitrary",),
            vmem_limit_bytes=vmem_limit,
        ),
    )


def lstm_nli_forward_batched(x, w_ih, w_hh, b_ih, b_hh, w_out, b_out,
                             *, weight_dtype=jnp.bfloat16):
    """x: (B, T, E) float32 — B independent sentences of equal length.

    Returns (B, label_dim) softmax predictions (row b == forward(x[b]))."""
    B, T, E = x.shape
    H4 = w_ih.shape[0]
    H = H4 // 4
    L = w_out.shape[0]
    Hp = _round_up(H, 128)   # lane-aligned gate layout
    Lp = _round_up(L, 128)   # lane-dense output slab
    Bp = _round_up(B, 8)     # sublane-aligned batch rows

    # --- Pad each (i,f,g,o) gate block from H to Hp with zeros.  Padded gates see
    #     zero weights + zero bias, so with h0=c0=0 the padded h/c lanes stay
    #     exactly 0 and never feed back into the real lanes.
    def pad_gate_rows(w):           # (4H, X) -> (4Hp, X)
        w4 = w.reshape(4, H, -1)
        return jnp.pad(w4, ((0, 0), (0, Hp - H), (0, 0))).reshape(4 * Hp, -1)

    w_ih_p = pad_gate_rows(w_ih)                                   # (4Hp, E)
    w_hh_p = jnp.pad(pad_gate_rows(w_hh), ((0, 0), (0, Hp - H)))   # (4Hp, Hp)
    b_p = jnp.pad((b_ih + b_hh).reshape(4, H),
                  ((0, 0), (0, Hp - H))).reshape(1, 4 * Hp)
    w_out_p = jnp.pad(w_out, ((0, Lp - L), (0, Hp - H)))           # (Lp, Hp)
    b_out_p = jnp.full((Lp,), -1e9, jnp.float32).at[:L].set(
        b_out.astype(jnp.float32)).reshape(1, Lp)

    # Time-major flattening: row t*Bp + b holds timestep t of sequence b.
    x_p = jnp.pad(x.astype(jnp.float32), ((0, Bp - B), (0, 0), (0, 0)))  # (Bp, T, E)
    x_flat = jnp.transpose(x_p, (1, 0, 2)).reshape(T * Bp, E)            # (T*Bp, E)

    w_ih_t = w_ih_p.T.astype(weight_dtype)      # (E, 4Hp)
    w_hh_t = w_hh_p.T.astype(weight_dtype)      # (Hp, 4Hp)
    b2 = b_p.astype(jnp.float32)                # (1, 4Hp)
    w_out_t = w_out_p.T.astype(weight_dtype)    # (Hp, Lp)
    b_out2 = b_out_p                            # (1, Lp)

    # Right-size the VMEM budget to the actual footprint (conservatively assumes
    # double-buffered inputs), clamped to the v7x 64 MiB per-TC capacity.
    wbytes = jnp.dtype(weight_dtype).itemsize
    io_bytes = (T * Bp * E * 4 + E * 4 * Hp * wbytes + Hp * 4 * Hp * wbytes
                + 4 * Hp * 4 + Hp * Lp * wbytes + Lp * 4 + Bp * Lp * 4)
    scratch_bytes = T * Bp * 4 * Hp * 4
    vmem_limit = int(min(max(2 * io_bytes + scratch_bytes + (4 << 20), 8 << 20),
                         64 << 20))

    kernel = functools.partial(lstm_nli_kernel, seq_len=T, batch_pad=Bp,
                               hidden_pad=Hp, unroll=max(1, min(T, 8)))
    args = (x_flat, w_ih_t, w_hh_t, b2, w_out_t, b_out2)

    try:
        out = _build_pallas_call(kernel, T=T, Bp=Bp, E=E, Hp=Hp, Lp=Lp,
                                 single_buffer=True, vmem_limit=vmem_limit)(*args)
    except Exception:
        # pl.Buffered(1) unavailable/unsupported on this build: fall back to the
        # default (double-buffered) BlockSpecs; correctness is unaffected.
        out = _build_pallas_call(kernel, T=T, Bp=Bp, E=E, Hp=Hp, Lp=Lp,
                                 single_buffer=False, vmem_limit=vmem_limit)(*args)

    return out[:B, :L]


def lstm_nli_forward(x, w_ih, w_hh, b_ih, b_hh, w_out, b_out,
                     *, weight_dtype=jnp.bfloat16):
    """Module-equivalent forward: x is one sentence (T, E); returns (1, label_dim)."""
    return lstm_nli_forward_batched(x[None], w_ih, w_hh, b_ih, b_hh, w_out, b_out,
                                    weight_dtype=weight_dtype)


def lstm_nli_reference(x, w_ih, w_hh, b_ih, b_hh, w_out, b_out):
    """Pure-JAX reference mirroring nn.LSTM + Linear + softmax (batch=1)."""
    T, E = x.shape
    H = w_hh.shape[1]
    h = jnp.zeros((1, H), jnp.float32)
    c = jnp.zeros((1, H), jnp.float32)
    for t in range(T):
        gates = x[t:t + 1] @ w_ih.T + h @ w_hh.T + b_ih + b_hh
        i = jax.nn.sigmoid(gates[:, 0 * H:1 * H])
        f = jax.nn.sigmoid(gates[:, 1 * H:2 * H])
        g = jnp.tanh(gates[:, 2 * H:3 * H])
        o = jax.nn.sigmoid(gates[:, 3 * H:4 * H])
        c = f * c + i * g
        h = o * jnp.tanh(c)
    logits = h @ w_out.T + b_out
    return jax.nn.softmax(logits, axis=1)


if __name__ == "__main__":
    # Small shapes consistent with the module: T words, embedding_dim E,
    # hidden_dim H, label_dim L; batch=1 for the module forward, plus a B=4
    # batched demo of the sublane-filling path.
    T, E, H, L = 8, 32, 32, 8
    B = 4

    key = jax.random.PRNGKey(0)
    ks = jax.random.split(key, 8)
    k = 1.0 / jnp.sqrt(H)

    # nn.LSTM parameter shapes (unidirectional, 1 layer), PyTorch-style uniform init
    w_ih = jax.random.uniform(ks[0], (4 * H, E), jnp.float32, -k, k)
    w_hh = jax.random.uniform(ks[1], (4 * H, H), jnp.float32, -k, k)
    b_ih = jax.random.uniform(ks[2], (4 * H,), jnp.float32, -k, k)
    b_hh = jax.random.uniform(ks[3], (4 * H,), jnp.float32, -k, k)
    # nn.Linear(hidden_dim, label_dim)
    w_out = jax.random.uniform(ks[4], (L, H), jnp.float32, -k, k)
    b_out = jax.random.uniform(ks[5], (L,), jnp.float32, -k, k)

    x = jax.random.normal(ks[6], (T, E), jnp.float32)       # one "sentence"
    xb = jax.random.normal(ks[7], (B, T, E), jnp.float32)   # a batch of sentences

    params = (w_ih, w_hh, b_ih, b_hh, w_out, b_out)
    ref = lstm_nli_reference(x, *params)

    # (1) f32 validation path: tight tolerance vs. the pure-JAX reference.
    pred32 = jax.block_until_ready(
        lstm_nli_forward(x, *params, weight_dtype=jnp.float32))
    assert pred32.shape == (1, L)
    assert jnp.allclose(pred32, ref, atol=5e-5, rtol=5e-5), "f32 path mismatch"

    # (2) default bf16-operand path: looser tolerance (bf16 matmul mantissa).
    pred_bf16 = jax.block_until_ready(lstm_nli_forward(x, *params))
    assert pred_bf16.shape == (1, L)
    assert jnp.allclose(pred_bf16, ref, atol=2e-2, rtol=2e-2), "bf16 path mismatch"

    # (3) batched path: B sentences in one kernel call, each row vs. reference.
    preds = jax.block_until_ready(
        lstm_nli_forward_batched(xb, *params, weight_dtype=jnp.float32))
    assert preds.shape == (B, L)
    for b in range(B):
        refb = lstm_nli_reference(xb[b], *params)
        assert jnp.allclose(preds[b:b + 1], refb, atol=5e-5, rtol=5e-5), \
            f"batched path mismatch at sequence {b}"

    print("KERNEL_OK")
</pallas_src>

<mosaic_0001>
module attributes {stable_mosaic.version = 11 : i64} {
  func.func @lstm_nli_kernel(%arg0: i32, %arg1: memref<64x32xf32, #tpu.memory_space<vmem>>, %arg2: memref<32x512xf32, #tpu.memory_space<vmem>>, %arg3: memref<128x512xf32, #tpu.memory_space<vmem>>, %arg4: memref<1x512xf32, #tpu.memory_space<vmem>>, %arg5: memref<128x128xf32, #tpu.memory_space<vmem>>, %arg6: memref<1x128xf32, #tpu.memory_space<vmem>>, %arg7: memref<8x128xf32, #tpu.memory_space<vmem>>, %arg8: memref<64x512xf32, #tpu.memory_space<vmem>>) attributes {dimension_semantics = [#tpu.dimension_semantics<arbitrary>], iteration_bounds = array<i64: 1>, scalar_prefetch = 0 : i64, scratch_operands = 1 : i64, tpu.core_type = #tpu.core_type<tc>, window_params = [{pipeline_mode = #tpu.pipeline_mode<synchronous>, transform_indices = @transform_0, window_bounds = array<i64: 64, 32>}, {pipeline_mode = #tpu.pipeline_mode<synchronous>, transform_indices = @transform_1, window_bounds = array<i64: 32, 512>}, {pipeline_mode = #tpu.pipeline_mode<synchronous>, transform_indices = @transform_2, window_bounds = array<i64: 128, 512>}, {pipeline_mode = #tpu.pipeline_mode<synchronous>, transform_indices = @transform_3, window_bounds = array<i64: 1, 512>}, {pipeline_mode = #tpu.pipeline_mode<synchronous>, transform_indices = @transform_4, window_bounds = array<i64: 128, 128>}, {pipeline_mode = #tpu.pipeline_mode<synchronous>, transform_indices = @transform_5, window_bounds = array<i64: 1, 128>}, {pipeline_mode = #tpu.pipeline_mode<synchronous>, transform_indices = @transform_6, window_bounds = array<i64: 8, 128>}]} {
    %c0 = arith.constant 0 : index
    %c0_0 = arith.constant 0 : index
    %0 = vector.load %arg1[%c0, %c0_0] : memref<64x32xf32, #tpu.memory_space<vmem>>, vector<64x32xf32>
    %c0_1 = arith.constant 0 : index
    %c0_2 = arith.constant 0 : index
    %1 = vector.load %arg2[%c0_1, %c0_2] : memref<32x512xf32, #tpu.memory_space<vmem>>, vector<32x512xf32>
    %cst = arith.constant dense<0.000000e+00> : vector<64x512xf32>
    %2 = tpu.matmul %0, %1, %cst {dimension_numbers = #tpu.dot_dimension_numbers<[1], [0], [0], [1], [0, 0, 1, 1], [], []>} : vector<64x32xf32>, vector<32x512xf32>, vector<64x512xf32> -> vector<64x512xf32>
    %c0_3 = arith.constant 0 : index
    %c0_4 = arith.constant 0 : index
    %3 = vector.load %arg4[%c0_3, %c0_4] : memref<1x512xf32, #tpu.memory_space<vmem>>, vector<1x512xf32>
    %4 = vector.broadcast %3 : vector<1x512xf32> to vector<64x512xf32>
    %5 = arith.addf %2, %4 : vector<64x512xf32>
    %c0_5 = arith.constant 0 : index
    %c0_6 = arith.constant 0 : index
    %6 = vector.load %arg8[%c0_5, %c0_6] : memref<64x512xf32, #tpu.memory_space<vmem>>, vector<64x512xf32>
    tpu.vector_store %arg8[%c0_5, %c0_6], %5 {strides = array<i32>} : memref<64x512xf32, #tpu.memory_space<vmem>>, vector<64x512xf32>,
    %cst_7 = arith.constant 0.000000e+00 : f32
    %7 = vector.broadcast %cst_7 : f32 to vector<8x128xf32>
    %cst_8 = arith.constant 0.000000e+00 : f32
    %8 = vector.broadcast %cst_8 : f32 to vector<8x128xf32>
    %c0_i32 = arith.constant 0 : i32
    %c8_i32 = arith.constant 8 : i32
    %9 = arith.muli %c0_i32, %c8_i32 : i32
    %10 = tpu.assume_multiple %9, 8 : i32
    %11 = arith.index_cast %10 : i32 to index
    %c0_9 = arith.constant 0 : index
    %12 = vector.load %arg8[%11, %c0_9] : memref<64x512xf32, #tpu.memory_space<vmem>>, vector<8x512xf32>
    %c0_10 = arith.constant 0 : index
    %c0_11 = arith.constant 0 : index
    %13 = vector.load %arg3[%c0_10, %c0_11] : memref<128x512xf32, #tpu.memory_space<vmem>>, vector<128x512xf32>
    %cst_12 = arith.constant dense<0.000000e+00> : vector<8x512xf32>
    %14 = tpu.matmul %7, %13, %cst_12 {dimension_numbers = #tpu.dot_dimension_numbers<[1], [0], [0], [1], [0, 0, 1, 1], [], []>} : vector<8x128xf32>, vector<128x512xf32>, vector<8x512xf32> -> vector<8x512xf32>
    %15 = arith.addf %12, %14 : vector<8x512xf32>
    %16 = vector.extract_strided_slice %15 {offsets = [0, 0], sizes = [8, 128], strides = [1, 1]} : vector<8x512xf32> to vector<8x128xf32>
    %cst_13 = arith.constant 5.000000e-01 : f32
    %17 = vector.broadcast %cst_13 : f32 to vector<8x128xf32>
    %18 = arith.mulf %17, %16 : vector<8x128xf32>
    %19 = math.tanh %18 : vector<8x128xf32>
    %cst_14 = arith.constant 5.000000e-01 : f32
    %20 = vector.broadcast %cst_14 : f32 to vector<8x128xf32>
    %21 = arith.mulf %20, %19 : vector<8x128xf32>
    %cst_15 = arith.constant 5.000000e-01 : f32
    %22 = vector.broadcast %cst_15 : f32 to vector<8x128xf32>
    %23 = arith.addf %21, %22 : vector<8x128xf32>
    %24 = vector.extract_strided_slice %15 {offsets = [0, 128], sizes = [8, 128], strides = [1, 1]} : vector<8x512xf32> to vector<8x128xf32>
    %cst_16 = arith.constant 5.000000e-01 : f32
    %25 = vector.broadcast %cst_16 : f32 to vector<8x128xf32>
    %26 = arith.mulf %25, %24 : vector<8x128xf32>
    %27 = math.tanh %26 : vector<8x128xf32>
    %cst_17 = arith.constant 5.000000e-01 : f32
    %28 = vector.broadcast %cst_17 : f32 to vector<8x128xf32>
    %29 = arith.mulf %28, %27 : vector<8x128xf32>
    %cst_18 = arith.constant 5.000000e-01 : f32
    %30 = vector.broadcast %cst_18 : f32 to vector<8x128xf32>
    %31 = arith.addf %29, %30 : vector<8x128xf32>
    %32 = vector.extract_strided_slice %15 {offsets = [0, 256], sizes = [8, 128], strides = [1, 1]} : vector<8x512xf32> to vector<8x128xf32>
    %33 = math.tanh %32 : vector<8x128xf32>
    %34 = vector.extract_strided_slice %15 {offsets = [0, 384], sizes = [8, 128], strides = [1, 1]} : vector<8x512xf32> to vector<8x128xf32>
    %cst_19 = arith.constant 5.000000e-01 : f32
    %35 = vector.broadcast %cst_19 : f32 to vector<8x128xf32>
    %36 = arith.mulf %35, %34 : vector<8x128xf32>
    %37 = math.tanh %36 : vector<8x128xf32>
    %cst_20 = arith.constant 5.000000e-01 : f32
    %38 = vector.broadcast %cst_20 : f32 to vector<8x128xf32>
    %39 = arith.mulf %38, %37 : vector<8x128xf32>
    %cst_21 = arith.constant 5.000000e-01 : f32
    %40 = vector.broadcast %cst_21 : f32 to vector<8x128xf32>
    %41 = arith.addf %39, %40 : vector<8x128xf32>
    %42 = arith.mulf %31, %8 : vector<8x128xf32>
    %43 = arith.mulf %23, %33 : vector<8x128xf32>
    %44 = arith.addf %42, %43 : vector<8x128xf32>
    %45 = math.tanh %44 : vector<8x128xf32>
    %46 = arith.mulf %41, %45 : vector<8x128xf32>
    %c1_i32 = arith.constant 1 : i32
    %c8_i32_22 = arith.constant 8 : i32
    %47 = arith.muli %c1_i32, %c8_i32_22 : i32
    %48 = tpu.assume_multiple %47, 8 : i32
    %49 = arith.index_cast %48 : i32 to index
    %c0_23 = arith.constant 0 : index
    %50 = vector.load %arg8[%49, %c0_23] : memref<64x512xf32, #tpu.memory_space<vmem>>, vector<8x512xf32>
    %c0_24 = arith.constant 0 : index
    %c0_25 = arith.constant 0 : index
    %51 = vector.load %arg3[%c0_24, %c0_25] : memref<128x512xf32, #tpu.memory_space<vmem>>, vector<128x512xf32>
    %cst_26 = arith.constant dense<0.000000e+00> : vector<8x512xf32>
    %52 = tpu.matmul %46, %51, %cst_26 {dimension_numbers = #tpu.dot_dimension_numbers<[1], [0], [0], [1], [0, 0, 1, 1], [], []>} : vector<8x128xf32>, vector<128x512xf32>, vector<8x512xf32> -> vector<8x512xf32>
    %53 = arith.addf %50, %52 : vector<8x512xf32>
    %54 = vector.extract_strided_slice %53 {offsets = [0, 0], sizes = [8, 128], strides = [1, 1]} : vector<8x512xf32> to vector<8x128xf32>
    %cst_27 = arith.constant 5.000000e-01 : f32
    %55 = vector.broadcast %cst_27 : f32 to vector<8x128xf32>
    %56 = arith.mulf %55, %54 : vector<8x128xf32>
    %57 = math.tanh %56 : vector<8x128xf32>
    %cst_28 = arith.constant 5.000000e-01 : f32
    %58 = vector.broadcast %cst_28 : f32 to vector<8x128xf32>
    %59 = arith.mulf %58, %57 : vector<8x128xf32>
    %cst_29 = arith.constant 5.000000e-01 : f32
    %60 = vector.broadcast %cst_29 : f32 to vector<8x128xf32>
    %61 = arith.addf %59, %60 : vector<8x128xf32>
    %62 = vector.extract_strided_slice %53 {offsets = [0, 128], sizes = [8, 128], strides = [1, 1]} : vector<8x512xf32> to vector<8x128xf32>
    %cst_30 = arith.constant 5.000000e-01 : f32
    %63 = vector.broadcast %cst_30 : f32 to vector<8x128xf32>
    %64 = arith.mulf %63, %62 : vector<8x128xf32>
    %65 = math.tanh %64 : vector<8x128xf32>
    %cst_31 = arith.constant 5.000000e-01 : f32
    %66 = vector.broadcast %cst_31 : f32 to vector<8x128xf32>
    %67 = arith.mulf %66, %65 : vector<8x128xf32>
    %cst_32 = arith.constant 5.000000e-01 : f32
    %68 = vector.broadcast %cst_32 : f32 to vector<8x128xf32>
    %69 = arith.addf %67, %68 : vector<8x128xf32>
    %70 = vector.extract_strided_slice %53 {offsets = [0, 256], sizes = [8, 128], strides = [1, 1]} : vector<8x512xf32> to vector<8x128xf32>
    %71 = math.tanh %70 : vector<8x128xf32>
    %72 = vector.extract_strided_slice %53 {offsets = [0, 384], sizes = [8, 128], strides = [1, 1]} : vector<8x512xf32> to vector<8x128xf32>
    %cst_33 = arith.constant 5.000000e-01 : f32
    %73 = vector.broadcast %cst_33 : f32 to vector<8x128xf32>
    %74 = arith.mulf %73, %72 : vector<8x128xf32>
    %75 = math.tanh %74 : vector<8x128xf32>
    %cst_34 = arith.constant 5.000000e-01 : f32
    %76 = vector.broadcast %cst_34 : f32 to vector<8x128xf32>
    %77 = arith.mulf %76, %75 : vector<8x128xf32>
    %cst_35 = arith.constant 5.000000e-01 : f32
    %78 = vector.broadcast %cst_35 : f32 to vector<8x128xf32>
    %79 = arith.addf %77, %78 : vector<8x128xf32>
    %80 = arith.mulf %69, %44 : vector<8x128xf32>
    %81 = arith.mulf %61, %71 : vector<8x128xf32>
    %82 = arith.addf %80, %81 : vector<8x128xf32>
    %83 = math.tanh %82 : vector<8x128xf32>
    %84 = arith.mulf %79, %83 : vector<8x128xf32>
    %c2_i32 = arith.constant 2 : i32
    %c8_i32_36 = arith.constant 8 : i32
    %85 = arith.muli %c2_i32, %c8_i32_36 : i32
    %86 = tpu.assume_multiple %85, 8 : i32
    %87 = arith.index_cast %86 : i32 to index
    %c0_37 = arith.constant 0 : index
    %88 = vector.load %arg8[%87, %c0_37] : memref<64x512xf32, #tpu.memory_space<vmem>>, vector<8x512xf32>
    %c0_38 = arith.constant 0 : index
    %c0_39 = arith.constant 0 : index
    %89 = vector.load %arg3[%c0_38, %c0_39] : memref<128x512xf32, #tpu.memory_space<vmem>>, vector<128x512xf32>
    %cst_40 = arith.constant dense<0.000000e+00> : vector<8x512xf32>
    %90 = tpu.matmul %84, %89, %cst_40 {dimension_numbers = #tpu.dot_dimension_numbers<[1], [0], [0], [1], [0, 0, 1, 1], [], []>} : vector<8x128xf32>, vector<128x512xf32>, vector<8x512xf32> -> vector<8x512xf32>
    %91 = arith.addf %88, %90 : vector<8x512xf32>
    %92 = vector.extract_strided_slice %91 {offsets = [0, 0], sizes = [8, 128], strides = [1, 1]} : vector<8x512xf32> to vector<8x128xf32>
    %cst_41 = arith.constant 5.000000e-01 : f32
    %93 = vector.broadcast %cst_41 : f32 to vector<8x128xf32>
    %94 = arith.mulf %93, %92 : vector<8x128xf32>
    %95 = math.tanh %94 : vector<8x128xf32>
    %cst_42 = arith.constant 5.000000e-01 : f32
    %96 = vector.broadcast %cst_42 : f32 to vector<8x128xf32>
    %97 = arith.mulf %96, %95 : vector<8x128xf32>
    %cst_43 = arith.constant 5.000000e-01 : f32
    %98 = vector.broadcast %cst_43 : f32 to vector<8x128xf32>
    %99 = arith.addf %97, %98 : vector<8x128xf32>
    %100 = vector.extract_strided_slice %91 {offsets = [0, 128], sizes = [8, 128], strides = [1, 1]} : vector<8x512xf32> to vector<8x128xf32>
    %cst_44 = arith.constant 5.000000e-01 : f32
    %101 = vector.broadcast %cst_44 : f32 to vector<8x128xf32>
    %102 = arith.mulf %101, %100 : vector<8x128xf32>
    %103 = math.tanh %102 : vector<8x128xf32>
    %cst_45 = arith.constant 5.000000e-01 : f32
    %104 = vector.broadcast %cst_45 : f32 to vector<8x128xf32>
    %105 = arith.mulf %104, %103 : vector<8x128xf32>
    %cst_46 = arith.constant 5.000000e-01 : f32
    %106 = vector.broadcast %cst_46 : f32 to vector<8x128xf32>
    %107 = arith.addf %105, %106 : vector<8x128xf32>
    %108 = vector.extract_strided_slice %91 {offsets = [0, 256], sizes = [8, 128], strides = [1, 1]} : vector<8x512xf32> to vector<8x128xf32>
    %109 = math.tanh %108 : vector<8x128xf32>
    %110 = vector.extract_strided_slice %91 {offsets = [0, 384], sizes = [8, 128], strides = [1, 1]} : vector<8x512xf32> to vector<8x128xf32>
    %cst_47 = arith.constant 5.000000e-01 : f32
    %111 = vector.broadcast %cst_47 : f32 to vector<8x128xf32>
    %112 = arith.mulf %111, %110 : vector<8x128xf32>
    %113 = math.tanh %112 : vector<8x128xf32>
    %cst_48 = arith.constant 5.000000e-01 : f32
    %114 = vector.broadcast %cst_48 : f32 to vector<8x128xf32>
    %115 = arith.mulf %114, %113 : vector<8x128xf32>
    %cst_49 = arith.constant 5.000000e-01 : f32
    %116 = vector.broadcast %cst_49 : f32 to vector<8x128xf32>
    %117 = arith.addf %115, %116 : vector<8x128xf32>
    %118 = arith.mulf %107, %82 : vector<8x128xf32>
    %119 = arith.mulf %99, %109 : vector<8x128xf32>
    %120 = arith.addf %118, %119 : vector<8x128xf32>
    %121 = math.tanh %120 : vector<8x128xf32>
    %122 = arith.mulf %117, %121 : vector<8x128xf32>
    %c3_i32 = arith.constant 3 : i32
    %c8_i32_50 = arith.constant 8 : i32
    %123 = arith.muli %c3_i32, %c8_i32_50 : i32
    %124 = tpu.assume_multiple %123, 8 : i32
    %125 = arith.index_cast %124 : i32 to index
    %c0_51 = arith.constant 0 : index
    %126 = vector.load %arg8[%125, %c0_51] : memref<64x512xf32, #tpu.memory_space<vmem>>, vector<8x512xf32>
    %c0_52 = arith.constant 0 : index
    %c0_53 = arith.constant 0 : index
    %127 = vector.load %arg3[%c0_52, %c0_53] : memref<128x512xf32, #tpu.memory_space<vmem>>, vector<128x512xf32>
    %cst_54 = arith.constant dense<0.000000e+00> : vector<8x512xf32>
    %128 = tpu.matmul %122, %127, %cst_54 {dimension_numbers = #tpu.dot_dimension_numbers<[1], [0], [0], [1], [0, 0, 1, 1], [], []>} : vector<8x128xf32>, vector<128x512xf32>, vector<8x512xf32> -> vector<8x512xf32>
    %129 = arith.addf %126, %128 : vector<8x512xf32>
    %130 = vector.extract_strided_slice %129 {offsets = [0, 0], sizes = [8, 128], strides = [1, 1]} : vector<8x512xf32> to vector<8x128xf32>
    %cst_55 = arith.constant 5.000000e-01 : f32
    %131 = vector.broadcast %cst_55 : f32 to vector<8x128xf32>
    %132 = arith.mulf %131, %130 : vector<8x128xf32>
    %133 = math.tanh %132 : vector<8x128xf32>
    %cst_56 = arith.constant 5.000000e-01 : f32
    %134 = vector.broadcast %cst_56 : f32 to vector<8x128xf32>
    %135 = arith.mulf %134, %133 : vector<8x128xf32>
    %cst_57 = arith.constant 5.000000e-01 : f32
    %136 = vector.broadcast %cst_57 : f32 to vector<8x128xf32>
    %137 = arith.addf %135, %136 : vector<8x128xf32>
    %138 = vector.extract_strided_slice %129 {offsets = [0, 128], sizes = [8, 128], strides = [1, 1]} : vector<8x512xf32> to vector<8x128xf32>
    %cst_58 = arith.constant 5.000000e-01 : f32
    %139 = vector.broadcast %cst_58 : f32 to vector<8x128xf32>
    %140 = arith.mulf %139, %138 : vector<8x128xf32>
    %141 = math.tanh %140 : vector<8x128xf32>
    %cst_59 = arith.constant 5.000000e-01 : f32
    %142 = vector.broadcast %cst_59 : f32 to vector<8x128xf32>
    %143 = arith.mulf %142, %141 : vector<8x128xf32>
    %cst_60 = arith.constant 5.000000e-01 : f32
    %144 = vector.broadcast %cst_60 : f32 to vector<8x128xf32>
    %145 = arith.addf %143, %144 : vector<8x128xf32>
    %146 = vector.extract_strided_slice %129 {offsets = [0, 256], sizes = [8, 128], strides = [1, 1]} : vector<8x512xf32> to vector<8x128xf32>
    %147 = math.tanh %146 : vector<8x128xf32>
    %148 = vector.extract_strided_slice %129 {offsets = [0, 384], sizes = [8, 128], strides = [1, 1]} : vector<8x512xf32> to vector<8x128xf32>
    %cst_61 = arith.constant 5.000000e-01 : f32
    %149 = vector.broadcast %cst_61 : f32 to vector<8x128xf32>
    %150 = arith.mulf %149, %148 : vector<8x128xf32>
    %151 = math.tanh %150 : vector<8x128xf32>
    %cst_62 = arith.constant 5.000000e-01 : f32
    %152 = vector.broadcast %cst_62 : f32 to vector<8x128xf32>
    %153 = arith.mulf %152, %151 : vector<8x128xf32>
    %cst_63 = arith.constant 5.000000e-01 : f32
    %154 = vector.broadcast %cst_63 : f32 to vector<8x128xf32>
    %155 = arith.addf %153, %154 : vector<8x128xf32>
    %156 = arith.mulf %145, %120 : vector<8x128xf32>
    %157 = arith.mulf %137, %147 : vector<8x128xf32>
    %158 = arith.addf %156, %157 : vector<8x128xf32>
    %159 = math.tanh %158 : vector<8x128xf32>
    %160 = arith.mulf %155, %159 : vector<8x128xf32>
    %c4_i32 = arith.constant 4 : i32
    %c8_i32_64 = arith.constant 8 : i32
    %161 = arith.muli %c4_i32, %c8_i32_64 : i32
    %162 = tpu.assume_multiple %161, 8 : i32
    %163 = arith.index_cast %162 : i32 to index
    %c0_65 = arith.constant 0 : index
    %164 = vector.load %arg8[%163, %c0_65] : memref<64x512xf32, #tpu.memory_space<vmem>>, vector<8x512xf32>
    %c0_66 = arith.constant 0 : index
    %c0_67 = arith.constant 0 : index
    %165 = vector.load %arg3[%c0_66, %c0_67] : memref<128x512xf32, #tpu.memory_space<vmem>>, vector<128x512xf32>
    %cst_68 = arith.constant dense<0.000000e+00> : vector<8x512xf32>
    %166 = tpu.matmul %160, %165, %cst_68 {dimension_numbers = #tpu.dot_dimension_numbers<[1], [0], [0], [1], [0, 0, 1, 1], [], []>} : vector<8x128xf32>, vector<128x512xf32>, vector<8x512xf32> -> vector<8x512xf32>
    %167 = arith.addf %164, %166 : vector<8x512xf32>
    %168 = vector.extract_strided_slice %167 {offsets = [0, 0], sizes = [8, 128], strides = [1, 1]} : vector<8x512xf32> to vector<8x128xf32>
    %cst_69 = arith.constant 5.000000e-01 : f32
    %169 = vector.broadcast %cst_69 : f32 to vector<8x128xf32>
    %170 = arith.mulf %169, %168 : vector<8x128xf32>
    %171 = math.tanh %170 : vector<8x128xf32>
    %cst_70 = arith.constant 5.000000e-01 : f32
    %172 = vector.broadcast %cst_70 : f32 to vector<8x128xf32>
    %173 = arith.mulf %172, %171 : vector<8x128xf32>
    %cst_71 = arith.constant 5.000000e-01 : f32
    %174 = vector.broadcast %cst_71 : f32 to vector<8x128xf32>
    %175 = arith.addf %173, %174 : vector<8x128xf32>
    %176 = vector.extract_strided_slice %167 {offsets = [0, 128], sizes = [8, 128], strides = [1, 1]} : vector<8x512xf32> to vector<8x128xf32>
    %cst_72 = arith.constant 5.000000e-01 : f32
    %177 = vector.broadcast %cst_72 : f32 to vector<8x128xf32>
    %178 = arith.mulf %177, %176 : vector<8x128xf32>
    %179 = math.tanh %178 : vector<8x128xf32>
    %cst_73 = arith.constant 5.000000e-01 : f32
    %180 = vector.broadcast %cst_73 : f32 to vector<8x128xf32>
    %181 = arith.mulf %180, %179 : vector<8x128xf32>
    %cst_74 = arith.constant 5.000000e-01 : f32
    %182 = vector.broadcast %cst_74 : f32 to vector<8x128xf32>
    %183 = arith.addf %181, %182 : vector<8x128xf32>
    %184 = vector.extract_strided_slice %167 {offsets = [0, 256], sizes = [8, 128], strides = [1, 1]} : vector<8x512xf32> to vector<8x128xf32>
    %185 = math.tanh %184 : vector<8x128xf32>
    %186 = vector.extract_strided_slice %167 {offsets = [0, 384], sizes = [8, 128], strides = [1, 1]} : vector<8x512xf32> to vector<8x128xf32>
    %cst_75 = arith.constant 5.000000e-01 : f32
    %187 = vector.broadcast %cst_75 : f32 to vector<8x128xf32>
    %188 = arith.mulf %187, %186 : vector<8x128xf32>
    %189 = math.tanh %188 : vector<8x128xf32>
    %cst_76 = arith.constant 5.000000e-01 : f32
    %190 = vector.broadcast %cst_76 : f32 to vector<8x128xf32>
    %191 = arith.mulf %190, %189 : vector<8x128xf32>
    %cst_77 = arith.constant 5.000000e-01 : f32
    %192 = vector.broadcast %cst_77 : f32 to vector<8x128xf32>
    %193 = arith.addf %191, %192 : vector<8x128xf32>
    %194 = arith.mulf %183, %158 : vector<8x128xf32>
    %195 = arith.mulf %175, %185 : vector<8x128xf32>
    %196 = arith.addf %194, %195 : vector<8x128xf32>
    %197 = math.tanh %196 : vector<8x128xf32>
    %198 = arith.mulf %193, %197 : vector<8x128xf32>
    %c5_i32 = arith.constant 5 : i32
    %c8_i32_78 = arith.constant 8 : i32
    %199 = arith.muli %c5_i32, %c8_i32_78 : i32
    %200 = tpu.assume_multiple %199, 8 : i32
    %201 = arith.index_cast %200 : i32 to index
    %c0_79 = arith.constant 0 : index
    %202 = vector.load %arg8[%201, %c0_79] : memref<64x512xf32, #tpu.memory_space<vmem>>, vector<8x512xf32>
    %c0_80 = arith.constant 0 : index
    %c0_81 = arith.constant 0 : index
    %203 = vector.load %arg3[%c0_80, %c0_81] : memref<128x512xf32, #tpu.memory_space<vmem>>, vector<128x512xf32>
    %cst_82 = arith.constant dense<0.000000e+00> : vector<8x512xf32>
    %204 = tpu.matmul %198, %203, %cst_82 {dimension_numbers = #tpu.dot_dimension_numbers<[1], [0], [0], [1], [0, 0, 1, 1], [], []>} : vector<8x128xf32>, vector<128x512xf32>, vector<8x512xf32> -> vector<8x512xf32>
    %205 = arith.addf %202, %204 : vector<8x512xf32>
    %206 = vector.extract_strided_slice %205 {offsets = [0, 0], sizes = [8, 128], strides = [1, 1]} : vector<8x512xf32> to vector<8x128xf32>
    %cst_83 = arith.constant 5.000000e-01 : f32
    %207 = vector.broadcast %cst_83 : f32 to vector<8x128xf32>
    %208 = arith.mulf %207, %206 : vector<8x128xf32>
    %209 = math.tanh %208 : vector<8x128xf32>
    %cst_84 = arith.constant 5.000000e-01 : f32
    %210 = vector.broadcast %cst_84 : f32 to vector<8x128xf32>
    %211 = arith.mulf %210, %209 : vector<8x128xf32>
    %cst_85 = arith.constant 5.000000e-01 : f32
    %212 = vector.broadcast %cst_85 : f32 to vector<8x128xf32>
    %213 = arith.addf %211, %212 : vector<8x128xf32>
    %214 = vector.extract_strided_slice %205 {offsets = [0, 128], sizes = [8, 128], strides = [1, 1]} : vector<8x512xf32> to vector<8x128xf32>
    %cst_86 = arith.constant 5.000000e-01 : f32
    %215 = vector.broadcast %cst_86 : f32 to vector<8x128xf32>
    %216 = arith.mulf %215, %214 : vector<8x128xf32>
    %217 = math.tanh %216 : vector<8x128xf32>
    %cst_87 = arith.constant 5.000000e-01 : f32
    %218 = vector.broadcast %cst_87 : f32 to vector<8x128xf32>
    %219 = arith.mulf %218, %217 : vector<8x128xf32>
    %cst_88 = arith.constant 5.000000e-01 : f32
    %220 = vector.broadcast %cst_88 : f32 to vector<8x128xf32>
    %221 = arith.addf %219, %220 : vector<8x128xf32>
    %222 = vector.extract_strided_slice %205 {offsets = [0, 256], sizes = [8, 128], strides = [1, 1]} : vector<8x512xf32> to vector<8x128xf32>
    %223 = math.tanh %222 : vector<8x128xf32>
    %224 = vector.extract_strided_slice %205 {offsets = [0, 384], sizes = [8, 128], strides = [1, 1]} : vector<8x512xf32> to vector<8x128xf32>
    %cst_89 = arith.constant 5.000000e-01 : f32
    %225 = vector.broadcast %cst_89 : f32 to vector<8x128xf32>
    %226 = arith.mulf %225, %224 : vector<8x128xf32>
    %227 = math.tanh %226 : vector<8x128xf32>
    %cst_90 = arith.constant 5.000000e-01 : f32
    %228 = vector.broadcast %cst_90 : f32 to vector<8x128xf32>
    %229 = arith.mulf %228, %227 : vector<8x128xf32>
    %cst_91 = arith.constant 5.000000e-01 : f32
    %230 = vector.broadcast %cst_91 : f32 to vector<8x128xf32>
    %231 = arith.addf %229, %230 : vector<8x128xf32>
    %232 = arith.mulf %221, %196 : vector<8x128xf32>
    %233 = arith.mulf %213, %223 : vector<8x128xf32>
    %234 = arith.addf %232, %233 : vector<8x128xf32>
    %235 = math.tanh %234 : vector<8x128xf32>
    %236 = arith.mulf %231, %235 : vector<8x128xf32>
    %c6_i32 = arith.constant 6 : i32
    %c8_i32_92 = arith.constant 8 : i32
    %237 = arith.muli %c6_i32, %c8_i32_92 : i32
    %238 = tpu.assume_multiple %237, 8 : i32
    %239 = arith.index_cast %238 : i32 to index
    %c0_93 = arith.constant 0 : index
    %240 = vector.load %arg8[%239, %c0_93] : memref<64x512xf32, #tpu.memory_space<vmem>>, vector<8x512xf32>
    %c0_94 = arith.constant 0 : index
    %c0_95 = arith.constant 0 : index
    %241 = vector.load %arg3[%c0_94, %c0_95] : memref<128x512xf32, #tpu.memory_space<vmem>>, vector<128x512xf32>
    %cst_96 = arith.constant dense<0.000000e+00> : vector<8x512xf32>
    %242 = tpu.matmul %236, %241, %cst_96 {dimension_numbers = #tpu.dot_dimension_numbers<[1], [0], [0], [1], [0, 0, 1, 1], [], []>} : vector<8x128xf32>, vector<128x512xf32>, vector<8x512xf32> -> vector<8x512xf32>
    %243 = arith.addf %240, %242 : vector<8x512xf32>
    %244 = vector.extract_strided_slice %243 {offsets = [0, 0], sizes = [8, 128], strides = [1, 1]} : vector<8x512xf32> to vector<8x128xf32>
    %cst_97 = arith.constant 5.000000e-01 : f32
    %245 = vector.broadcast %cst_97 : f32 to vector<8x128xf32>
    %246 = arith.mulf %245, %244 : vector<8x128xf32>
    %247 = math.tanh %246 : vector<8x128xf32>
    %cst_98 = arith.constant 5.000000e-01 : f32
    %248 = vector.broadcast %cst_98 : f32 to vector<8x128xf32>
    %249 = arith.mulf %248, %247 : vector<8x128xf32>
    %cst_99 = arith.constant 5.000000e-01 : f32
    %250 = vector.broadcast %cst_99 : f32 to vector<8x128xf32>
    %251 = arith.addf %249, %250 : vector<8x128xf32>
    %252 = vector.extract_strided_slice %243 {offsets = [0, 128], sizes = [8, 128], strides = [1, 1]} : vector<8x512xf32> to vector<8x128xf32>
    %cst_100 = arith.constant 5.000000e-01 : f32
    %253 = vector.broadcast %cst_100 : f32 to vector<8x128xf32>
    %254 = arith.mulf %253, %252 : vector<8x128xf32>
    %255 = math.tanh %254 : vector<8x128xf32>
    %cst_101 = arith.constant 5.000000e-01 : f32
    %256 = vector.broadcast %cst_101 : f32 to vector<8x128xf32>
    %257 = arith.mulf %256, %255 : vector<8x128xf32>
    %cst_102 = arith.constant 5.000000e-01 : f32
    %258 = vector.broadcast %cst_102 : f32 to vector<8x128xf32>
    %259 = arith.addf %257, %258 : vector<8x128xf32>
    %260 = vector.extract_strided_slice %243 {offsets = [0, 256], sizes = [8, 128], strides = [1, 1]} : vector<8x512xf32> to vector<8x128xf32>
    %261 = math.tanh %260 : vector<8x128xf32>
    %262 = vector.extract_strided_slice %243 {offsets = [0, 384], sizes = [8, 128], strides = [1, 1]} : vector<8x512xf32> to vector<8x128xf32>
    %cst_103 = arith.constant 5.000000e-01 : f32
    %263 = vector.broadcast %cst_103 : f32 to vector<8x128xf32>
    %264 = arith.mulf %263, %262 : vector<8x128xf32>
    %265 = math.tanh %264 : vector<8x128xf32>
    %cst_104 = arith.constant 5.000000e-01 : f32
    %266 = vector.broadcast %cst_104 : f32 to vector<8x128xf32>
    %267 = arith.mulf %266, %265 : vector<8x128xf32>
    %cst_105 = arith.constant 5.000000e-01 : f32
    %268 = vector.broadcast %cst_105 : f32 to vector<8x128xf32>
    %269 = arith.addf %267, %268 : vector<8x128xf32>
    %270 = arith.mulf %259, %234 : vector<8x128xf32>
    %271 = arith.mulf %251, %261 : vector<8x128xf32>
    %272 = arith.addf %270, %271 : vector<8x128xf32>
    %273 = math.tanh %272 : vector<8x128xf32>
    %274 = arith.mulf %269, %273 : vector<8x128xf32>
    %c7_i32 = arith.constant 7 : i32
    %c8_i32_106 = arith.constant 8 : i32
    %275 = arith.muli %c7_i32, %c8_i32_106 : i32
    %276 = tpu.assume_multiple %275, 8 : i32
    %277 = arith.index_cast %276 : i32 to index
    %c0_107 = arith.constant 0 : index
    %278 = vector.load %arg8[%277, %c0_107] : memref<64x512xf32, #tpu.memory_space<vmem>>, vector<8x512xf32>
    %c0_108 = arith.constant 0 : index
    %c0_109 = arith.constant 0 : index
    %279 = vector.load %arg3[%c0_108, %c0_109] : memref<128x512xf32, #tpu.memory_space<vmem>>, vector<128x512xf32>
    %cst_110 = arith.constant dense<0.000000e+00> : vector<8x512xf32>
    %280 = tpu.matmul %274, %279, %cst_110 {dimension_numbers = #tpu.dot_dimension_numbers<[1], [0], [0], [1], [0, 0, 1, 1], [], []>} : vector<8x128xf32>, vector<128x512xf32>, vector<8x512xf32> -> vector<8x512xf32>
    %281 = arith.addf %278, %280 : vector<8x512xf32>
    %282 = vector.extract_strided_slice %281 {offsets = [0, 0], sizes = [8, 128], strides = [1, 1]} : vector<8x512xf32> to vector<8x128xf32>
    %cst_111 = arith.constant 5.000000e-01 : f32
    %283 = vector.broadcast %cst_111 : f32 to vector<8x128xf32>
    %284 = arith.mulf %283, %282 : vector<8x128xf32>
    %285 = math.tanh %284 : vector<8x128xf32>
    %cst_112 = arith.constant 5.000000e-01 : f32
    %286 = vector.broadcast %cst_112 : f32 to vector<8x128xf32>
    %287 = arith.mulf %286, %285 : vector<8x128xf32>
    %cst_113 = arith.constant 5.000000e-01 : f32
    %288 = vector.broadcast %cst_113 : f32 to vector<8x128xf32>
    %289 = arith.addf %287, %288 : vector<8x128xf32>
    %290 = vector.extract_strided_slice %281 {offsets = [0, 128], sizes = [8, 128], strides = [1, 1]} : vector<8x512xf32> to vector<8x128xf32>
    %cst_114 = arith.constant 5.000000e-01 : f32
    %291 = vector.broadcast %cst_114 : f32 to vector<8x128xf32>
    %292 = arith.mulf %291, %290 : vector<8x128xf32>
    %293 = math.tanh %292 : vector<8x128xf32>
    %cst_115 = arith.constant 5.000000e-01 : f32
    %294 = vector.broadcast %cst_115 : f32 to vector<8x128xf32>
    %295 = arith.mulf %294, %293 : vector<8x128xf32>
    %cst_116 = arith.constant 5.000000e-01 : f32
    %296 = vector.broadcast %cst_116 : f32 to vector<8x128xf32>
    %297 = arith.addf %295, %296 : vector<8x128xf32>
    %298 = vector.extract_strided_slice %281 {offsets = [0, 256], sizes = [8, 128], strides = [1, 1]} : vector<8x512xf32> to vector<8x128xf32>
    %299 = math.tanh %298 : vector<8x128xf32>
    %300 = vector.extract_strided_slice %281 {offsets = [0, 384], sizes = [8, 128], strides = [1, 1]} : vector<8x512xf32> to vector<8x128xf32>
    %cst_117 = arith.constant 5.000000e-01 : f32
    %301 = vector.broadcast %cst_117 : f32 to vector<8x128xf32>
    %302 = arith.mulf %301, %300 : vector<8x128xf32>
    %303 = math.tanh %302 : vector<8x128xf32>
    %cst_118 = arith.constant 5.000000e-01 : f32
    %304 = vector.broadcast %cst_118 : f32 to vector<8x128xf32>
    %305 = arith.mulf %304, %303 : vector<8x128xf32>
    %cst_119 = arith.constant 5.000000e-01 : f32
    %306 = vector.broadcast %cst_119 : f32 to vector<8x128xf32>
    %307 = arith.addf %305, %306 : vector<8x128xf32>
    %308 = arith.mulf %297, %272 : vector<8x128xf32>
    %309 = arith.mulf %289, %299 : vector<8x128xf32>
    %310 = arith.addf %308, %309 : vector<8x128xf32>
    %311 = math.tanh %310 : vector<8x128xf32>
    %312 = arith.mulf %307, %311 : vector<8x128xf32>
    %c8_i32_120 = arith.constant 8 : i32
    %c0_121 = arith.constant 0 : index
    %c0_122 = arith.constant 0 : index
    %313 = vector.load %arg5[%c0_121, %c0_122] : memref<128x128xf32, #tpu.memory_space<vmem>>, vector<128x128xf32>
    %cst_123 = arith.constant dense<0.000000e+00> : vector<8x128xf32>
    %314 = tpu.matmul %312, %313, %cst_123 {dimension_numbers = #tpu.dot_dimension_numbers<[1], [0], [0], [1], [0, 0, 1, 1], [], []>} : vector<8x128xf32>, vector<128x128xf32>, vector<8x128xf32> -> vector<8x128xf32>
    %c0_124 = arith.constant 0 : index
    %c0_125 = arith.constant 0 : index
    %315 = vector.load %arg6[%c0_124, %c0_125] : memref<1x128xf32, #tpu.memory_space<vmem>>, vector<1x128xf32>
    %316 = vector.broadcast %315 : vector<1x128xf32> to vector<8x128xf32>
    %317 = arith.addf %314, %316 : vector<8x128xf32>
    %cst_126 = arith.constant dense<0xFF800000> : vector<8xf32>
    %318 = vector.multi_reduction <maximumf>, %317, %cst_126 [1] : vector<8x128xf32> to vector<8xf32>
    %319 = vector.shape_cast %318 : vector<8xf32> to vector<8x1xf32>
    %320 = vector.broadcast %319 : vector<8x1xf32> to vector<8x128xf32>
    %321 = arith.subf %317, %320 : vector<8x128xf32>
    %322 = math.exp %321 : vector<8x128xf32>
    %cst_127 = arith.constant dense<0.000000e+00> : vector<8xf32>
    %323 = vector.multi_reduction <add>, %322, %cst_127 [1] : vector<8x128xf32> to vector<8xf32>
    %324 = vector.shape_cast %323 : vector<8xf32> to vector<8x1xf32>
    %325 = vector.broadcast %324 : vector<8x1xf32> to vector<8x128xf32>
    %326 = arith.divf %322, %325 : vector<8x128xf32>
    %c0_128 = arith.constant 0 : index
    %c0_129 = arith.constant 0 : index
    %327 = vector.load %arg7[%c0_128, %c0_129] : memref<8x128xf32, #tpu.memory_space<vmem>>, vector<8x128xf32>
    tpu.vector_store %arg7[%c0_128, %c0_129], %326 {strides = array<i32>} : memref<8x128xf32, #tpu.memory_space<vmem>>, vector<8x128xf32>,
    return
  }
  func.func @transform_0(%arg0: i32) -> (i32, i32) {
    %c0_i32 = arith.constant 0 : i32
    %c0_i32_0 = arith.constant 0 : i32
    %c0_i32_1 = arith.constant 0 : i32
    return %c0_i32, %c0_i32_0 : i32, i32
  }
  func.func @transform_1(%arg0: i32) -> (i32, i32) {
    %c0_i32 = arith.constant 0 : i32
    %c0_i32_0 = arith.constant 0 : i32
    %c0_i32_1 = arith.constant 0 : i32
    return %c0_i32, %c0_i32_0 : i32, i32
  }
  func.func @transform_2(%arg0: i32) -> (i32, i32) {
    %c0_i32 = arith.constant 0 : i32
    %c0_i32_0 = arith.constant 0 : i32
    %c0_i32_1 = arith.constant 0 : i32
    return %c0_i32, %c0_i32_0 : i32, i32
  }
  func.func @transform_3(%arg0: i32) -> (i32, i32) {
    %c0_i32 = arith.constant 0 : i32
    %c0_i32_0 = arith.constant 0 : i32
    %c0_i32_1 = arith.constant 0 : i32
    return %c0_i32, %c0_i32_0 : i32, i32
  }
  func.func @transform_4(%arg0: i32) -> (i32, i32) {
    %c0_i32 = arith.constant 0 : i32
    %c0_i32_0 = arith.constant 0 : i32
    %c0_i32_1 = arith.constant 0 : i32
    return %c0_i32, %c0_i32_0 : i32, i32
  }
  func.func @transform_5(%arg0: i32) -> (i32, i32) {
    %c0_i32 = arith.constant 0 : i32
    %c0_i32_0 = arith.constant 0 : i32
    %c0_i32_1 = arith.constant 0 : i32
    return %c0_i32, %c0_i32_0 : i32, i32
  }
  func.func @transform_6(%arg0: i32) -> (i32, i32) {
    %c0_i32 = arith.constant 0 : i32
    %c0_i32_0 = arith.constant 0 : i32
    %c0_i32_1 = arith.constant 0 : i32
    return %c0_i32, %c0_i32_0 : i32, i32
  }
}

module attributes {stable_mosaic.version = 11 : i64} {
  func.func @lstm_nli_kernel(%arg0: i32, %arg1: memref<64x32xf32, #tpu.memory_space<vmem>>, %arg2: memref<32x512xf32, #tpu.memory_space<vmem>>, %arg3: memref<128x512xf32, #tpu.memory_space<vmem>>, %arg4: memref<1x512xf32, #tpu.memory_space<vmem>>, %arg5: memref<128x128xf32, #tpu.memory_space<vmem>>, %arg6: memref<1x128xf32, #tpu.memory_space<vmem>>, %arg7: memref<8x128xf32, #tpu.memory_space<vmem>>, %arg8: memref<64x512xf32, #tpu.memory_space<vmem>>) attributes {dimension_semantics = [#tpu.dimension_semantics<arbitrary>], iteration_bounds = array<i64: 1>, scalar_prefetch = 0 : i64, scratch_operands = 1 : i64, tpu.core_type = #tpu.core_type<tc>, window_params = [{pipeline_mode = #tpu.pipeline_mode<synchronous>, transform_indices = @transform_0, window_bounds = array<i64: 64, 32>}, {pipeline_mode = #tpu.pipeline_mode<synchronous>, transform_indices = @transform_1, window_bounds = array<i64: 32, 512>}, {pipeline_mode = #tpu.pipeline_mode<synchronous>, transform_indices = @transform_2, window_bounds = array<i64: 128, 512>}, {pipeline_mode = #tpu.pipeline_mode<synchronous>, transform_indices = @transform_3, window_bounds = array<i64: 1, 512>}, {pipeline_mode = #tpu.pipeline_mode<synchronous>, transform_indices = @transform_4, window_bounds = array<i64: 128, 128>}, {pipeline_mode = #tpu.pipeline_mode<synchronous>, transform_indices = @transform_5, window_bounds = array<i64: 1, 128>}, {pipeline_mode = #tpu.pipeline_mode<synchronous>, transform_indices = @transform_6, window_bounds = array<i64: 8, 128>}]} {
    %c0 = arith.constant 0 : index
    %c0_0 = arith.constant 0 : index
    %0 = vector.load %arg1[%c0, %c0_0] : memref<64x32xf32, #tpu.memory_space<vmem>>, vector<64x32xf32>
    %c0_1 = arith.constant 0 : index
    %c0_2 = arith.constant 0 : index
    %1 = vector.load %arg2[%c0_1, %c0_2] : memref<32x512xf32, #tpu.memory_space<vmem>>, vector<32x512xf32>
    %cst = arith.constant dense<0.000000e+00> : vector<64x512xf32>
    %2 = tpu.matmul %0, %1, %cst {dimension_numbers = #tpu.dot_dimension_numbers<[1], [0], [0], [1], [0, 0, 1, 1], [], []>} : vector<64x32xf32>, vector<32x512xf32>, vector<64x512xf32> -> vector<64x512xf32>
    %c0_3 = arith.constant 0 : index
    %c0_4 = arith.constant 0 : index
    %3 = vector.load %arg4[%c0_3, %c0_4] : memref<1x512xf32, #tpu.memory_space<vmem>>, vector<1x512xf32>
    %4 = vector.broadcast %3 : vector<1x512xf32> to vector<64x512xf32>
    %5 = arith.addf %2, %4 : vector<64x512xf32>
    %c0_5 = arith.constant 0 : index
    %c0_6 = arith.constant 0 : index
    %6 = vector.load %arg8[%c0_5, %c0_6] : memref<64x512xf32, #tpu.memory_space<vmem>>, vector<64x512xf32>
    tpu.vector_store %arg8[%c0_5, %c0_6], %5 {strides = array<i32>} : memref<64x512xf32, #tpu.memory_space<vmem>>, vector<64x512xf32>,
    %cst_7 = arith.constant 0.000000e+00 : f32
    %7 = vector.broadcast %cst_7 : f32 to vector<8x128xf32>
    %cst_8 = arith.constant 0.000000e+00 : f32
    %8 = vector.broadcast %cst_8 : f32 to vector<8x128xf32>
    %c0_i32 = arith.constant 0 : i32
    %c8_i32 = arith.constant 8 : i32
    %9 = arith.muli %c0_i32, %c8_i32 : i32
    %10 = tpu.assume_multiple %9, 8 : i32
    %11 = arith.index_cast %10 : i32 to index
    %c0_9 = arith.constant 0 : index
    %12 = vector.load %arg8[%11, %c0_9] : memref<64x512xf32, #tpu.memory_space<vmem>>, vector<8x512xf32>
    %c0_10 = arith.constant 0 : index
    %c0_11 = arith.constant 0 : index
    %13 = vector.load %arg3[%c0_10, %c0_11] : memref<128x512xf32, #tpu.memory_space<vmem>>, vector<128x512xf32>
    %cst_12 = arith.constant dense<0.000000e+00> : vector<8x512xf32>
    %14 = tpu.matmul %7, %13, %cst_12 {dimension_numbers = #tpu.dot_dimension_numbers<[1], [0], [0], [1], [0, 0, 1, 1], [], []>} : vector<8x128xf32>, vector<128x512xf32>, vector<8x512xf32> -> vector<8x512xf32>
    %15 = arith.addf %12, %14 : vector<8x512xf32>
    %16 = vector.extract_strided_slice %15 {offsets = [0, 0], sizes = [8, 128], strides = [1, 1]} : vector<8x512xf32> to vector<8x128xf32>
    %cst_13 = arith.constant 5.000000e-01 : f32
    %17 = vector.broadcast %cst_13 : f32 to vector<8x128xf32>
    %18 = arith.mulf %17, %16 : vector<8x128xf32>
    %19 = math.tanh %18 : vector<8x128xf32>
    %cst_14 = arith.constant 5.000000e-01 : f32
    %20 = vector.broadcast %cst_14 : f32 to vector<8x128xf32>
    %21 = arith.mulf %20, %19 : vector<8x128xf32>
    %cst_15 = arith.constant 5.000000e-01 : f32
    %22 = vector.broadcast %cst_15 : f32 to vector<8x128xf32>
    %23 = arith.addf %21, %22 : vector<8x128xf32>
    %24 = vector.extract_strided_slice %15 {offsets = [0, 128], sizes = [8, 128], strides = [1, 1]} : vector<8x512xf32> to vector<8x128xf32>
    %cst_16 = arith.constant 5.000000e-01 : f32
    %25 = vector.broadcast %cst_16 : f32 to vector<8x128xf32>
    %26 = arith.mulf %25, %24 : vector<8x128xf32>
    %27 = math.tanh %26 : vector<8x128xf32>
    %cst_17 = arith.constant 5.000000e-01 : f32
    %28 = vector.broadcast %cst_17 : f32 to vector<8x128xf32>
    %29 = arith.mulf %28, %27 : vector<8x128xf32>
    %cst_18 = arith.constant 5.000000e-01 : f32
    %30 = vector.broadcast %cst_18 : f32 to vector<8x128xf32>
    %31 = arith.addf %29, %30 : vector<8x128xf32>
    %32 = vector.extract_strided_slice %15 {offsets = [0, 256], sizes = [8, 128], strides = [1, 1]} : vector<8x512xf32> to vector<8x128xf32>
    %33 = math.tanh %32 : vector<8x128xf32>
    %34 = vector.extract_strided_slice %15 {offsets = [0, 384], sizes = [8, 128], strides = [1, 1]} : vector<8x512xf32> to vector<8x128xf32>
    %cst_19 = arith.constant 5.000000e-01 : f32
    %35 = vector.broadcast %cst_19 : f32 to vector<8x128xf32>
    %36 = arith.mulf %35, %34 : vector<8x128xf32>
    %37 = math.tanh %36 : vector<8x128xf32>
    %cst_20 = arith.constant 5.000000e-01 : f32
    %38 = vector.broadcast %cst_20 : f32 to vector<8x128xf32>
    %39 = arith.mulf %38, %37 : vector<8x128xf32>
    %cst_21 = arith.constant 5.000000e-01 : f32
    %40 = vector.broadcast %cst_21 : f32 to vector<8x128xf32>
    %41 = arith.addf %39, %40 : vector<8x128xf32>
    %42 = arith.mulf %31, %8 : vector<8x128xf32>
    %43 = arith.mulf %23, %33 : vector<8x128xf32>
    %44 = arith.addf %42, %43 : vector<8x128xf32>
    %45 = math.tanh %44 : vector<8x128xf32>
    %46 = arith.mulf %41, %45 : vector<8x128xf32>
    %c1_i32 = arith.constant 1 : i32
    %c8_i32_22 = arith.constant 8 : i32
    %47 = arith.muli %c1_i32, %c8_i32_22 : i32
    %48 = tpu.assume_multiple %47, 8 : i32
    %49 = arith.index_cast %48 : i32 to index
    %c0_23 = arith.constant 0 : index
    %50 = vector.load %arg8[%49, %c0_23] : memref<64x512xf32, #tpu.memory_space<vmem>>, vector<8x512xf32>
    %c0_24 = arith.constant 0 : index
    %c0_25 = arith.constant 0 : index
    %51 = vector.load %arg3[%c0_24, %c0_25] : memref<128x512xf32, #tpu.memory_space<vmem>>, vector<128x512xf32>
    %cst_26 = arith.constant dense<0.000000e+00> : vector<8x512xf32>
    %52 = tpu.matmul %46, %51, %cst_26 {dimension_numbers = #tpu.dot_dimension_numbers<[1], [0], [0], [1], [0, 0, 1, 1], [], []>} : vector<8x128xf32>, vector<128x512xf32>, vector<8x512xf32> -> vector<8x512xf32>
    %53 = arith.addf %50, %52 : vector<8x512xf32>
    %54 = vector.extract_strided_slice %53 {offsets = [0, 0], sizes = [8, 128], strides = [1, 1]} : vector<8x512xf32> to vector<8x128xf32>
    %cst_27 = arith.constant 5.000000e-01 : f32
    %55 = vector.broadcast %cst_27 : f32 to vector<8x128xf32>
    %56 = arith.mulf %55, %54 : vector<8x128xf32>
    %57 = math.tanh %56 : vector<8x128xf32>
    %cst_28 = arith.constant 5.000000e-01 : f32
    %58 = vector.broadcast %cst_28 : f32 to vector<8x128xf32>
    %59 = arith.mulf %58, %57 : vector<8x128xf32>
    %cst_29 = arith.constant 5.000000e-01 : f32
    %60 = vector.broadcast %cst_29 : f32 to vector<8x128xf32>
    %61 = arith.addf %59, %60 : vector<8x128xf32>
    %62 = vector.extract_strided_slice %53 {offsets = [0, 128], sizes = [8, 128], strides = [1, 1]} : vector<8x512xf32> to vector<8x128xf32>
    %cst_30 = arith.constant 5.000000e-01 : f32
    %63 = vector.broadcast %cst_30 : f32 to vector<8x128xf32>
    %64 = arith.mulf %63, %62 : vector<8x128xf32>
    %65 = math.tanh %64 : vector<8x128xf32>
    %cst_31 = arith.constant 5.000000e-01 : f32
    %66 = vector.broadcast %cst_31 : f32 to vector<8x128xf32>
    %67 = arith.mulf %66, %65 : vector<8x128xf32>
    %cst_32 = arith.constant 5.000000e-01 : f32
    %68 = vector.broadcast %cst_32 : f32 to vector<8x128xf32>
    %69 = arith.addf %67, %68 : vector<8x128xf32>
    %70 = vector.extract_strided_slice %53 {offsets = [0, 256], sizes = [8, 128], strides = [1, 1]} : vector<8x512xf32> to vector<8x128xf32>
    %71 = math.tanh %70 : vector<8x128xf32>
    %72 = vector.extract_strided_slice %53 {offsets = [0, 384], sizes = [8, 128], strides = [1, 1]} : vector<8x512xf32> to vector<8x128xf32>
    %cst_33 = arith.constant 5.000000e-01 : f32
    %73 = vector.broadcast %cst_33 : f32 to vector<8x128xf32>
    %74 = arith.mulf %73, %72 : vector<8x128xf32>
    %75 = math.tanh %74 : vector<8x128xf32>
    %cst_34 = arith.constant 5.000000e-01 : f32
    %76 = vector.broadcast %cst_34 : f32 to vector<8x128xf32>
    %77 = arith.mulf %76, %75 : vector<8x128xf32>
    %cst_35 = arith.constant 5.000000e-01 : f32
    %78 = vector.broadcast %cst_35 : f32 to vector<8x128xf32>
    %79 = arith.addf %77, %78 : vector<8x128xf32>
    %80 = arith.mulf %69, %44 : vector<8x128xf32>
    %81 = arith.mulf %61, %71 : vector<8x128xf32>
    %82 = arith.addf %80, %81 : vector<8x128xf32>
    %83 = math.tanh %82 : vector<8x128xf32>
    %84 = arith.mulf %79, %83 : vector<8x128xf32>
    %c2_i32 = arith.constant 2 : i32
    %c8_i32_36 = arith.constant 8 : i32
    %85 = arith.muli %c2_i32, %c8_i32_36 : i32
    %86 = tpu.assume_multiple %85, 8 : i32
    %87 = arith.index_cast %86 : i32 to index
    %c0_37 = arith.constant 0 : index
    %88 = vector.load %arg8[%87, %c0_37] : memref<64x512xf32, #tpu.memory_space<vmem>>, vector<8x512xf32>
    %c0_38 = arith.constant 0 : index
    %c0_39 = arith.constant 0 : index
    %89 = vector.load %arg3[%c0_38, %c0_39] : memref<128x512xf32, #tpu.memory_space<vmem>>, vector<128x512xf32>
    %cst_40 = arith.constant dense<0.000000e+00> : vector<8x512xf32>
    %90 = tpu.matmul %84, %89, %cst_40 {dimension_numbers = #tpu.dot_dimension_numbers<[1], [0], [0], [1], [0, 0, 1, 1], [], []>} : vector<8x128xf32>, vector<128x512xf32>, vector<8x512xf32> -> vector<8x512xf32>
    %91 = arith.addf %88, %90 : vector<8x512xf32>
    %92 = vector.extract_strided_slice %91 {offsets = [0, 0], sizes = [8, 128], strides = [1, 1]} : vector<8x512xf32> to vector<8x128xf32>
    %cst_41 = arith.constant 5.000000e-01 : f32
    %93 = vector.broadcast %cst_41 : f32 to vector<8x128xf32>
    %94 = arith.mulf %93, %92 : vector<8x128xf32>
    %95 = math.tanh %94 : vector<8x128xf32>
    %cst_42 = arith.constant 5.000000e-01 : f32
    %96 = vector.broadcast %cst_42 : f32 to vector<8x128xf32>
    %97 = arith.mulf %96, %95 : vector<8x128xf32>
    %cst_43 = arith.constant 5.000000e-01 : f32
    %98 = vector.broadcast %cst_43 : f32 to vector<8x128xf32>
    %99 = arith.addf %97, %98 : vector<8x128xf32>
    %100 = vector.extract_strided_slice %91 {offsets = [0, 128], sizes = [8, 128], strides = [1, 1]} : vector<8x512xf32> to vector<8x128xf32>
    %cst_44 = arith.constant 5.000000e-01 : f32
    %101 = vector.broadcast %cst_44 : f32 to vector<8x128xf32>
    %102 = arith.mulf %101, %100 : vector<8x128xf32>
    %103 = math.tanh %102 : vector<8x128xf32>
    %cst_45 = arith.constant 5.000000e-01 : f32
    %104 = vector.broadcast %cst_45 : f32 to vector<8x128xf32>
    %105 = arith.mulf %104, %103 : vector<8x128xf32>
    %cst_46 = arith.constant 5.000000e-01 : f32
    %106 = vector.broadcast %cst_46 : f32 to vector<8x128xf32>
    %107 = arith.addf %105, %106 : vector<8x128xf32>
    %108 = vector.extract_strided_slice %91 {offsets = [0, 256], sizes = [8, 128], strides = [1, 1]} : vector<8x512xf32> to vector<8x128xf32>
    %109 = math.tanh %108 : vector<8x128xf32>
    %110 = vector.extract_strided_slice %91 {offsets = [0, 384], sizes = [8, 128], strides = [1, 1]} : vector<8x512xf32> to vector<8x128xf32>
    %cst_47 = arith.constant 5.000000e-01 : f32
    %111 = vector.broadcast %cst_47 : f32 to vector<8x128xf32>
    %112 = arith.mulf %111, %110 : vector<8x128xf32>
    %113 = math.tanh %112 : vector<8x128xf32>
    %cst_48 = arith.constant 5.000000e-01 : f32
    %114 = vector.broadcast %cst_48 : f32 to vector<8x128xf32>
    %115 = arith.mulf %114, %113 : vector<8x128xf32>
    %cst_49 = arith.constant 5.000000e-01 : f32
    %116 = vector.broadcast %cst_49 : f32 to vector<8x128xf32>
    %117 = arith.addf %115, %116 : vector<8x128xf32>
    %118 = arith.mulf %107, %82 : vector<8x128xf32>
    %119 = arith.mulf %99, %109 : vector<8x128xf32>
    %120 = arith.addf %118, %119 : vector<8x128xf32>
    %121 = math.tanh %120 : vector<8x128xf32>
    %122 = arith.mulf %117, %121 : vector<8x128xf32>
    %c3_i32 = arith.constant 3 : i32
    %c8_i32_50 = arith.constant 8 : i32
    %123 = arith.muli %c3_i32, %c8_i32_50 : i32
    %124 = tpu.assume_multiple %123, 8 : i32
    %125 = arith.index_cast %124 : i32 to index
    %c0_51 = arith.constant 0 : index
    %126 = vector.load %arg8[%125, %c0_51] : memref<64x512xf32, #tpu.memory_space<vmem>>, vector<8x512xf32>
    %c0_52 = arith.constant 0 : index
    %c0_53 = arith.constant 0 : index
    %127 = vector.load %arg3[%c0_52, %c0_53] : memref<128x512xf32, #tpu.memory_space<vmem>>, vector<128x512xf32>
    %cst_54 = arith.constant dense<0.000000e+00> : vector<8x512xf32>
    %128 = tpu.matmul %122, %127, %cst_54 {dimension_numbers = #tpu.dot_dimension_numbers<[1], [0], [0], [1], [0, 0, 1, 1], [], []>} : vector<8x128xf32>, vector<128x512xf32>, vector<8x512xf32> -> vector<8x512xf32>
    %129 = arith.addf %126, %128 : vector<8x512xf32>
    %130 = vector.extract_strided_slice %129 {offsets = [0, 0], sizes = [8, 128], strides = [1, 1]} : vector<8x512xf32> to vector<8x128xf32>
    %cst_55 = arith.constant 5.000000e-01 : f32
    %131 = vector.broadcast %cst_55 : f32 to vector<8x128xf32>
    %132 = arith.mulf %131, %130 : vector<8x128xf32>
    %133 = math.tanh %132 : vector<8x128xf32>
    %cst_56 = arith.constant 5.000000e-01 : f32
    %134 = vector.broadcast %cst_56 : f32 to vector<8x128xf32>
    %135 = arith.mulf %134, %133 : vector<8x128xf32>
    %cst_57 = arith.constant 5.000000e-01 : f32
    %136 = vector.broadcast %cst_57 : f32 to vector<8x128xf32>
    %137 = arith.addf %135, %136 : vector<8x128xf32>
    %138 = vector.extract_strided_slice %129 {offsets = [0, 128], sizes = [8, 128], strides = [1, 1]} : vector<8x512xf32> to vector<8x128xf32>
    %cst_58 = arith.constant 5.000000e-01 : f32
    %139 = vector.broadcast %cst_58 : f32 to vector<8x128xf32>
    %140 = arith.mulf %139, %138 : vector<8x128xf32>
    %141 = math.tanh %140 : vector<8x128xf32>
    %cst_59 = arith.constant 5.000000e-01 : f32
    %142 = vector.broadcast %cst_59 : f32 to vector<8x128xf32>
    %143 = arith.mulf %142, %141 : vector<8x128xf32>
    %cst_60 = arith.constant 5.000000e-01 : f32
    %144 = vector.broadcast %cst_60 : f32 to vector<8x128xf32>
    %145 = arith.addf %143, %144 : vector<8x128xf32>
    %146 = vector.extract_strided_slice %129 {offsets = [0, 256], sizes = [8, 128], strides = [1, 1]} : vector<8x512xf32> to vector<8x128xf32>
    %147 = math.tanh %146 : vector<8x128xf32>
    %148 = vector.extract_strided_slice %129 {offsets = [0, 384], sizes = [8, 128], strides = [1, 1]} : vector<8x512xf32> to vector<8x128xf32>
    %cst_61 = arith.constant 5.000000e-01 : f32
    %149 = vector.broadcast %cst_61 : f32 to vector<8x128xf32>
    %150 = arith.mulf %149, %148 : vector<8x128xf32>
    %151 = math.tanh %150 : vector<8x128xf32>
    %cst_62 = arith.constant 5.000000e-01 : f32
    %152 = vector.broadcast %cst_62 : f32 to vector<8x128xf32>
    %153 = arith.mulf %152, %151 : vector<8x128xf32>
    %cst_63 = arith.constant 5.000000e-01 : f32
    %154 = vector.broadcast %cst_63 : f32 to vector<8x128xf32>
    %155 = arith.addf %153, %154 : vector<8x128xf32>
    %156 = arith.mulf %145, %120 : vector<8x128xf32>
    %157 = arith.mulf %137, %147 : vector<8x128xf32>
    %158 = arith.addf %156, %157 : vector<8x128xf32>
    %159 = math.tanh %158 : vector<8x128xf32>
    %160 = arith.mulf %155, %159 : vector<8x128xf32>
    %c4_i32 = arith.constant 4 : i32
    %c8_i32_64 = arith.constant 8 : i32
    %161 = arith.muli %c4_i32, %c8_i32_64 : i32
    %162 = tpu.assume_multiple %161, 8 : i32
    %163 = arith.index_cast %162 : i32 to index
    %c0_65 = arith.constant 0 : index
    %164 = vector.load %arg8[%163, %c0_65] : memref<64x512xf32, #tpu.memory_space<vmem>>, vector<8x512xf32>
    %c0_66 = arith.constant 0 : index
    %c0_67 = arith.constant 0 : index
    %165 = vector.load %arg3[%c0_66, %c0_67] : memref<128x512xf32, #tpu.memory_space<vmem>>, vector<128x512xf32>
    %cst_68 = arith.constant dense<0.000000e+00> : vector<8x512xf32>
    %166 = tpu.matmul %160, %165, %cst_68 {dimension_numbers = #tpu.dot_dimension_numbers<[1], [0], [0], [1], [0, 0, 1, 1], [], []>} : vector<8x128xf32>, vector<128x512xf32>, vector<8x512xf32> -> vector<8x512xf32>
    %167 = arith.addf %164, %166 : vector<8x512xf32>
    %168 = vector.extract_strided_slice %167 {offsets = [0, 0], sizes = [8, 128], strides = [1, 1]} : vector<8x512xf32> to vector<8x128xf32>
    %cst_69 = arith.constant 5.000000e-01 : f32
    %169 = vector.broadcast %cst_69 : f32 to vector<8x128xf32>
    %170 = arith.mulf %169, %168 : vector<8x128xf32>
    %171 = math.tanh %170 : vector<8x128xf32>
    %cst_70 = arith.constant 5.000000e-01 : f32
    %172 = vector.broadcast %cst_70 : f32 to vector<8x128xf32>
    %173 = arith.mulf %172, %171 : vector<8x128xf32>
    %cst_71 = arith.constant 5.000000e-01 : f32
    %174 = vector.broadcast %cst_71 : f32 to vector<8x128xf32>
    %175 = arith.addf %173, %174 : vector<8x128xf32>
    %176 = vector.extract_strided_slice %167 {offsets = [0, 128], sizes = [8, 128], strides = [1, 1]} : vector<8x512xf32> to vector<8x128xf32>
    %cst_72 = arith.constant 5.000000e-01 : f32
    %177 = vector.broadcast %cst_72 : f32 to vector<8x128xf32>
    %178 = arith.mulf %177, %176 : vector<8x128xf32>
    %179 = math.tanh %178 : vector<8x128xf32>
    %cst_73 = arith.constant 5.000000e-01 : f32
    %180 = vector.broadcast %cst_73 : f32 to vector<8x128xf32>
    %181 = arith.mulf %180, %179 : vector<8x128xf32>
    %cst_74 = arith.constant 5.000000e-01 : f32
    %182 = vector.broadcast %cst_74 : f32 to vector<8x128xf32>
    %183 = arith.addf %181, %182 : vector<8x128xf32>
    %184 = vector.extract_strided_slice %167 {offsets = [0, 256], sizes = [8, 128], strides = [1, 1]} : vector<8x512xf32> to vector<8x128xf32>
    %185 = math.tanh %184 : vector<8x128xf32>
    %186 = vector.extract_strided_slice %167 {offsets = [0, 384], sizes = [8, 128], strides = [1, 1]} : vector<8x512xf32> to vector<8x128xf32>
    %cst_75 = arith.constant 5.000000e-01 : f32
    %187 = vector.broadcast %cst_75 : f32 to vector<8x128xf32>
    %188 = arith.mulf %187, %186 : vector<8x128xf32>
    %189 = math.tanh %188 : vector<8x128xf32>
    %cst_76 = arith.constant 5.000000e-01 : f32
    %190 = vector.broadcast %cst_76 : f32 to vector<8x128xf32>
    %191 = arith.mulf %190, %189 : vector<8x128xf32>
    %cst_77 = arith.constant 5.000000e-01 : f32
    %192 = vector.broadcast %cst_77 : f32 to vector<8x128xf32>
    %193 = arith.addf %191, %192 : vector<8x128xf32>
    %194 = arith.mulf %183, %158 : vector<8x128xf32>
    %195 = arith.mulf %175, %185 : vector<8x128xf32>
    %196 = arith.addf %194, %195 : vector<8x128xf32>
    %197 = math.tanh %196 : vector<8x128xf32>
    %198 = arith.mulf %193, %197 : vector<8x128xf32>
    %c5_i32 = arith.constant 5 : i32
    %c8_i32_78 = arith.constant 8 : i32
    %199 = arith.muli %c5_i32, %c8_i32_78 : i32
    %200 = tpu.assume_multiple %199, 8 : i32
    %201 = arith.index_cast %200 : i32 to index
    %c0_79 = arith.constant 0 : index
    %202 = vector.load %arg8[%201, %c0_79] : memref<64x512xf32, #tpu.memory_space<vmem>>, vector<8x512xf32>
    %c0_80 = arith.constant 0 : index
    %c0_81 = arith.constant 0 : index
    %203 = vector.load %arg3[%c0_80, %c0_81] : memref<128x512xf32, #tpu.memory_space<vmem>>, vector<128x512xf32>
    %cst_82 = arith.constant dense<0.000000e+00> : vector<8x512xf32>
    %204 = tpu.matmul %198, %203, %cst_82 {dimension_numbers = #tpu.dot_dimension_numbers<[1], [0], [0], [1], [0, 0, 1, 1], [], []>} : vector<8x128xf32>, vector<128x512xf32>, vector<8x512xf32> -> vector<8x512xf32>
    %205 = arith.addf %202, %204 : vector<8x512xf32>
    %206 = vector.extract_strided_slice %205 {offsets = [0, 0], sizes = [8, 128], strides = [1, 1]} : vector<8x512xf32> to vector<8x128xf32>
    %cst_83 = arith.constant 5.000000e-01 : f32
    %207 = vector.broadcast %cst_83 : f32 to vector<8x128xf32>
    %208 = arith.mulf %207, %206 : vector<8x128xf32>
    %209 = math.tanh %208 : vector<8x128xf32>
    %cst_84 = arith.constant 5.000000e-01 : f32
    %210 = vector.broadcast %cst_84 : f32 to vector<8x128xf32>
    %211 = arith.mulf %210, %209 : vector<8x128xf32>
    %cst_85 = arith.constant 5.000000e-01 : f32
    %212 = vector.broadcast %cst_85 : f32 to vector<8x128xf32>
    %213 = arith.addf %211, %212 : vector<8x128xf32>
    %214 = vector.extract_strided_slice %205 {offsets = [0, 128], sizes = [8, 128], strides = [1, 1]} : vector<8x512xf32> to vector<8x128xf32>
    %cst_86 = arith.constant 5.000000e-01 : f32
    %215 = vector.broadcast %cst_86 : f32 to vector<8x128xf32>
    %216 = arith.mulf %215, %214 : vector<8x128xf32>
    %217 = math.tanh %216 : vector<8x128xf32>
    %cst_87 = arith.constant 5.000000e-01 : f32
    %218 = vector.broadcast %cst_87 : f32 to vector<8x128xf32>
    %219 = arith.mulf %218, %217 : vector<8x128xf32>
    %cst_88 = arith.constant 5.000000e-01 : f32
    %220 = vector.broadcast %cst_88 : f32 to vector<8x128xf32>
    %221 = arith.addf %219, %220 : vector<8x128xf32>
    %222 = vector.extract_strided_slice %205 {offsets = [0, 256], sizes = [8, 128], strides = [1, 1]} : vector<8x512xf32> to vector<8x128xf32>
    %223 = math.tanh %222 : vector<8x128xf32>
    %224 = vector.extract_strided_slice %205 {offsets = [0, 384], sizes = [8, 128], strides = [1, 1]} : vector<8x512xf32> to vector<8x128xf32>
    %cst_89 = arith.constant 5.000000e-01 : f32
    %225 = vector.broadcast %cst_89 : f32 to vector<8x128xf32>
    %226 = arith.mulf %225, %224 : vector<8x128xf32>
    %227 = math.tanh %226 : vector<8x128xf32>
    %cst_90 = arith.constant 5.000000e-01 : f32
    %228 = vector.broadcast %cst_90 : f32 to vector<8x128xf32>
    %229 = arith.mulf %228, %227 : vector<8x128xf32>
    %cst_91 = arith.constant 5.000000e-01 : f32
    %230 = vector.broadcast %cst_91 : f32 to vector<8x128xf32>
    %231 = arith.addf %229, %230 : vector<8x128xf32>
    %232 = arith.mulf %221, %196 : vector<8x128xf32>
    %233 = arith.mulf %213, %223 : vector<8x128xf32>
    %234 = arith.addf %232, %233 : vector<8x128xf32>
    %235 = math.tanh %234 : vector<8x128xf32>
    %236 = arith.mulf %231, %235 : vector<8x128xf32>
    %c6_i32 = arith.constant 6 : i32
    %c8_i32_92 = arith.constant 8 : i32
    %237 = arith.muli %c6_i32, %c8_i32_92 : i32
    %238 = tpu.assume_multiple %237, 8 : i32
    %239 = arith.index_cast %238 : i32 to index
    %c0_93 = arith.constant 0 : index
    %240 = vector.load %arg8[%239, %c0_93] : memref<64x512xf32, #tpu.memory_space<vmem>>, vector<8x512xf32>
    %c0_94 = arith.constant 0 : index
    %c0_95 = arith.constant 0 : index
    %241 = vector.load %arg3[%c0_94, %c0_95] : memref<128x512xf32, #tpu.memory_space<vmem>>, vector<128x512xf32>
    %cst_96 = arith.constant dense<0.000000e+00> : vector<8x512xf32>
    %242 = tpu.matmul %236, %241, %cst_96 {dimension_numbers = #tpu.dot_dimension_numbers<[1], [0], [0], [1], [0, 0, 1, 1], [], []>} : vector<8x128xf32>, vector<128x512xf32>, vector<8x512xf32> -> vector<8x512xf32>
    %243 = arith.addf %240, %242 : vector<8x512xf32>
    %244 = vector.extract_strided_slice %243 {offsets = [0, 0], sizes = [8, 128], strides = [1, 1]} : vector<8x512xf32> to vector<8x128xf32>
    %cst_97 = arith.constant 5.000000e-01 : f32
    %245 = vector.broadcast %cst_97 : f32 to vector<8x128xf32>
    %246 = arith.mulf %245, %244 : vector<8x128xf32>
    %247 = math.tanh %246 : vector<8x128xf32>
    %cst_98 = arith.constant 5.000000e-01 : f32
    %248 = vector.broadcast %cst_98 : f32 to vector<8x128xf32>
    %249 = arith.mulf %248, %247 : vector<8x128xf32>
    %cst_99 = arith.constant 5.000000e-01 : f32
    %250 = vector.broadcast %cst_99 : f32 to vector<8x128xf32>
    %251 = arith.addf %249, %250 : vector<8x128xf32>
    %252 = vector.extract_strided_slice %243 {offsets = [0, 128], sizes = [8, 128], strides = [1, 1]} : vector<8x512xf32> to vector<8x128xf32>
    %cst_100 = arith.constant 5.000000e-01 : f32
    %253 = vector.broadcast %cst_100 : f32 to vector<8x128xf32>
    %254 = arith.mulf %253, %252 : vector<8x128xf32>
    %255 = math.tanh %254 : vector<8x128xf32>
    %cst_101 = arith.constant 5.000000e-01 : f32
    %256 = vector.broadcast %cst_101 : f32 to vector<8x128xf32>
    %257 = arith.mulf %256, %255 : vector<8x128xf32>
    %cst_102 = arith.constant 5.000000e-01 : f32
    %258 = vector.broadcast %cst_102 : f32 to vector<8x128xf32>
    %259 = arith.addf %257, %258 : vector<8x128xf32>
    %260 = vector.extract_strided_slice %243 {offsets = [0, 256], sizes = [8, 128], strides = [1, 1]} : vector<8x512xf32> to vector<8x128xf32>
    %261 = math.tanh %260 : vector<8x128xf32>
    %262 = vector.extract_strided_slice %243 {offsets = [0, 384], sizes = [8, 128], strides = [1, 1]} : vector<8x512xf32> to vector<8x128xf32>
    %cst_103 = arith.constant 5.000000e-01 : f32
    %263 = vector.broadcast %cst_103 : f32 to vector<8x128xf32>
    %264 = arith.mulf %263, %262 : vector<8x128xf32>
    %265 = math.tanh %264 : vector<8x128xf32>
    %cst_104 = arith.constant 5.000000e-01 : f32
    %266 = vector.broadcast %cst_104 : f32 to vector<8x128xf32>
    %267 = arith.mulf %266, %265 : vector<8x128xf32>
    %cst_105 = arith.constant 5.000000e-01 : f32
    %268 = vector.broadcast %cst_105 : f32 to vector<8x128xf32>
    %269 = arith.addf %267, %268 : vector<8x128xf32>
    %270 = arith.mulf %259, %234 : vector<8x128xf32>
    %271 = arith.mulf %251, %261 : vector<8x128xf32>
    %272 = arith.addf %270, %271 : vector<8x128xf32>
    %273 = math.tanh %272 : vector<8x128xf32>
    %274 = arith.mulf %269, %273 : vector<8x128xf32>
    %c7_i32 = arith.constant 7 : i32
    %c8_i32_106 = arith.constant 8 : i32
    %275 = arith.muli %c7_i32, %c8_i32_106 : i32
    %276 = tpu.assume_multiple %275, 8 : i32
    %277 = arith.index_cast %276 : i32 to index
    %c0_107 = arith.constant 0 : index
    %278 = vector.load %arg8[%277, %c0_107] : memref<64x512xf32, #tpu.memory_space<vmem>>, vector<8x512xf32>
    %c0_108 = arith.constant 0 : index
    %c0_109 = arith.constant 0 : index
    %279 = vector.load %arg3[%c0_108, %c0_109] : memref<128x512xf32, #tpu.memory_space<vmem>>, vector<128x512xf32>
    %cst_110 = arith.constant dense<0.000000e+00> : vector<8x512xf32>
    %280 = tpu.matmul %274, %279, %cst_110 {dimension_numbers = #tpu.dot_dimension_numbers<[1], [0], [0], [1], [0, 0, 1, 1], [], []>} : vector<8x128xf32>, vector<128x512xf32>, vector<8x512xf32> -> vector<8x512xf32>
    %281 = arith.addf %278, %280 : vector<8x512xf32>
    %282 = vector.extract_strided_slice %281 {offsets = [0, 0], sizes = [8, 128], strides = [1, 1]} : vector<8x512xf32> to vector<8x128xf32>
    %cst_111 = arith.constant 5.000000e-01 : f32
    %283 = vector.broadcast %cst_111 : f32 to vector<8x128xf32>
    %284 = arith.mulf %283, %282 : vector<8x128xf32>
    %285 = math.tanh %284 : vector<8x128xf32>
    %cst_112 = arith.constant 5.000000e-01 : f32
    %286 = vector.broadcast %cst_112 : f32 to vector<8x128xf32>
    %287 = arith.mulf %286, %285 : vector<8x128xf32>
    %cst_113 = arith.constant 5.000000e-01 : f32
    %288 = vector.broadcast %cst_113 : f32 to vector<8x128xf32>
    %289 = arith.addf %287, %288 : vector<8x128xf32>
    %290 = vector.extract_strided_slice %281 {offsets = [0, 128], sizes = [8, 128], strides = [1, 1]} : vector<8x512xf32> to vector<8x128xf32>
    %cst_114 = arith.constant 5.000000e-01 : f32
    %291 = vector.broadcast %cst_114 : f32 to vector<8x128xf32>
    %292 = arith.mulf %291, %290 : vector<8x128xf32>
    %293 = math.tanh %292 : vector<8x128xf32>
    %cst_115 = arith.constant 5.000000e-01 : f32
    %294 = vector.broadcast %cst_115 : f32 to vector<8x128xf32>
    %295 = arith.mulf %294, %293 : vector<8x128xf32>
    %cst_116 = arith.constant 5.000000e-01 : f32
    %296 = vector.broadcast %cst_116 : f32 to vector<8x128xf32>
    %297 = arith.addf %295, %296 : vector<8x128xf32>
    %298 = vector.extract_strided_slice %281 {offsets = [0, 256], sizes = [8, 128], strides = [1, 1]} : vector<8x512xf32> to vector<8x128xf32>
    %299 = math.tanh %298 : vector<8x128xf32>
    %300 = vector.extract_strided_slice %281 {offsets = [0, 384], sizes = [8, 128], strides = [1, 1]} : vector<8x512xf32> to vector<8x128xf32>
    %cst_117 = arith.constant 5.000000e-01 : f32
    %301 = vector.broadcast %cst_117 : f32 to vector<8x128xf32>
    %302 = arith.mulf %301, %300 : vector<8x128xf32>
    %303 = math.tanh %302 : vector<8x128xf32>
    %cst_118 = arith.constant 5.000000e-01 : f32
    %304 = vector.broadcast %cst_118 : f32 to vector<8x128xf32>
    %305 = arith.mulf %304, %303 : vector<8x128xf32>
    %cst_119 = arith.constant 5.000000e-01 : f32
    %306 = vector.broadcast %cst_119 : f32 to vector<8x128xf32>
    %307 = arith.addf %305, %306 : vector<8x128xf32>
    %308 = arith.mulf %297, %272 : vector<8x128xf32>
    %309 = arith.mulf %289, %299 : vector<8x128xf32>
    %310 = arith.addf %308, %309 : vector<8x128xf32>
    %311 = math.tanh %310 : vector<8x128xf32>
    %312 = arith.mulf %307, %311 : vector<8x128xf32>
    %c8_i32_120 = arith.constant 8 : i32
    %c0_121 = arith.constant 0 : index
    %c0_122 = arith.constant 0 : index
    %313 = vector.load %arg5[%c0_121, %c0_122] : memref<128x128xf32, #tpu.memory_space<vmem>>, vector<128x128xf32>
    %cst_123 = arith.constant dense<0.000000e+00> : vector<8x128xf32>
    %314 = tpu.matmul %312, %313, %cst_123 {dimension_numbers = #tpu.dot_dimension_numbers<[1], [0], [0], [1], [0, 0, 1, 1], [], []>} : vector<8x128xf32>, vector<128x128xf32>, vector<8x128xf32> -> vector<8x128xf32>
    %c0_124 = arith.constant 0 : index
    %c0_125 = arith.constant 0 : index
    %315 = vector.load %arg6[%c0_124, %c0_125] : memref<1x128xf32, #tpu.memory_space<vmem>>, vector<1x128xf32>
    %316 = vector.broadcast %315 : vector<1x128xf32> to vector<8x128xf32>
    %317 = arith.addf %314, %316 : vector<8x128xf32>
    %cst_126 = arith.constant dense<0xFF800000> : vector<8xf32>
    %318 = vector.multi_reduction <maximumf>, %317, %cst_126 [1] : vector<8x128xf32> to vector<8xf32>
    %319 = vector.shape_cast %318 : vector<8xf32> to vector<8x1xf32>
    %320 = vector.broadcast %319 : vector<8x1xf32> to vector<8x128xf32>
    %321 = arith.subf %317, %320 : vector<8x128xf32>
    %322 = math.exp %321 : vector<8x128xf32>
    %cst_127 = arith.constant dense<0.000000e+00> : vector<8xf32>
    %323 = vector.multi_reduction <add>, %322, %cst_127 [1] : vector<8x128xf32> to vector<8xf32>
    %324 = vector.shape_cast %323 : vector<8xf32> to vector<8x1xf32>
    %325 = vector.broadcast %324 : vector<8x1xf32> to vector<8x128xf32>
    %326 = arith.divf %322, %325 : vector<8x128xf32>
    %c0_128 = arith.constant 0 : index
    %c0_129 = arith.constant 0 : index
    %327 = vector.load %arg7[%c0_128, %c0_129] : memref<8x128xf32, #tpu.memory_space<vmem>>, vector<8x128xf32>
    tpu.vector_store %arg7[%c0_128, %c0_129], %326 {strides = array<i32>} : memref<8x128xf32, #tpu.memory_space<vmem>>, vector<8x128xf32>,
    return
  }
  func.func @transform_0(%arg0: i32) -> (i32, i32) {
    %c0_i32 = arith.constant 0 : i32
    %c0_i32_0 = arith.constant 0 : i32
    %c0_i32_1 = arith.constant 0 : i32
    return %c0_i32, %c0_i32_0 : i32, i32
  }
  func.func @transform_1(%arg0: i32) -> (i32, i32) {
    %c0_i32 = arith.constant 0 : i32
    %c0_i32_0 = arith.constant 0 : i32
    %c0_i32_1 = arith.constant 0 : i32
    return %c0_i32, %c0_i32_0 : i32, i32
  }
  func.func @transform_2(%arg0: i32) -> (i32, i32) {
    %c0_i32 = arith.constant 0 : i32
    %c0_i32_0 = arith.constant 0 : i32
    %c0_i32_1 = arith.constant 0 : i32
    return %c0_i32, %c0_i32_0 : i32, i32
  }
  func.func @transform_3(%arg0: i32) -> (i32, i32) {
    %c0_i32 = arith.constant 0 : i32
    %c0_i32_0 = arith.constant 0 : i32
    %c0_i32_1 = arith.constant 0 : i32
    return %c0_i32, %c0_i32_0 : i32, i32
  }
  func.func @transform_4(%arg0: i32) -> (i32, i32) {
    %c0_i32 = arith.constant 0 : i32
    %c0_i32_0 = arith.constant 0 : i32
    %c0_i32_1 = arith.constant 0 : i32
    return %c0_i32, %c0_i32_0 : i32, i32
  }
  func.func @transform_5(%arg0: i32) -> (i32, i32) {
    %c0_i32 = arith.constant 0 : i32
    %c0_i32_0 = arith.constant 0 : i32
    %c0_i32_1 = arith.constant 0 : i32
    return %c0_i32, %c0_i32_0 : i32, i32
  }
  func.func @transform_6(%arg0: i32) -> (i32, i32) {
    %c0_i32 = arith.constant 0 : i32
    %c0_i32_0 = arith.constant 0 : i32
    %c0_i32_1 = arith.constant 0 : i32
    return %c0_i32, %c0_i32_0 : i32, i32
  }
}

</mosaic_0001>

<llo_original>
// kernel: tpu_custom_call.1
$region0: #{tpu_custom_call.1}
  #allocation0 [shape = 'u32[]', space=smem, size = 0x4, offset = 0x4, fixed_abs, tag = 'smem constant byte address 0x4 - core index']
  #allocation1 [shape = 'u32[144,128]{1,0:T(1,128)}', space=vmem, size = 0x12000, scoped, tag = 'internal scratch']
  #allocation2 [shape = 'f32[64,512]{1,0:T(8,128)}', space=vmem, size = 0x20000, scoped, tag = 'scratch operand']
  %s0 = inlined_call_operand.vmem [shape: f32[64,32], index: 0, kind: input, shape index: {}]
  %s1 = inlined_call_operand.hbm [shape: f32[32,512], index: 1, kind: input, shape index: {}]
  %s2 = inlined_call_operand.hbm [shape: f32[128,512], index: 2, kind: input, shape index: {}]
  %s3 = inlined_call_operand.vmem [shape: f32[1,512], index: 3, kind: input, shape index: {}]
  %s4 = inlined_call_operand.hbm [shape: f32[128,128], index: 4, kind: input, shape index: {}]
  %s5 = inlined_call_operand.vmem [shape: f32[1,128], index: 5, kind: input, shape index: {}]
  %s6 = inlined_call_operand.hbm [shape: f32[8,128], index: 6, kind: output, shape index: {}]
  %s7 = sld [smem:[#allocation0]]
  $region46: #{tpu_custom_call.1} parent=0
    _
  %s9 = ssub.s32 1, %s7
  %s10 = scalar_select 0, %s9, %s7
  $region1: #{tpu_custom_call.1} parent=0
    #allocation3 [shape = 'u8[65536]{0}', space=vmem, size = 0x10000, scoped, tag = 'input window, operand 1, single buffered']
    #allocation4 [shape = 's32[1]{0}', space=sflag, size = 0x4, scoped, tag = 'scoped memory for tpu_custom_call.1']
    #allocation5 [shape = 's32[1]{0}', space=sflag, size = 0x4, scoped, tag = 'scoped memory for tpu_custom_call.1']
    #allocation6 [shape = 'u8[262144]{0}', space=vmem, size = 0x40000, scoped, tag = 'input window, operand 2, single buffered']
    #allocation7 [shape = 's32[1]{0}', space=sflag, size = 0x4, scoped, tag = 'scoped memory for tpu_custom_call.1']
    #allocation8 [shape = 'u8[65536]{0}', space=vmem, size = 0x10000, scoped, tag = 'input window, operand 4, single buffered']
    #allocation9 [shape = 'u8[4096]{0}', space=vmem, size = 0x1000, scoped, tag = 'output window, operand 0, single buffered']
    %11 = vsyncpa [#allocation4], 0
    %12 = vsyncpa [#allocation7], 0
    %13 = vsyncpa [#allocation5], 0
    // Predicated region
    $region2: #{tpu_custom_call.1} parent=1 // pred_check
      _
    $region3: #{tpu_custom_call.1} parent=1 // pred_check_branch
      %15 = sbr.rel (0) target = $region5
    $region4: #{tpu_custom_call.1} parent=1 // pred_region
      _
    $region5: #{tpu_custom_call.1} parent=1 // pred_fallthru
      _
    // Predicated region
    $region6: #{tpu_custom_call.1} parent=1 // pred_check
      _
    $region7: #{tpu_custom_call.1} parent=1 // pred_check_branch
      %17 = sbr.rel (0) target = $region9
    $region8: #{tpu_custom_call.1} parent=1 // pred_region
      %s19 = ssub.s32 2048, 2048
      %20 = vsyncadd [#allocation4], %s19
      %s21 = sshll.u32 [#allocation3], 4
      %s22 = int_to_ptr.vmem [resolvable:$true] %s21
      %27 = dma.hbm_to_vmem [thread:$0]  %s1, 2048, %s22, [#allocation4], 512, 512, 32
    $region9: #{tpu_custom_call.1} parent=1 // pred_fallthru
      _
    // Predicated region
    $region10: #{tpu_custom_call.1} parent=1 // pred_check
      _
    $region11: #{tpu_custom_call.1} parent=1 // pred_check_branch
      %29 = sbr.rel (0) target = $region13
    $region12: #{tpu_custom_call.1} parent=1 // pred_region
      %s31 = ssub.s32 8192, 8192
      %32 = vsyncadd [#allocation7], %s31
      %s33 = sshll.u32 [#allocation6], 4
      %s34 = int_to_ptr.vmem [resolvable:$true] %s33
      %39 = dma.hbm_to_vmem [thread:$0]  %s2, 8192, %s34, [#allocation7], 512, 512, 32
    $region13: #{tpu_custom_call.1} parent=1 // pred_fallthru
      _
    // Predicated region
    $region14: #{tpu_custom_call.1} parent=1 // pred_check
      _
    $region15: #{tpu_custom_call.1} parent=1 // pred_check_branch
      %41 = sbr.rel (0) target = $region17
    $region16: #{tpu_custom_call.1} parent=1 // pred_region
      _
    $region17: #{tpu_custom_call.1} parent=1 // pred_fallthru
      _
    // Predicated region
    $region18: #{tpu_custom_call.1} parent=1 // pred_check
      _
    $region19: #{tpu_custom_call.1} parent=1 // pred_check_branch
      %43 = sbr.rel (0) target = $region21
    $region20: #{tpu_custom_call.1} parent=1 // pred_region
      %s45 = ssub.s32 2048, 2048
      %46 = vsyncadd [#allocation7], %s45
      %s47 = sshll.u32 [#allocation8], 4
      %s48 = int_to_ptr.vmem [resolvable:$true] %s47
      %53 = dma.hbm_to_vmem [thread:$0]  %s4, 2048, %s48, [#allocation7], 128, 128, 8
    $region21: #{tpu_custom_call.1} parent=1 // pred_fallthru
      _
    // Predicated region
    $region22: #{tpu_custom_call.1} parent=1 // pred_check
      _
    $region23: #{tpu_custom_call.1} parent=1 // pred_check_branch
      %55 = sbr.rel (0) target = $region25
    $region24: #{tpu_custom_call.1} parent=1 // pred_region
      _
    $region25: #{tpu_custom_call.1} parent=1 // pred_fallthru
      _
    // Predicated region
    $region26: #{tpu_custom_call.1} parent=1 // pred_check
      _
    $region27: #{tpu_custom_call.1} parent=1 // pred_check_branch
      %57 = sbr.rel (0) target = $region29
    $region28: #{tpu_custom_call.1} parent=1 // pred_region
      %58 = dma.done [#allocation4], 2048
    $region29: #{tpu_custom_call.1} parent=1 // pred_fallthru
      _
    // Predicated region
    $region30: #{tpu_custom_call.1} parent=1 // pred_check
      _
    $region31: #{tpu_custom_call.1} parent=1 // pred_check_branch
      %60 = sbr.rel (0) target = $region33
    $region32: #{tpu_custom_call.1} parent=1 // pred_region
      %61 = dma.done [#allocation7], 8192
    $region33: #{tpu_custom_call.1} parent=1 // pred_fallthru
      _
    // Predicated region
    $region34: #{tpu_custom_call.1} parent=1 // pred_check
      _
    $region35: #{tpu_custom_call.1} parent=1 // pred_check_branch
      %63 = sbr.rel (0) target = $region37
    $region36: #{tpu_custom_call.1} parent=1 // pred_region
      %64 = dma.done [#allocation7], 2048
    $region37: #{tpu_custom_call.1} parent=1 // pred_fallthru
      _
    %v65 = vld [vmem:[%s0] sm:$0xff]
    %v66 = vld [vmem:[%s0 + $0x8] sm:$0xff]
    %v67 = vld [vmem:[%s0 + $0x10] sm:$0xff]
    %v68 = vld [vmem:[%s0 + $0x18] sm:$0xff]
    %v69 = vld [vmem:[%s0 + $0x20] sm:$0xff]
    %v70 = vld [vmem:[%s0 + $0x28] sm:$0xff]
    %v71 = vld [vmem:[%s0 + $0x30] sm:$0xff]
    %v72 = vld [vmem:[%s0 + $0x38] sm:$0xff]
    %v73 = vld [vmem:[#allocation3] sm:$0xff]
    %v74 = vld [vmem:[#allocation3 + $0x8] sm:$0xff]
    %v75 = vld [vmem:[#allocation3 + $0x10] sm:$0xff]
    %v76 = vld [vmem:[#allocation3 + $0x18] sm:$0xff]
    %v77 = vld [vmem:[#allocation3 + $0x20] sm:$0xff]
    %v78 = vld [vmem:[#allocation3 + $0x28] sm:$0xff]
    %v79 = vld [vmem:[#allocation3 + $0x30] sm:$0xff]
    %v80 = vld [vmem:[#allocation3 + $0x38] sm:$0xff]
    %v81 = vld [vmem:[#allocation3 + $0x40] sm:$0xff]
    %v82 = vld [vmem:[#allocation3 + $0x48] sm:$0xff]
    %v83 = vld [vmem:[#allocation3 + $0x50] sm:$0xff]
    %v84 = vld [vmem:[#allocation3 + $0x58] sm:$0xff]
    %v85 = vld [vmem:[#allocation3 + $0x60] sm:$0xff]
    %v86 = vld [vmem:[#allocation3 + $0x68] sm:$0xff]
    %v87 = vld [vmem:[#allocation3 + $0x70] sm:$0xff]
    %v88 = vld [vmem:[#allocation3 + $0x78] sm:$0xff]
    %v89 = vld [vmem:[%s3] sm:$0xf]
    %v91 = vlaneseq
    %v92 = vshrl.u32 %v91, 7
    %v93 = vsub.s32 0, %v92
    %v94 = vrot.slane %v89, %v93
    %v95 = vlaneseq
    %v96 = vshrl.u32 %v95, 7
    %v97 = vsub.s32 1, %v96
    %v98 = vrot.slane %v89, %v97
    %v99 = vlaneseq
    %v100 = vshrl.u32 %v99, 7
    %v101 = vsub.s32 2, %v100
    %v102 = vrot.slane %v89, %v101
    %v103 = vlaneseq
    %v104 = vshrl.u32 %v103, 7
    %v105 = vsub.s32 3, %v104
    %v106 = vrot.slane %v89, %v105
    %vm111 = vcmask 261120
    %v113 = vsel %vm111, %v65, 0
    %v116 = vsel %vm111, %v66, 0
    %v119 = vsel %vm111, %v67, 0
    %v122 = vsel %vm111, %v68, 0
    %v125 = vsel %vm111, %v69, 0
    %v128 = vsel %vm111, %v70, 0
    %v131 = vsel %vm111, %v71, 0
    %v134 = vsel %vm111, %v72, 0
    %136 = vmatprep.subr.mxu0 %v74
    %137 = vmatpush1.msra.mxu0 %v73
    %138 = vmatprep.subr.mxu0 %v78
    %139 = vmatpush1.msra.mxu0 %v77
    %140 = vmatprep.subr.mxu0 %v82
    %141 = vmatpush1.msra.mxu0 %v81
    %142 = vmatprep.subr.mxu0 %v86
    %143 = vmatpush1.msra.mxu0 %v85
    %144 = vmatprep.subr.mxu0 0.0
    %145 = vmatpush1.msra.mxu0 0.0
    %146 = vmatprep.subr.mxu0 0.0
    %147 = vmatpush1.msra.mxu0 0.0
    %148 = vmatprep.subr.mxu0 0.0
    %149 = vmatpush1.msra.mxu0 0.0
    %150 = vmatprep.subr.mxu0 0.0
    %151 = vmatpush1.msra.mxu0 0.0
    %152 = vmatprep.subr.mxu0 0.0
    %153 = vmatpush1.msra.mxu0 0.0
    %154 = vmatprep.subr.mxu0 0.0
    %155 = vmatpush1.msra.mxu0 0.0
    %156 = vmatprep.subr.mxu0 0.0
    %157 = vmatpush1.msra.mxu0 0.0
    %158 = vmatprep.subr.mxu0 0.0
    %159 = vmatpush1.msra.mxu0 0.0
    %160 = vmatprep.subr.mxu0 0.0
    %161 = vmatpush1.msra.mxu0 0.0
    %162 = vmatprep.subr.mxu0 0.0
    %163 = vmatpush1.msra.mxu0 0.0
    %164 = vmatprep.subr.mxu0 0.0
    %165 = vmatpush1.msra.mxu0 0.0
    %166 = vmatprep.subr.mxu0 0.0
    %167 = vmatpush1.msra.mxu0 0.0
    %168 = vmatprep.subr.mxu0 0.0
    %169 = vmatpush1.msra.mxu0 0.0
    %170 = vmatprep.subr.mxu0 0.0
    %171 = vmatpush1.msra.mxu0 0.0
    %172 = vmatprep.subr.mxu0 0.0
    %173 = vmatpush1.msra.mxu0 0.0
    %174 = vmatprep.subr.mxu0 0.0
    %175 = vmatpush1.msra.mxu0 0.0
    %176 = vmatprep.subr.mxu0 0.0
    %177 = vmatpush1.msra.mxu0 0.0
    %178 = vmatprep.subr.mxu0 0.0
    %179 = vmatpush1.msra.mxu0 0.0
    %180 = vmatprep.subr.mxu0 0.0
    %181 = vmatpush1.msra.mxu0 0.0
    %182 = vmatprep.subr.mxu0 0.0
    %183 = vmatpush1.msra.mxu0 0.0
    %184 = vmatprep.subr.mxu0 0.0
    %185 = vmatpush1.msra.mxu0 0.0
    %186 = vmatprep.subr.mxu0 0.0
    %187 = vmatpush1.msra.mxu0 0.0
    %188 = vmatprep.subr.mxu0 0.0
    %189 = vmatpush1.msra.mxu0 0.0
    %190 = vmatprep.subr.mxu0 0.0
    %191 = vmatpush1.msra.mxu0 0.0
    %192 = vmatprep.subr.mxu0 0.0
    %193 = vmatpush1.msra.mxu0 0.0
    %194 = vmatprep.subr.mxu0 0.0
    %195 = vmatpush1.msra.mxu0 0.0
    %196 = vmatprep.subr.mxu0 0.0
    %197 = vmatpush1.msra.mxu0 0.0
    %198 = vmatprep.subr.mxu0 0.0
    %199 = vmatpush1.msra.mxu0 0.0
    %200 = vmatprep.mubr.f32.mxu0 0.0
    %201 = vmatmul.mubr.f32.gmra.mrb[0].mxu0 %v113
    %v202 = vpop.f32.mrb[0].mxu0
    %v203 = vadd.f32 %v94, %v202
    %v204 = vpop.f32.mrb[0].mxu0
    %v205 = vadd.f32 %v98, %v204
    %206 = vmatprep.mubr.f32.mxu0 0.0
    %207 = vmatmul.mubr.f32.gmra.mrb[0].mxu0 %v116
    %v208 = vpop.f32.mrb[0].mxu0
    %v209 = vadd.f32 %v94, %v208
    %v210 = vpop.f32.mrb[0].mxu0
    %v211 = vadd.f32 %v98, %v210
    %212 = vmatprep.mubr.f32.mxu0 0.0
    %213 = vmatmul.mubr.f32.gmra.mrb[0].mxu0 %v119
    %v214 = vpop.f32.mrb[0].mxu0
    %v215 = vadd.f32 %v94, %v214
    %v216 = vpop.f32.mrb[0].mxu0
    %v217 = vadd.f32 %v98, %v216
    %218 = vmatprep.mubr.f32.mxu0 0.0
    %219 = vmatmul.mubr.f32.gmra.mrb[0].mxu0 %v122
    %v220 = vpop.f32.mrb[0].mxu0
    %v221 = vadd.f32 %v94, %v220
    %v222 = vpop.f32.mrb[0].mxu0
    %v223 = vadd.f32 %v98, %v222
    %224 = vmatprep.mubr.f32.mxu0 0.0
    %225 = vmatmul.mubr.f32.gmra.mrb[0].mxu0 %v125
    %v226 = vpop.f32.mrb[0].mxu0
    %v227 = vadd.f32 %v94, %v226
    %v228 = vpop.f32.mrb[0].mxu0
    %v229 = vadd.f32 %v98, %v228
    %230 = vmatprep.mubr.f32.mxu0 0.0
    %231 = vmatmul.mubr.f32.gmra.mrb[0].mxu0 %v128
    %v232 = vpop.f32.mrb[0].mxu0
    %v233 = vadd.f32 %v94, %v232
    %v234 = vpop.f32.mrb[0].mxu0
    %v235 = vadd.f32 %v98, %v234
    %236 = vmatprep.mubr.f32.mxu0 0.0
    %237 = vmatmul.mubr.f32.gmra.mrb[0].mxu0 %v131
    %v238 = vpop.f32.mrb[0].mxu0
    %v239 = vadd.f32 %v94, %v238
    %v240 = vpop.f32.mrb[0].mxu0
    %v241 = vadd.f32 %v98, %v240
    %242 = vmatprep.mubr.f32.mxu0 0.0
    %243 = vmatmul.mubr.f32.gmra.mrb[0].mxu0 %v134
    %v244 = vpop.f32.mrb[0].mxu0
    %v245 = vadd.f32 %v94, %v244
    %v246 = vpop.f32.mrb[0].mxu0
    %v247 = vadd.f32 %v98, %v246
    %248 = vdwg.mxu0
    %249 = vmatprep.subr.mxu0 %v76
    %250 = vmatpush1.msra.mxu0 %v75
    %251 = vmatprep.subr.mxu0 %v80
    %252 = vmatpush1.msra.mxu0 %v79
    %253 = vmatprep.subr.mxu0 %v84
    %254 = vmatpush1.msra.mxu0 %v83
    %255 = vmatprep.subr.mxu0 %v88
    %256 = vmatpush1.msra.mxu0 %v87
    %257 = vmatprep.subr.mxu0 0.0
    %258 = vmatpush1.msra.mxu0 0.0
    %259 = vmatprep.subr.mxu0 0.0
    %260 = vmatpush1.msra.mxu0 0.0
    %261 = vmatprep.subr.mxu0 0.0
    %262 = vmatpush1.msra.mxu0 0.0
    %263 = vmatprep.subr.mxu0 0.0
    %264 = vmatpush1.msra.mxu0 0.0
    %265 = vmatprep.subr.mxu0 0.0
    %266 = vmatpush1.msra.mxu0 0.0
    %267 = vmatprep.subr.mxu0 0.0
    %268 = vmatpush1.msra.mxu0 0.0
    %269 = vmatprep.subr.mxu0 0.0
    %270 = vmatpush1.msra.mxu0 0.0
    %271 = vmatprep.subr.mxu0 0.0
    %272 = vmatpush1.msra.mxu0 0.0
    %273 = vmatprep.subr.mxu0 0.0
    %274 = vmatpush1.msra.mxu0 0.0
    %275 = vmatprep.subr.mxu0 0.0
    %276 = vmatpush1.msra.mxu0 0.0
    %277 = vmatprep.subr.mxu0 0.0
    %278 = vmatpush1.msra.mxu0 0.0
    %279 = vmatprep.subr.mxu0 0.0
    %280 = vmatpush1.msra.mxu0 0.0
    %281 = vmatprep.subr.mxu0 0.0
    %282 = vmatpush1.msra.mxu0 0.0
    %283 = vmatprep.subr.mxu0 0.0
    %284 = vmatpush1.msra.mxu0 0.0
    %285 = vmatprep.subr.mxu0 0.0
    %286 = vmatpush1.msra.mxu0 0.0
    %287 = vmatprep.subr.mxu0 0.0
    %288 = vmatpush1.msra.mxu0 0.0
    %289 = vmatprep.subr.mxu0 0.0
    %290 = vmatpush1.msra.mxu0 0.0
    %291 = vmatprep.subr.mxu0 0.0
    %292 = vmatpush1.msra.mxu0 0.0
    %293 = vmatprep.subr.mxu0 0.0
    %294 = vmatpush1.msra.mxu0 0.0
    %295 = vmatprep.subr.mxu0 0.0
    %296 = vmatpush1.msra.mxu0 0.0
    %297 = vmatprep.subr.mxu0 0.0
    %298 = vmatpush1.msra.mxu0 0.0
    %299 = vmatprep.subr.mxu0 0.0
    %300 = vmatpush1.msra.mxu0 0.0
    %301 = vmatprep.subr.mxu0 0.0
    %302 = vmatpush1.msra.mxu0 0.0
    %303 = vmatprep.subr.mxu0 0.0
    %304 = vmatpush1.msra.mxu0 0.0
    %305 = vmatprep.subr.mxu0 0.0
    %306 = vmatpush1.msra.mxu0 0.0
    %307 = vmatprep.subr.mxu0 0.0
    %308 = vmatpush1.msra.mxu0 0.0
    %309 = vmatprep.subr.mxu0 0.0
    %310 = vmatpush1.msra.mxu0 0.0
    %311 = vmatprep.subr.mxu0 0.0
    %312 = vmatpush1.msra.mxu0 0.0
    %313 = vmatprep.mubr.f32.mxu0 0.0
    %314 = vmatmul.mubr.f32.gmra.mrb[0].mxu0 %v113
    %v315 = vpop.f32.mrb[0].mxu0
    %v316 = vadd.f32 %v102, %v315
    %v317 = vpop.f32.mrb[0].mxu0
    %v318 = vadd.f32 %v106, %v317
    %319 = vmatprep.mubr.f32.mxu0 0.0
    %320 = vmatmul.mubr.f32.gmra.mrb[0].mxu0 %v116
    %v321 = vpop.f32.mrb[0].mxu0
    %v322 = vadd.f32 %v102, %v321
    %v323 = vpop.f32.mrb[0].mxu0
    %v324 = vadd.f32 %v106, %v323
    %325 = vmatprep.mubr.f32.mxu0 0.0
    %326 = vmatmul.mubr.f32.gmra.mrb[0].mxu0 %v119
    %v327 = vpop.f32.mrb[0].mxu0
    %v328 = vadd.f32 %v102, %v327
    %v329 = vpop.f32.mrb[0].mxu0
    %v330 = vadd.f32 %v106, %v329
    %331 = vmatprep.mubr.f32.mxu0 0.0
    %332 = vmatmul.mubr.f32.gmra.mrb[0].mxu0 %v122
    %v333 = vpop.f32.mrb[0].mxu0
    %v334 = vadd.f32 %v102, %v333
    %v335 = vpop.f32.mrb[0].mxu0
    %v336 = vadd.f32 %v106, %v335
    %337 = vmatprep.mubr.f32.mxu0 0.0
    %338 = vmatmul.mubr.f32.gmra.mrb[0].mxu0 %v125
    %v339 = vpop.f32.mrb[0].mxu0
    %v340 = vadd.f32 %v102, %v339
    %v341 = vpop.f32.mrb[0].mxu0
    %v342 = vadd.f32 %v106, %v341
    %343 = vmatprep.mubr.f32.mxu0 0.0
    %344 = vmatmul.mubr.f32.gmra.mrb[0].mxu0 %v128
    %v345 = vpop.f32.mrb[0].mxu0
    %v346 = vadd.f32 %v102, %v345
    %v347 = vpop.f32.mrb[0].mxu0
    %v348 = vadd.f32 %v106, %v347
    %349 = vmatprep.mubr.f32.mxu0 0.0
    %350 = vmatmul.mubr.f32.gmra.mrb[0].mxu0 %v131
    %v351 = vpop.f32.mrb[0].mxu0
    %v352 = vadd.f32 %v102, %v351
    %v353 = vpop.f32.mrb[0].mxu0
    %v354 = vadd.f32 %v106, %v353
    %355 = vmatprep.mubr.f32.mxu0 0.0
    %356 = vmatmul.mubr.f32.gmra.mrb[0].mxu0 %v134
    %v357 = vpop.f32.mrb[0].mxu0
    %v358 = vadd.f32 %v102, %v357
    %v359 = vpop.f32.mrb[0].mxu0
    %v360 = vadd.f32 %v106, %v359
    %361 = vdwg.mxu0
    %362 = vst [vmem:[#allocation2] sm:$0xff] %v203
    %363 = vst [vmem:[#allocation2 + $0x8] sm:$0xff] %v205
    %364 = vst [vmem:[#allocation2 + $0x10] sm:$0xff] %v316
    %365 = vst [vmem:[#allocation2 + $0x18] sm:$0xff] %v318
    %366 = vst [vmem:[#allocation2 + $0x20] sm:$0xff] %v209
    %367 = vst [vmem:[#allocation2 + $0x28] sm:$0xff] %v211
    %368 = vst [vmem:[#allocation2 + $0x30] sm:$0xff] %v322
    %369 = vst [vmem:[#allocation2 + $0x38] sm:$0xff] %v324
    %370 = vst [vmem:[#allocation2 + $0x40] sm:$0xff] %v215
    %371 = vst [vmem:[#allocation2 + $0x48] sm:$0xff] %v217
    %372 = vst [vmem:[#allocation2 + $0x50] sm:$0xff] %v328
    %373 = vst [vmem:[#allocation2 + $0x58] sm:$0xff] %v330
    %374 = vst [vmem:[#allocation2 + $0x60] sm:$0xff] %v221
    %375 = vst [vmem:[#allocation2 + $0x68] sm:$0xff] %v223
    %376 = vst [vmem:[#allocation2 + $0x70] sm:$0xff] %v334
    %377 = vst [vmem:[#allocation2 + $0x78] sm:$0xff] %v336
    %378 = vst [vmem:[#allocation2 + $0x80] sm:$0xff] %v227
    %379 = vst [vmem:[#allocation2 + $0x88] sm:$0xff] %v229
    %380 = vst [vmem:[#allocation2 + $0x90] sm:$0xff] %v340
    %381 = vst [vmem:[#allocation2 + $0x98] sm:$0xff] %v342
    %382 = vst [vmem:[#allocation2 + $0xa0] sm:$0xff] %v233
    %383 = vst [vmem:[#allocation2 + $0xa8] sm:$0xff] %v235
    %384 = vst [vmem:[#allocation2 + $0xb0] sm:$0xff] %v346
    %385 = vst [vmem:[#allocation2 + $0xb8] sm:$0xff] %v348
    %386 = vst [vmem:[#allocation2 + $0xc0] sm:$0xff] %v239
    %387 = vst [vmem:[#allocation2 + $0xc8] sm:$0xff] %v241
    %388 = vst [vmem:[#allocation2 + $0xd0] sm:$0xff] %v352
    %389 = vst [vmem:[#allocation2 + $0xd8] sm:$0xff] %v354
    %390 = vst [vmem:[#allocation2 + $0xe0] sm:$0xff] %v245
    %391 = vst [vmem:[#allocation2 + $0xe8] sm:$0xff] %v247
    %392 = vst [vmem:[#allocation2 + $0xf0] sm:$0xff] %v358
    %393 = vst [vmem:[#allocation2 + $0xf8] sm:$0xff] %v360
    %s394 = smul.u32 0, 4
    %s395 = smul.addr %s394, 8
    %s396 = scalar_lea.vmem [#allocation2], %s395
    %v397 = vld [vmem:[%s396] sm:$0xff]
    %v398 = vld [vmem:[%s396 + $0x8] sm:$0xff]
    %v399 = vld [vmem:[%s396 + $0x10] sm:$0xff]
    %v400 = vld [vmem:[%s396 + $0x18] sm:$0xff]
    %v401 = vld [vmem:[#allocation6] sm:$0xff]
    %v402 = vld [vmem:[#allocation6 + $0x8] sm:$0xff]
    %v403 = vld [vmem:[#allocation6 + $0x10] sm:$0xff]
    %v404 = vld [vmem:[#allocation6 + $0x18] sm:$0xff]
    %v405 = vld [vmem:[#allocation6 + $0x20] sm:$0xff]
    %v406 = vld [vmem:[#allocation6 + $0x28] sm:$0xff]
    %v407 = vld [vmem:[#allocation6 + $0x30] sm:$0xff]
    %v408 = vld [vmem:[#allocation6 + $0x38] sm:$0xff]
    %v409 = vld [vmem:[#allocation6 + $0x40] sm:$0xff]
    %v410 = vld [vmem:[#allocation6 + $0x48] sm:$0xff]
    %v411 = vld [vmem:[#allocation6 + $0x50] sm:$0xff]
    %v412 = vld [vmem:[#allocation6 + $0x58] sm:$0xff]
    %v413 = vld [vmem:[#allocation6 + $0x60] sm:$0xff]
    %v414 = vld [vmem:[#allocation6 + $0x68] sm:$0xff]
    %v415 = vld [vmem:[#allocation6 + $0x70] sm:$0xff]
    %v416 = vld [vmem:[#allocation6 + $0x78] sm:$0xff]
    %v417 = vld [vmem:[#allocation6 + $0x80] sm:$0xff]
    %v418 = vld [vmem:[#allocation6 + $0x88] sm:$0xff]
    %v419 = vld [vmem:[#allocation6 + $0x90] sm:$0xff]
    %v420 = vld [vmem:[#allocation6 + $0x98] sm:$0xff]
    %v421 = vld [vmem:[#allocation6 + $0xa0] sm:$0xff]
    %v422 = vld [vmem:[#allocation6 + $0xa8] sm:$0xff]
    %v423 = vld [vmem:[#allocation6 + $0xb0] sm:$0xff]
    %v424 = vld [vmem:[#allocation6 + $0xb8] sm:$0xff]
    %v425 = vld [vmem:[#allocation6 + $0xc0] sm:$0xff]
    %v426 = vld [vmem:[#allocation6 + $0xc8] sm:$0xff]
    %v427 = vld [vmem:[#allocation6 + $0xd0] sm:$0xff]
    %v428 = vld [vmem:[#allocation6 + $0xd8] sm:$0xff]
    %v429 = vld [vmem:[#allocation6 + $0xe0] sm:$0xff]
    %v430 = vld [vmem:[#allocation6 + $0xe8] sm:$0xff]
    %v431 = vld [vmem:[#allocation6 + $0xf0] sm:$0xff]
    %v432 = vld [vmem:[#allocation6 + $0xf8] sm:$0xff]
    %v433 = vld [vmem:[#allocation6 + $0x100] sm:$0xff]
    %v434 = vld [vmem:[#allocation6 + $0x108] sm:$0xff]
    %v435 = vld [vmem:[#allocation6 + $0x110] sm:$0xff]
    %v436 = vld [vmem:[#allocation6 + $0x118] sm:$0xff]
    %v437 = vld [vmem:[#allocation6 + $0x120] sm:$0xff]
    %v438 = vld [vmem:[#allocation6 + $0x128] sm:$0xff]
    %v439 = vld [vmem:[#allocation6 + $0x130] sm:$0xff]
    %v440 = vld [vmem:[#allocation6 + $0x138] sm:$0xff]
    %v441 = vld [vmem:[#allocation6 + $0x140] sm:$0xff]
    %v442 = vld [vmem:[#allocation6 + $0x148] sm:$0xff]
    %v443 = vld [vmem:[#allocation6 + $0x150] sm:$0xff]
    %v444 = vld [vmem:[#allocation6 + $0x158] sm:$0xff]
    %v445 = vld [vmem:[#allocation6 + $0x160] sm:$0xff]
    %v446 = vld [vmem:[#allocation6 + $0x168] sm:$0xff]
    %v447 = vld [vmem:[#allocation6 + $0x170] sm:$0xff]
    %v448 = vld [vmem:[#allocation6 + $0x178] sm:$0xff]
    %v449 = vld [vmem:[#allocation6 + $0x180] sm:$0xff]
    %v450 = vld [vmem:[#allocation6 + $0x188] sm:$0xff]
    %v451 = vld [vmem:[#allocation6 + $0x190] sm:$0xff]
    %v452 = vld [vmem:[#allocation6 + $0x198] sm:$0xff]
    %v453 = vld [vmem:[#allocation6 + $0x1a0] sm:$0xff]
    %v454 = vld [vmem:[#allocation6 + $0x1a8] sm:$0xff]
    %v455 = vld [vmem:[#allocation6 + $0x1b0] sm:$0xff]
    %v456 = vld [vmem:[#allocation6 + $0x1b8] sm:$0xff]
    %v457 = vld [vmem:[#allocation6 + $0x1c0] sm:$0xff]
    %v458 = vld [vmem:[#allocation6 + $0x1c8] sm:$0xff]
    %v459 = vld [vmem:[#allocation6 + $0x1d0] sm:$0xff]
    %v460 = vld [vmem:[#allocation6 + $0x1d8] sm:$0xff]
    %v461 = vld [vmem:[#allocation6 + $0x1e0] sm:$0xff]
    %v462 = vld [vmem:[#allocation6 + $0x1e8] sm:$0xff]
    %v463 = vld [vmem:[#allocation6 + $0x1f0] sm:$0xff]
    %v464 = vld [vmem:[#allocation6 + $0x1f8] sm:$0xff]
    %465 = vmatprep.subr.mxu0 %v402
    %466 = vmatpush1.msra.mxu0 %v401
    %467 = vmatprep.subr.mxu0 %v406
    %468 = vmatpush1.msra.mxu0 %v405
    %469 = vmatprep.subr.mxu0 %v410
    %470 = vmatpush1.msra.mxu0 %v409
    %471 = vmatprep.subr.mxu0 %v414
    %472 = vmatpush1.msra.mxu0 %v413
    %473 = vmatprep.subr.mxu0 %v418
    %474 = vmatpush1.msra.mxu0 %v417
    %475 = vmatprep.subr.mxu0 %v422
    %476 = vmatpush1.msra.mxu0 %v421
    %477 = vmatprep.subr.mxu0 %v426
    %478 = vmatpush1.msra.mxu0 %v425
    %479 = vmatprep.subr.mxu0 %v430
    %480 = vmatpush1.msra.mxu0 %v429
    %481 = vmatprep.subr.mxu0 %v434
    %482 = vmatpush1.msra.mxu0 %v433
    %483 = vmatprep.subr.mxu0 %v438
    %484 = vmatpush1.msra.mxu0 %v437
    %485 = vmatprep.subr.mxu0 %v442
    %486 = vmatpush1.msra.mxu0 %v441
    %487 = vmatprep.subr.mxu0 %v446
    %488 = vmatpush1.msra.mxu0 %v445
    %489 = vmatprep.subr.mxu0 %v450
    %490 = vmatpush1.msra.mxu0 %v449
    %491 = vmatprep.subr.mxu0 %v454
    %492 = vmatpush1.msra.mxu0 %v453
    %493 = vmatprep.subr.mxu0 %v458
    %494 = vmatpush1.msra.mxu0 %v457
    %495 = vmatprep.subr.mxu0 %v462
    %496 = vmatpush1.msra.mxu0 %v461
    %497 = vmatprep.subr.mxu0 0.0
    %498 = vmatpush1.msra.mxu0 0.0
    %499 = vmatprep.subr.mxu0 0.0
    %500 = vmatpush1.msra.mxu0 0.0
    %501 = vmatprep.subr.mxu0 0.0
    %502 = vmatpush1.msra.mxu0 0.0
    %503 = vmatprep.subr.mxu0 0.0
    %504 = vmatpush1.msra.mxu0 0.0
    %505 = vmatprep.subr.mxu0 0.0
    %506 = vmatpush1.msra.mxu0 0.0
    %507 = vmatprep.subr.mxu0 0.0
    %508 = vmatpush1.msra.mxu0 0.0
    %509 = vmatprep.subr.mxu0 0.0
    %510 = vmatpush1.msra.mxu0 0.0
    %511 = vmatprep.subr.mxu0 0.0
    %512 = vmatpush1.msra.mxu0 0.0
    %513 = vmatprep.subr.mxu0 0.0
    %514 = vmatpush1.msra.mxu0 0.0
    %515 = vmatprep.subr.mxu0 0.0
    %516 = vmatpush1.msra.mxu0 0.0
    %517 = vmatprep.subr.mxu0 0.0
    %518 = vmatpush1.msra.mxu0 0.0
    %519 = vmatprep.subr.mxu0 0.0
    %520 = vmatpush1.msra.mxu0 0.0
    %521 = vmatprep.subr.mxu0 0.0
    %522 = vmatpush1.msra.mxu0 0.0
    %523 = vmatprep.subr.mxu0 0.0
    %524 = vmatpush1.msra.mxu0 0.0
    %525 = vmatprep.subr.mxu0 0.0
    %526 = vmatpush1.msra.mxu0 0.0
    %527 = vmatprep.subr.mxu0 0.0
    %528 = vmatpush1.msra.mxu0 0.0
    %529 = vmatprep.mubr.f32.mxu0 0.0
    %530 = vmatmul.mubr.f32.gmra.mrb[0].mxu0 0.0
    %v531 = vpop.f32.mrb[0].mxu0
    %v532 = vadd.f32 0.0, %v531
    %v533 = vpop.f32.mrb[0].mxu0
    %v534 = vadd.f32 0.0, %v533
    %535 = vdwg.mxu0
    %536 = vmatprep.subr.mxu0 %v404
    %537 = vmatpush1.msra.mxu0 %v403
    %538 = vmatprep.subr.mxu0 %v408
    %539 = vmatpush1.msra.mxu0 %v407
    %540 = vmatprep.subr.mxu0 %v412
    %541 = vmatpush1.msra.mxu0 %v411
    %542 = vmatprep.subr.mxu0 %v416
    %543 = vmatpush1.msra.mxu0 %v415
    %544 = vmatprep.subr.mxu0 %v420
    %545 = vmatpush1.msra.mxu0 %v419
    %546 = vmatprep.subr.mxu0 %v424
    %547 = vmatpush1.msra.mxu0 %v423
    %548 = vmatprep.subr.mxu0 %v428
    %549 = vmatpush1.msra.mxu0 %v427
    %550 = vmatprep.subr.mxu0 %v432
    %551 = vmatpush1.msra.mxu0 %v431
    %552 = vmatprep.subr.mxu0 %v436
    %553 = vmatpush1.msra.mxu0 %v435
    %554 = vmatprep.subr.mxu0 %v440
    %555 = vmatpush1.msra.mxu0 %v439
    %556 = vmatprep.subr.mxu0 %v444
    %557 = vmatpush1.msra.mxu0 %v443
    %558 = vmatprep.subr.mxu0 %v448
    %559 = vmatpush1.msra.mxu0 %v447
    %560 = vmatprep.subr.mxu0 %v452
    %561 = vmatpush1.msra.mxu0 %v451
    %562 = vmatprep.subr.mxu0 %v456
    %563 = vmatpush1.msra.mxu0 %v455
    %564 = vmatprep.subr.mxu0 %v460
    %565 = vmatpush1.msra.mxu0 %v459
    %566 = vmatprep.subr.mxu0 %v464
    %567 = vmatpush1.msra.mxu0 %v463
    %568 = vmatprep.subr.mxu0 0.0
    %569 = vmatpush1.msra.mxu0 0.0
    %570 = vmatprep.subr.mxu0 0.0
    %571 = vmatpush1.msra.mxu0 0.0
    %572 = vmatprep.subr.mxu0 0.0
    %573 = vmatpush1.msra.mxu0 0.0
    %574 = vmatprep.subr.mxu0 0.0
    %575 = vmatpush1.msra.mxu0 0.0
    %576 = vmatprep.subr.mxu0 0.0
    %577 = vmatpush1.msra.mxu0 0.0
    %578 = vmatprep.subr.mxu0 0.0
    %579 = vmatpush1.msra.mxu0 0.0
    %580 = vmatprep.subr.mxu0 0.0
    %581 = vmatpush1.msra.mxu0 0.0
    %582 = vmatprep.subr.mxu0 0.0
    %583 = vmatpush1.msra.mxu0 0.0
    %584 = vmatprep.subr.mxu0 0.0
    %585 = vmatpush1.msra.mxu0 0.0
    %586 = vmatprep.subr.mxu0 0.0
    %587 = vmatpush1.msra.mxu0 0.0
    %588 = vmatprep.subr.mxu0 0.0
    %589 = vmatpush1.msra.mxu0 0.0
    %590 = vmatprep.subr.mxu0 0.0
    %591 = vmatpush1.msra.mxu0 0.0
    %592 = vmatprep.subr.mxu0 0.0
    %593 = vmatpush1.msra.mxu0 0.0
    %594 = vmatprep.subr.mxu0 0.0
    %595 = vmatpush1.msra.mxu0 0.0
    %596 = vmatprep.subr.mxu0 0.0
    %597 = vmatpush1.msra.mxu0 0.0
    %598 = vmatprep.subr.mxu0 0.0
    %599 = vmatpush1.msra.mxu0 0.0
    %600 = vmatprep.mubr.f32.mxu0 0.0
    %601 = vmatmul.mubr.f32.gmra.mrb[0].mxu0 0.0
    %v602 = vpop.f32.mrb[0].mxu0
    %v603 = vadd.f32 0.0, %v602
    %v604 = vpop.f32.mrb[0].mxu0
    %v605 = vadd.f32 0.0, %v604
    %606 = vdwg.mxu0
    %v607 = vadd.f32 %v397, %v532
    %v608 = vadd.f32 %v398, %v534
    %v609 = vadd.f32 %v399, %v603
    %v610 = vadd.f32 %v400, %v605
    %v611 = vmul.f32 %v607, 0.5
    %v612 = vtanh.pop %v611
    %v613 = vmul.f32 %v612, 0.5
    %v614 = vadd.f32 %v613, 0.5
    %v615 = vmul.f32 %v608, 0.5
    %v616 = vtanh.pop %v615
    %v617 = vmul.f32 %v616, 0.5
    %v618 = vadd.f32 %v617, 0.5
    %v619 = vtanh.pop %v609
    %v620 = vmul.f32 %v610, 0.5
    %v621 = vtanh.pop %v620
    %v622 = vmul.f32 %v621, 0.5
    %v623 = vadd.f32 %v622, 0.5
    %v624 = vmul.f32 %v618, 0.0
    %v625 = vmul.f32 %v614, %v619
    %v626 = vadd.f32 %v624, %v625
    %v627 = vtanh.pop %v626
    %v628 = vmul.f32 %v623, %v627
    %s629 = smul.u32 1, 4
    %s630 = smul.addr %s629, 8
    %s631 = scalar_lea.vmem [#allocation2], %s630
    %v632 = vld [vmem:[%s631] sm:$0xff]
    %v633 = vld [vmem:[%s631 + $0x8] sm:$0xff]
    %v634 = vld [vmem:[%s631 + $0x10] sm:$0xff]
    %v635 = vld [vmem:[%s631 + $0x18] sm:$0xff]
    %636 = vmatprep.subr.mxu0 %v402
    %637 = vmatpush1.msra.mxu0 %v401
    %638 = vmatprep.subr.mxu0 %v406
    %639 = vmatpush1.msra.mxu0 %v405
    %640 = vmatprep.subr.mxu0 %v410
    %641 = vmatpush1.msra.mxu0 %v409
    %642 = vmatprep.subr.mxu0 %v414
    %643 = vmatpush1.msra.mxu0 %v413
    %644 = vmatprep.subr.mxu0 %v418
    %645 = vmatpush1.msra.mxu0 %v417
    %646 = vmatprep.subr.mxu0 %v422
    %647 = vmatpush1.msra.mxu0 %v421
    %648 = vmatprep.subr.mxu0 %v426
    %649 = vmatpush1.msra.mxu0 %v425
    %650 = vmatprep.subr.mxu0 %v430
    %651 = vmatpush1.msra.mxu0 %v429
    %652 = vmatprep.subr.mxu0 %v434
    %653 = vmatpush1.msra.mxu0 %v433
    %654 = vmatprep.subr.mxu0 %v438
    %655 = vmatpush1.msra.mxu0 %v437
    %656 = vmatprep.subr.mxu0 %v442
    %657 = vmatpush1.msra.mxu0 %v441
    %658 = vmatprep.subr.mxu0 %v446
    %659 = vmatpush1.msra.mxu0 %v445
    %660 = vmatprep.subr.mxu0 %v450
    %661 = vmatpush1.msra.mxu0 %v449
    %662 = vmatprep.subr.mxu0 %v454
    %663 = vmatpush1.msra.mxu0 %v453
    %664 = vmatprep.subr.mxu0 %v458
    %665 = vmatpush1.msra.mxu0 %v457
    %666 = vmatprep.subr.mxu0 %v462
    %667 = vmatpush1.msra.mxu0 %v461
    %668 = vmatprep.subr.mxu0 0.0
    %669 = vmatpush1.msra.mxu0 0.0
    %670 = vmatprep.subr.mxu0 0.0
    %671 = vmatpush1.msra.mxu0 0.0
    %672 = vmatprep.subr.mxu0 0.0
    %673 = vmatpush1.msra.mxu0 0.0
    %674 = vmatprep.subr.mxu0 0.0
    %675 = vmatpush1.msra.mxu0 0.0
    %676 = vmatprep.subr.mxu0 0.0
    %677 = vmatpush1.msra.mxu0 0.0
    %678 = vmatprep.subr.mxu0 0.0
    %679 = vmatpush1.msra.mxu0 0.0
    %680 = vmatprep.subr.mxu0 0.0
    %681 = vmatpush1.msra.mxu0 0.0
    %682 = vmatprep.subr.mxu0 0.0
    %683 = vmatpush1.msra.mxu0 0.0
    %684 = vmatprep.subr.mxu0 0.0
    %685 = vmatpush1.msra.mxu0 0.0
    %686 = vmatprep.subr.mxu0 0.0
    %687 = vmatpush1.msra.mxu0 0.0
    %688 = vmatprep.subr.mxu0 0.0
    %689 = vmatpush1.msra.mxu0 0.0
    %690 = vmatprep.subr.mxu0 0.0
    %691 = vmatpush1.msra.mxu0 0.0
    %692 = vmatprep.subr.mxu0 0.0
    %693 = vmatpush1.msra.mxu0 0.0
    %694 = vmatprep.subr.mxu0 0.0
    %695 = vmatpush1.msra.mxu0 0.0
    %696 = vmatprep.subr.mxu0 0.0
    %697 = vmatpush1.msra.mxu0 0.0
    %698 = vmatprep.subr.mxu0 0.0
    %699 = vmatpush1.msra.mxu0 0.0
    %700 = vmatprep.mubr.f32.mxu0 0.0
    %701 = vmatmul.mubr.f32.gmra.mrb[0].mxu0 %v628
    %v702 = vpop.f32.mrb[0].mxu0
    %v703 = vadd.f32 0.0, %v702
    %v704 = vpop.f32.mrb[0].mxu0
    %v705 = vadd.f32 0.0, %v704
    %706 = vdwg.mxu0
    %707 = vmatprep.subr.mxu0 %v404
    %708 = vmatpush1.msra.mxu0 %v403
    %709 = vmatprep.subr.mxu0 %v408
    %710 = vmatpush1.msra.mxu0 %v407
    %711 = vmatprep.subr.mxu0 %v412
    %712 = vmatpush1.msra.mxu0 %v411
    %713 = vmatprep.subr.mxu0 %v416
    %714 = vmatpush1.msra.mxu0 %v415
    %715 = vmatprep.subr.mxu0 %v420
    %716 = vmatpush1.msra.mxu0 %v419
    %717 = vmatprep.subr.mxu0 %v424
    %718 = vmatpush1.msra.mxu0 %v423
    %719 = vmatprep.subr.mxu0 %v428
    %720 = vmatpush1.msra.mxu0 %v427
    %721 = vmatprep.subr.mxu0 %v432
    %722 = vmatpush1.msra.mxu0 %v431
    %723 = vmatprep.subr.mxu0 %v436
    %724 = vmatpush1.msra.mxu0 %v435
    %725 = vmatprep.subr.mxu0 %v440
    %726 = vmatpush1.msra.mxu0 %v439
    %727 = vmatprep.subr.mxu0 %v444
    %728 = vmatpush1.msra.mxu0 %v443
    %729 = vmatprep.subr.mxu0 %v448
    %730 = vmatpush1.msra.mxu0 %v447
    %731 = vmatprep.subr.mxu0 %v452
    %732 = vmatpush1.msra.mxu0 %v451
    %733 = vmatprep.subr.mxu0 %v456
    %734 = vmatpush1.msra.mxu0 %v455
    %735 = vmatprep.subr.mxu0 %v460
    %736 = vmatpush1.msra.mxu0 %v459
    %737 = vmatprep.subr.mxu0 %v464
    %738 = vmatpush1.msra.mxu0 %v463
    %739 = vmatprep.subr.mxu0 0.0
    %740 = vmatpush1.msra.mxu0 0.0
    %741 = vmatprep.subr.mxu0 0.0
    %742 = vmatpush1.msra.mxu0 0.0
    %743 = vmatprep.subr.mxu0 0.0
    %744 = vmatpush1.msra.mxu0 0.0
    %745 = vmatprep.subr.mxu0 0.0
    %746 = vmatpush1.msra.mxu0 0.0
    %747 = vmatprep.subr.mxu0 0.0
    %748 = vmatpush1.msra.mxu0 0.0
    %749 = vmatprep.subr.mxu0 0.0
    %750 = vmatpush1.msra.mxu0 0.0
    %751 = vmatprep.subr.mxu0 0.0
    %752 = vmatpush1.msra.mxu0 0.0
    %753 = vmatprep.subr.mxu0 0.0
    %754 = vmatpush1.msra.mxu0 0.0
    %755 = vmatprep.subr.mxu0 0.0
    %756 = vmatpush1.msra.mxu0 0.0
    %757 = vmatprep.subr.mxu0 0.0
    %758 = vmatpush1.msra.mxu0 0.0
    %759 = vmatprep.subr.mxu0 0.0
    %760 = vmatpush1.msra.mxu0 0.0
    %761 = vmatprep.subr.mxu0 0.0
    %762 = vmatpush1.msra.mxu0 0.0
    %763 = vmatprep.subr.mxu0 0.0
    %764 = vmatpush1.msra.mxu0 0.0
    %765 = vmatprep.subr.mxu0 0.0
    %766 = vmatpush1.msra.mxu0 0.0
    %767 = vmatprep.subr.mxu0 0.0
    %768 = vmatpush1.msra.mxu0 0.0
    %769 = vmatprep.subr.mxu0 0.0
    %770 = vmatpush1.msra.mxu0 0.0
    %771 = vmatprep.mubr.f32.mxu0 0.0
    %772 = vmatmul.mubr.f32.gmra.mrb[0].mxu0 %v628
    %v773 = vpop.f32.mrb[0].mxu0
    %v774 = vadd.f32 0.0, %v773
    %v775 = vpop.f32.mrb[0].mxu0
    %v776 = vadd.f32 0.0, %v775
    %777 = vdwg.mxu0
    %v778 = vadd.f32 %v632, %v703
    %v779 = vadd.f32 %v633, %v705
    %v780 = vadd.f32 %v634, %v774
    %v781 = vadd.f32 %v635, %v776
    %v782 = vmul.f32 %v778, 0.5
    %v783 = vtanh.pop %v782
    %v784 = vmul.f32 %v783, 0.5
    %v785 = vadd.f32 %v784, 0.5
    %v786 = vmul.f32 %v779, 0.5
    %v787 = vtanh.pop %v786
    %v788 = vmul.f32 %v787, 0.5
    %v789 = vadd.f32 %v788, 0.5
    %v790 = vtanh.pop %v780
    %v791 = vmul.f32 %v781, 0.5
    %v792 = vtanh.pop %v791
    %v793 = vmul.f32 %v792, 0.5
    %v794 = vadd.f32 %v793, 0.5
    %v795 = vmul.f32 %v789, %v626
    %v796 = vmul.f32 %v785, %v790
    %v797 = vadd.f32 %v795, %v796
    %v798 = vtanh.pop %v797
    %v799 = vmul.f32 %v794, %v798
    %s800 = smul.u32 2, 4
    %s801 = smul.addr %s800, 8
    %s802 = scalar_lea.vmem [#allocation2], %s801
    %v803 = vld [vmem:[%s802] sm:$0xff]
    %v804 = vld [vmem:[%s802 + $0x8] sm:$0xff]
    %v805 = vld [vmem:[%s802 + $0x10] sm:$0xff]
    %v806 = vld [vmem:[%s802 + $0x18] sm:$0xff]
    %807 = vmatprep.subr.mxu0 %v402
    %808 = vmatpush1.msra.mxu0 %v401
    %809 = vmatprep.subr.mxu0 %v406
    %810 = vmatpush1.msra.mxu0 %v405
    %811 = vmatprep.subr.mxu0 %v410
    %812 = vmatpush1.msra.mxu0 %v409
    %813 = vmatprep.subr.mxu0 %v414
    %814 = vmatpush1.msra.mxu0 %v413
    %815 = vmatprep.subr.mxu0 %v418
    %816 = vmatpush1.msra.mxu0 %v417
    %817 = vmatprep.subr.mxu0 %v422
    %818 = vmatpush1.msra.mxu0 %v421
    %819 = vmatprep.subr.mxu0 %v426
    %820 = vmatpush1.msra.mxu0 %v425
    %821 = vmatprep.subr.mxu0 %v430
    %822 = vmatpush1.msra.mxu0 %v429
    %823 = vmatprep.subr.mxu0 %v434
    %824 = vmatpush1.msra.mxu0 %v433
    %825 = vmatprep.subr.mxu0 %v438
    %826 = vmatpush1.msra.mxu0 %v437
    %827 = vmatprep.subr.mxu0 %v442
    %828 = vmatpush1.msra.mxu0 %v441
    %829 = vmatprep.subr.mxu0 %v446
    %830 = vmatpush1.msra.mxu0 %v445
    %831 = vmatprep.subr.mxu0 %v450
    %832 = vmatpush1.msra.mxu0 %v449
    %833 = vmatprep.subr.mxu0 %v454
    %834 = vmatpush1.msra.mxu0 %v453
    %835 = vmatprep.subr.mxu0 %v458
    %836 = vmatpush1.msra.mxu0 %v457
    %837 = vmatprep.subr.mxu0 %v462
    %838 = vmatpush1.msra.mxu0 %v461
    %839 = vmatprep.subr.mxu0 0.0
    %840 = vmatpush1.msra.mxu0 0.0
    %841 = vmatprep.subr.mxu0 0.0
    %842 = vmatpush1.msra.mxu0 0.0
    %843 = vmatprep.subr.mxu0 0.0
    %844 = vmatpush1.msra.mxu0 0.0
    %845 = vmatprep.subr.mxu0 0.0
    %846 = vmatpush1.msra.mxu0 0.0
    %847 = vmatprep.subr.mxu0 0.0
    %848 = vmatpush1.msra.mxu0 0.0
    %849 = vmatprep.subr.mxu0 0.0
    %850 = vmatpush1.msra.mxu0 0.0
    %851 = vmatprep.subr.mxu0 0.0
    %852 = vmatpush1.msra.mxu0 0.0
    %853 = vmatprep.subr.mxu0 0.0
    %854 = vmatpush1.msra.mxu0 0.0
    %855 = vmatprep.subr.mxu0 0.0
    %856 = vmatpush1.msra.mxu0 0.0
    %857 = vmatprep.subr.mxu0 0.0
    %858 = vmatpush1.msra.mxu0 0.0
    %859 = vmatprep.subr.mxu0 0.0
    %860 = vmatpush1.msra.mxu0 0.0
    %861 = vmatprep.subr.mxu0 0.0
    %862 = vmatpush1.msra.mxu0 0.0
    %863 = vmatprep.subr.mxu0 0.0
    %864 = vmatpush1.msra.mxu0 0.0
    %865 = vmatprep.subr.mxu0 0.0
    %866 = vmatpush1.msra.mxu0 0.0
    %867 = vmatprep.subr.mxu0 0.0
    %868 = vmatpush1.msra.mxu0 0.0
    %869 = vmatprep.subr.mxu0 0.0
    %870 = vmatpush1.msra.mxu0 0.0
    %871 = vmatprep.mubr.f32.mxu0 0.0
    %872 = vmatmul.mubr.f32.gmra.mrb[0].mxu0 %v799
    %v873 = vpop.f32.mrb[0].mxu0
    %v874 = vadd.f32 0.0, %v873
    %v875 = vpop.f32.mrb[0].mxu0
    %v876 = vadd.f32 0.0, %v875
    %877 = vdwg.mxu0
    %878 = vmatprep.subr.mxu0 %v404
    %879 = vmatpush1.msra.mxu0 %v403
    %880 = vmatprep.subr.mxu0 %v408
    %881 = vmatpush1.msra.mxu0 %v407
    %882 = vmatprep.subr.mxu0 %v412
    %883 = vmatpush1.msra.mxu0 %v411
    %884 = vmatprep.subr.mxu0 %v416
    %885 = vmatpush1.msra.mxu0 %v415
    %886 = vmatprep.subr.mxu0 %v420
    %887 = vmatpush1.msra.mxu0 %v419
    %888 = vmatprep.subr.mxu0 %v424
    %889 = vmatpush1.msra.mxu0 %v423
    %890 = vmatprep.subr.mxu0 %v428
    %891 = vmatpush1.msra.mxu0 %v427
    %892 = vmatprep.subr.mxu0 %v432
    %893 = vmatpush1.msra.mxu0 %v431
    %894 = vmatprep.subr.mxu0 %v436
    %895 = vmatpush1.msra.mxu0 %v435
    %896 = vmatprep.subr.mxu0 %v440
    %897 = vmatpush1.msra.mxu0 %v439
    %898 = vmatprep.subr.mxu0 %v444
    %899 = vmatpush1.msra.mxu0 %v443
    %900 = vmatprep.subr.mxu0 %v448
    %901 = vmatpush1.msra.mxu0 %v447
    %902 = vmatprep.subr.mxu0 %v452
    %903 = vmatpush1.msra.mxu0 %v451
    %904 = vmatprep.subr.mxu0 %v456
    %905 = vmatpush1.msra.mxu0 %v455
    %906 = vmatprep.subr.mxu0 %v460
    %907 = vmatpush1.msra.mxu0 %v459
    %908 = vmatprep.subr.mxu0 %v464
    %909 = vmatpush1.msra.mxu0 %v463
    %910 = vmatprep.subr.mxu0 0.0
    %911 = vmatpush1.msra.mxu0 0.0
    %912 = vmatprep.subr.mxu0 0.0
    %913 = vmatpush1.msra.mxu0 0.0
    %914 = vmatprep.subr.mxu0 0.0
    %915 = vmatpush1.msra.mxu0 0.0
    %916 = vmatprep.subr.mxu0 0.0
    %917 = vmatpush1.msra.mxu0 0.0
    %918 = vmatprep.subr.mxu0 0.0
    %919 = vmatpush1.msra.mxu0 0.0
    %920 = vmatprep.subr.mxu0 0.0
    %921 = vmatpush1.msra.mxu0 0.0
    %922 = vmatprep.subr.mxu0 0.0
    %923 = vmatpush1.msra.mxu0 0.0
    %924 = vmatprep.subr.mxu0 0.0
    %925 = vmatpush1.msra.mxu0 0.0
    %926 = vmatprep.subr.mxu0 0.0
    %927 = vmatpush1.msra.mxu0 0.0
    %928 = vmatprep.subr.mxu0 0.0
    %929 = vmatpush1.msra.mxu0 0.0
    %930 = vmatprep.subr.mxu0 0.0
    %931 = vmatpush1.msra.mxu0 0.0
    %932 = vmatprep.subr.mxu0 0.0
    %933 = vmatpush1.msra.mxu0 0.0
    %934 = vmatprep.subr.mxu0 0.0
    %935 = vmatpush1.msra.mxu0 0.0
    %936 = vmatprep.subr.mxu0 0.0
    %937 = vmatpush1.msra.mxu0 0.0
    %938 = vmatprep.subr.mxu0 0.0
    %939 = vmatpush1.msra.mxu0 0.0
    %940 = vmatprep.subr.mxu0 0.0
    %941 = vmatpush1.msra.mxu0 0.0
    %942 = vmatprep.mubr.f32.mxu0 0.0
    %943 = vmatmul.mubr.f32.gmra.mrb[0].mxu0 %v799
    %v944 = vpop.f32.mrb[0].mxu0
    %v945 = vadd.f32 0.0, %v944
    %v946 = vpop.f32.mrb[0].mxu0
    %v947 = vadd.f32 0.0, %v946
    %948 = vdwg.mxu0
    %v949 = vadd.f32 %v803, %v874
    %v950 = vadd.f32 %v804, %v876
    %v951 = vadd.f32 %v805, %v945
    %v952 = vadd.f32 %v806, %v947
    %v953 = vmul.f32 %v949, 0.5
    %v954 = vtanh.pop %v953
    %v955 = vmul.f32 %v954, 0.5
    %v956 = vadd.f32 %v955, 0.5
    %v957 = vmul.f32 %v950, 0.5
    %v958 = vtanh.pop %v957
    %v959 = vmul.f32 %v958, 0.5
    %v960 = vadd.f32 %v959, 0.5
    %v961 = vtanh.pop %v951
    %v962 = vmul.f32 %v952, 0.5
    %v963 = vtanh.pop %v962
    %v964 = vmul.f32 %v963, 0.5
    %v965 = vadd.f32 %v964, 0.5
    %v966 = vmul.f32 %v960, %v797
    %v967 = vmul.f32 %v956, %v961
    %v968 = vadd.f32 %v966, %v967
    %v969 = vtanh.pop %v968
    %v970 = vmul.f32 %v965, %v969
    %s971 = smul.u32 3, 4
    %s972 = smul.addr %s971, 8
    %s973 = scalar_lea.vmem [#allocation2], %s972
    %v974 = vld [vmem:[%s973] sm:$0xff]
    %v975 = vld [vmem:[%s973 + $0x8] sm:$0xff]
    %v976 = vld [vmem:[%s973 + $0x10] sm:$0xff]
    %v977 = vld [vmem:[%s973 + $0x18] sm:$0xff]
    %978 = vmatprep.subr.mxu0 %v402
    %979 = vmatpush1.msra.mxu0 %v401
    %980 = vmatprep.subr.mxu0 %v406
    %981 = vmatpush1.msra.mxu0 %v405
    %982 = vmatprep.subr.mxu0 %v410
    %983 = vmatpush1.msra.mxu0 %v409
    %984 = vmatprep.subr.mxu0 %v414
    %985 = vmatpush1.msra.mxu0 %v413
    %986 = vmatprep.subr.mxu0 %v418
    %987 = vmatpush1.msra.mxu0 %v417
    %988 = vmatprep.subr.mxu0 %v422
    %989 = vmatpush1.msra.mxu0 %v421
    %990 = vmatprep.subr.mxu0 %v426
    %991 = vmatpush1.msra.mxu0 %v425
    %992 = vmatprep.subr.mxu0 %v430
    %993 = vmatpush1.msra.mxu0 %v429
    %994 = vmatprep.subr.mxu0 %v434
    %995 = vmatpush1.msra.mxu0 %v433
    %996 = vmatprep.subr.mxu0 %v438
    %997 = vmatpush1.msra.mxu0 %v437
    %998 = vmatprep.subr.mxu0 %v442
    %999 = vmatpush1.msra.mxu0 %v441
    %1000 = vmatprep.subr.mxu0 %v446
    %1001 = vmatpush1.msra.mxu0 %v445
    %1002 = vmatprep.subr.mxu0 %v450
    %1003 = vmatpush1.msra.mxu0 %v449
    %1004 = vmatprep.subr.mxu0 %v454
    %1005 = vmatpush1.msra.mxu0 %v453
    %1006 = vmatprep.subr.mxu0 %v458
    %1007 = vmatpush1.msra.mxu0 %v457
    %1008 = vmatprep.subr.mxu0 %v462
    %1009 = vmatpush1.msra.mxu0 %v461
    %1010 = vmatprep.subr.mxu0 0.0
    %1011 = vmatpush1.msra.mxu0 0.0
    %1012 = vmatprep.subr.mxu0 0.0
    %1013 = vmatpush1.msra.mxu0 0.0
    %1014 = vmatprep.subr.mxu0 0.0
    %1015 = vmatpush1.msra.mxu0 0.0
    %1016 = vmatprep.subr.mxu0 0.0
    %1017 = vmatpush1.msra.mxu0 0.0
    %1018 = vmatprep.subr.mxu0 0.0
    %1019 = vmatpush1.msra.mxu0 0.0
    %1020 = vmatprep.subr.mxu0 0.0
    %1021 = vmatpush1.msra.mxu0 0.0
    %1022 = vmatprep.subr.mxu0 0.0
    %1023 = vmatpush1.msra.mxu0 0.0
    %1024 = vmatprep.subr.mxu0 0.0
    %1025 = vmatpush1.msra.mxu0 0.0
    %1026 = vmatprep.subr.mxu0 0.0
    %1027 = vmatpush1.msra.mxu0 0.0
    %1028 = vmatprep.subr.mxu0 0.0
    %1029 = vmatpush1.msra.mxu0 0.0
    %1030 = vmatprep.subr.mxu0 0.0
    %1031 = vmatpush1.msra.mxu0 0.0
    %1032 = vmatprep.subr.mxu0 0.0
    %1033 = vmatpush1.msra.mxu0 0.0
    %1034 = vmatprep.subr.mxu0 0.0
    %1035 = vmatpush1.msra.mxu0 0.0
    %1036 = vmatprep.subr.mxu0 0.0
    %1037 = vmatpush1.msra.mxu0 0.0
    %1038 = vmatprep.subr.mxu0 0.0
    %1039 = vmatpush1.msra.mxu0 0.0
    %1040 = vmatprep.subr.mxu0 0.0
    %1041 = vmatpush1.msra.mxu0 0.0
    %1042 = vmatprep.mubr.f32.mxu0 0.0
    %1043 = vmatmul.mubr.f32.gmra.mrb[0].mxu0 %v970
    %v1044 = vpop.f32.mrb[0].mxu0
    %v1045 = vadd.f32 0.0, %v1044
    %v1046 = vpop.f32.mrb[0].mxu0
    %v1047 = vadd.f32 0.0, %v1046
    %1048 = vdwg.mxu0
    %1049 = vmatprep.subr.mxu0 %v404
    %1050 = vmatpush1.msra.mxu0 %v403
    %1051 = vmatprep.subr.mxu0 %v408
    %1052 = vmatpush1.msra.mxu0 %v407
    %1053 = vmatprep.subr.mxu0 %v412
    %1054 = vmatpush1.msra.mxu0 %v411
    %1055 = vmatprep.subr.mxu0 %v416
    %1056 = vmatpush1.msra.mxu0 %v415
    %1057 = vmatprep.subr.mxu0 %v420
    %1058 = vmatpush1.msra.mxu0 %v419
    %1059 = vmatprep.subr.mxu0 %v424
    %1060 = vmatpush1.msra.mxu0 %v423
    %1061 = vmatprep.subr.mxu0 %v428
    %1062 = vmatpush1.msra.mxu0 %v427
    %1063 = vmatprep.subr.mxu0 %v432
    %1064 = vmatpush1.msra.mxu0 %v431
    %1065 = vmatprep.subr.mxu0 %v436
    %1066 = vmatpush1.msra.mxu0 %v435
    %1067 = vmatprep.subr.mxu0 %v440
    %1068 = vmatpush1.msra.mxu0 %v439
    %1069 = vmatprep.subr.mxu0 %v444
    %1070 = vmatpush1.msra.mxu0 %v443
    %1071 = vmatprep.subr.mxu0 %v448
    %1072 = vmatpush1.msra.mxu0 %v447
    %1073 = vmatprep.subr.mxu0 %v452
    %1074 = vmatpush1.msra.mxu0 %v451
    %1075 = vmatprep.subr.mxu0 %v456
    %1076 = vmatpush1.msra.mxu0 %v455
    %1077 = vmatprep.subr.mxu0 %v460
    %1078 = vmatpush1.msra.mxu0 %v459
    %1079 = vmatprep.subr.mxu0 %v464
    %1080 = vmatpush1.msra.mxu0 %v463
    %1081 = vmatprep.subr.mxu0 0.0
    %1082 = vmatpush1.msra.mxu0 0.0
    %1083 = vmatprep.subr.mxu0 0.0
    %1084 = vmatpush1.msra.mxu0 0.0
    %1085 = vmatprep.subr.mxu0 0.0
    %1086 = vmatpush1.msra.mxu0 0.0
    %1087 = vmatprep.subr.mxu0 0.0
    %1088 = vmatpush1.msra.mxu0 0.0
    %1089 = vmatprep.subr.mxu0 0.0
    %1090 = vmatpush1.msra.mxu0 0.0
    %1091 = vmatprep.subr.mxu0 0.0
    %1092 = vmatpush1.msra.mxu0 0.0
    %1093 = vmatprep.subr.mxu0 0.0
    %1094 = vmatpush1.msra.mxu0 0.0
    %1095 = vmatprep.subr.mxu0 0.0
    %1096 = vmatpush1.msra.mxu0 0.0
    %1097 = vmatprep.subr.mxu0 0.0
    %1098 = vmatpush1.msra.mxu0 0.0
    %1099 = vmatprep.subr.mxu0 0.0
    %1100 = vmatpush1.msra.mxu0 0.0
    %1101 = vmatprep.subr.mxu0 0.0
    %1102 = vmatpush1.msra.mxu0 0.0
    %1103 = vmatprep.subr.mxu0 0.0
    %1104 = vmatpush1.msra.mxu0 0.0
    %1105 = vmatprep.subr.mxu0 0.0
    %1106 = vmatpush1.msra.mxu0 0.0
    %1107 = vmatprep.subr.mxu0 0.0
    %1108 = vmatpush1.msra.mxu0 0.0
    %1109 = vmatprep.subr.mxu0 0.0
    %1110 = vmatpush1.msra.mxu0 0.0
    %1111 = vmatprep.subr.mxu0 0.0
    %1112 = vmatpush1.msra.mxu0 0.0
    %1113 = vmatprep.mubr.f32.mxu0 0.0
    %1114 = vmatmul.mubr.f32.gmra.mrb[0].mxu0 %v970
    %v1115 = vpop.f32.mrb[0].mxu0
    %v1116 = vadd.f32 0.0, %v1115
    %v1117 = vpop.f32.mrb[0].mxu0
    %v1118 = vadd.f32 0.0, %v1117
    %1119 = vdwg.mxu0
    %v1120 = vadd.f32 %v974, %v1045
    %v1121 = vadd.f32 %v975, %v1047
    %v1122 = vadd.f32 %v976, %v1116
    %v1123 = vadd.f32 %v977, %v1118
    %v1124 = vmul.f32 %v1120, 0.5
    %v1125 = vtanh.pop %v1124
    %v1126 = vmul.f32 %v1125, 0.5
    %v1127 = vadd.f32 %v1126, 0.5
    %v1128 = vmul.f32 %v1121, 0.5
    %v1129 = vtanh.pop %v1128
    %v1130 = vmul.f32 %v1129, 0.5
    %v1131 = vadd.f32 %v1130, 0.5
    %v1132 = vtanh.pop %v1122
    %v1133 = vmul.f32 %v1123, 0.5
    %v1134 = vtanh.pop %v1133
    %v1135 = vmul.f32 %v1134, 0.5
    %v1136 = vadd.f32 %v1135, 0.5
    %v1137 = vmul.f32 %v1131, %v968
    %v1138 = vmul.f32 %v1127, %v1132
    %v1139 = vadd.f32 %v1137, %v1138
    %v1140 = vtanh.pop %v1139
    %v1141 = vmul.f32 %v1136, %v1140
    %s1142 = smul.u32 4, 4
    %s1143 = smul.addr %s1142, 8
    %s1144 = scalar_lea.vmem [#allocation2], %s1143
    %v1145 = vld [vmem:[%s1144] sm:$0xff]
    %v1146 = vld [vmem:[%s1144 + $0x8] sm:$0xff]
    %v1147 = vld [vmem:[%s1144 + $0x10] sm:$0xff]
    %v1148 = vld [vmem:[%s1144 + $0x18] sm:$0xff]
    %1149 = vmatprep.subr.mxu0 %v402
    %1150 = vmatpush1.msra.mxu0 %v401
    %1151 = vmatprep.subr.mxu0 %v406
    %1152 = vmatpush1.msra.mxu0 %v405
    %1153 = vmatprep.subr.mxu0 %v410
    %1154 = vmatpush1.msra.mxu0 %v409
    %1155 = vmatprep.subr.mxu0 %v414
    %1156 = vmatpush1.msra.mxu0 %v413
    %1157 = vmatprep.subr.mxu0 %v418
    %1158 = vmatpush1.msra.mxu0 %v417
    %1159 = vmatprep.subr.mxu0 %v422
    %1160 = vmatpush1.msra.mxu0 %v421
    %1161 = vmatprep.subr.mxu0 %v426
    %1162 = vmatpush1.msra.mxu0 %v425
    %1163 = vmatprep.subr.mxu0 %v430
    %1164 = vmatpush1.msra.mxu0 %v429
    %1165 = vmatprep.subr.mxu0 %v434
    %1166 = vmatpush1.msra.mxu0 %v433
    %1167 = vmatprep.subr.mxu0 %v438
    %1168 = vmatpush1.msra.mxu0 %v437
    %1169 = vmatprep.subr.mxu0 %v442
    %1170 = vmatpush1.msra.mxu0 %v441
    %1171 = vmatprep.subr.mxu0 %v446
    %1172 = vmatpush1.msra.mxu0 %v445
    %1173 = vmatprep.subr.mxu0 %v450
    %1174 = vmatpush1.msra.mxu0 %v449
    %1175 = vmatprep.subr.mxu0 %v454
    %1176 = vmatpush1.msra.mxu0 %v453
    %1177 = vmatprep.subr.mxu0 %v458
    %1178 = vmatpush1.msra.mxu0 %v457
    %1179 = vmatprep.subr.mxu0 %v462
    %1180 = vmatpush1.msra.mxu0 %v461
    %1181 = vmatprep.subr.mxu0 0.0
    %1182 = vmatpush1.msra.mxu0 0.0
    %1183 = vmatprep.subr.mxu0 0.0
    %1184 = vmatpush1.msra.mxu0 0.0
    %1185 = vmatprep.subr.mxu0 0.0
    %1186 = vmatpush1.msra.mxu0 0.0
    %1187 = vmatprep.subr.mxu0 0.0
    %1188 = vmatpush1.msra.mxu0 0.0
    %1189 = vmatprep.subr.mxu0 0.0
    %1190 = vmatpush1.msra.mxu0 0.0
    %1191 = vmatprep.subr.mxu0 0.0
    %1192 = vmatpush1.msra.mxu0 0.0
    %1193 = vmatprep.subr.mxu0 0.0
    %1194 = vmatpush1.msra.mxu0 0.0
    %1195 = vmatprep.subr.mxu0 0.0
    %1196 = vmatpush1.msra.mxu0 0.0
    %1197 = vmatprep.subr.mxu0 0.0
    %1198 = vmatpush1.msra.mxu0 0.0
    %1199 = vmatprep.subr.mxu0 0.0
    %1200 = vmatpush1.msra.mxu0 0.0
    %1201 = vmatprep.subr.mxu0 0.0
    %1202 = vmatpush1.msra.mxu0 0.0
    %1203 = vmatprep.subr.mxu0 0.0
    %1204 = vmatpush1.msra.mxu0 0.0
    %1205 = vmatprep.subr.mxu0 0.0
    %1206 = vmatpush1.msra.mxu0 0.0
    %1207 = vmatprep.subr.mxu0 0.0
    %1208 = vmatpush1.msra.mxu0 0.0
    %1209 = vmatprep.subr.mxu0 0.0
    %1210 = vmatpush1.msra.mxu0 0.0
    %1211 = vmatprep.subr.mxu0 0.0
    %1212 = vmatpush1.msra.mxu0 0.0
    %1213 = vmatprep.mubr.f32.mxu0 0.0
    %1214 = vmatmul.mubr.f32.gmra.mrb[0].mxu0 %v1141
    %v1215 = vpop.f32.mrb[0].mxu0
    %v1216 = vadd.f32 0.0, %v1215
    %v1217 = vpop.f32.mrb[0].mxu0
    %v1218 = vadd.f32 0.0, %v1217
    %1219 = vdwg.mxu0
    %1220 = vmatprep.subr.mxu0 %v404
    %1221 = vmatpush1.msra.mxu0 %v403
    %1222 = vmatprep.subr.mxu0 %v408
    %1223 = vmatpush1.msra.mxu0 %v407
    %1224 = vmatprep.subr.mxu0 %v412
    %1225 = vmatpush1.msra.mxu0 %v411
    %1226 = vmatprep.subr.mxu0 %v416
    %1227 = vmatpush1.msra.mxu0 %v415
    %1228 = vmatprep.subr.mxu0 %v420
    %1229 = vmatpush1.msra.mxu0 %v419
    %1230 = vmatprep.subr.mxu0 %v424
    %1231 = vmatpush1.msra.mxu0 %v423
    %1232 = vmatprep.subr.mxu0 %v428
    %1233 = vmatpush1.msra.mxu0 %v427
    %1234 = vmatprep.subr.mxu0 %v432
    %1235 = vmatpush1.msra.mxu0 %v431
    %1236 = vmatprep.subr.mxu0 %v436
    %1237 = vmatpush1.msra.mxu0 %v435
    %1238 = vmatprep.subr.mxu0 %v440
    %1239 = vmatpush1.msra.mxu0 %v439
    %1240 = vmatprep.subr.mxu0 %v444
    %1241 = vmatpush1.msra.mxu0 %v443
    %1242 = vmatprep.subr.mxu0 %v448
    %1243 = vmatpush1.msra.mxu0 %v447
    %1244 = vmatprep.subr.mxu0 %v452
    %1245 = vmatpush1.msra.mxu0 %v451
    %1246 = vmatprep.subr.mxu0 %v456
    %1247 = vmatpush1.msra.mxu0 %v455
    %1248 = vmatprep.subr.mxu0 %v460
    %1249 = vmatpush1.msra.mxu0 %v459
    %1250 = vmatprep.subr.mxu0 %v464
    %1251 = vmatpush1.msra.mxu0 %v463
    %1252 = vmatprep.subr.mxu0 0.0
    %1253 = vmatpush1.msra.mxu0 0.0
    %1254 = vmatprep.subr.mxu0 0.0
    %1255 = vmatpush1.msra.mxu0 0.0
    %1256 = vmatprep.subr.mxu0 0.0
    %1257 = vmatpush1.msra.mxu0 0.0
    %1258 = vmatprep.subr.mxu0 0.0
    %1259 = vmatpush1.msra.mxu0 0.0
    %1260 = vmatprep.subr.mxu0 0.0
    %1261 = vmatpush1.msra.mxu0 0.0
    %1262 = vmatprep.subr.mxu0 0.0
    %1263 = vmatpush1.msra.mxu0 0.0
    %1264 = vmatprep.subr.mxu0 0.0
    %1265 = vmatpush1.msra.mxu0 0.0
    %1266 = vmatprep.subr.mxu0 0.0
    %1267 = vmatpush1.msra.mxu0 0.0
    %1268 = vmatprep.subr.mxu0 0.0
    %1269 = vmatpush1.msra.mxu0 0.0
    %1270 = vmatprep.subr.mxu0 0.0
    %1271 = vmatpush1.msra.mxu0 0.0
    %1272 = vmatprep.subr.mxu0 0.0
    %1273 = vmatpush1.msra.mxu0 0.0
    %1274 = vmatprep.subr.mxu0 0.0
    %1275 = vmatpush1.msra.mxu0 0.0
    %1276 = vmatprep.subr.mxu0 0.0
    %1277 = vmatpush1.msra.mxu0 0.0
    %1278 = vmatprep.subr.mxu0 0.0
    %1279 = vmatpush1.msra.mxu0 0.0
    %1280 = vmatprep.subr.mxu0 0.0
    %1281 = vmatpush1.msra.mxu0 0.0
    %1282 = vmatprep.subr.mxu0 0.0
    %1283 = vmatpush1.msra.mxu0 0.0
    %1284 = vmatprep.mubr.f32.mxu0 0.0
    %1285 = vmatmul.mubr.f32.gmra.mrb[0].mxu0 %v1141
    %v1286 = vpop.f32.mrb[0].mxu0
    %v1287 = vadd.f32 0.0, %v1286
    %v1288 = vpop.f32.mrb[0].mxu0
    %v1289 = vadd.f32 0.0, %v1288
    %1290 = vdwg.mxu0
    %v1291 = vadd.f32 %v1145, %v1216
    %v1292 = vadd.f32 %v1146, %v1218
    %v1293 = vadd.f32 %v1147, %v1287
    %v1294 = vadd.f32 %v1148, %v1289
    %v1295 = vmul.f32 %v1291, 0.5
    %v1296 = vtanh.pop %v1295
    %v1297 = vmul.f32 %v1296, 0.5
    %v1298 = vadd.f32 %v1297, 0.5
    %v1299 = vmul.f32 %v1292, 0.5
    %v1300 = vtanh.pop %v1299
    %v1301 = vmul.f32 %v1300, 0.5
    %v1302 = vadd.f32 %v1301, 0.5
    %v1303 = vtanh.pop %v1293
    %v1304 = vmul.f32 %v1294, 0.5
    %v1305 = vtanh.pop %v1304
    %v1306 = vmul.f32 %v1305, 0.5
    %v1307 = vadd.f32 %v1306, 0.5
    %v1308 = vmul.f32 %v1302, %v1139
    %v1309 = vmul.f32 %v1298, %v1303
    %v1310 = vadd.f32 %v1308, %v1309
    %v1311 = vtanh.pop %v1310
    %v1312 = vmul.f32 %v1307, %v1311
    %s1313 = smul.u32 5, 4
    %s1314 = smul.addr %s1313, 8
    %s1315 = scalar_lea.vmem [#allocation2], %s1314
    %v1316 = vld [vmem:[%s1315] sm:$0xff]
    %v1317 = vld [vmem:[%s1315 + $0x8] sm:$0xff]
    %v1318 = vld [vmem:[%s1315 + $0x10] sm:$0xff]
    %v1319 = vld [vmem:[%s1315 + $0x18] sm:$0xff]
    %1320 = vmatprep.subr.mxu0 %v402
    %1321 = vmatpush1.msra.mxu0 %v401
    %1322 = vmatprep.subr.mxu0 %v406
    %1323 = vmatpush1.msra.mxu0 %v405
    %1324 = vmatprep.subr.mxu0 %v410
    %1325 = vmatpush1.msra.mxu0 %v409
    %1326 = vmatprep.subr.mxu0 %v414
    %1327 = vmatpush1.msra.mxu0 %v413
    %1328 = vmatprep.subr.mxu0 %v418
    %1329 = vmatpush1.msra.mxu0 %v417
    %1330 = vmatprep.subr.mxu0 %v422
    %1331 = vmatpush1.msra.mxu0 %v421
    %1332 = vmatprep.subr.mxu0 %v426
    %1333 = vmatpush1.msra.mxu0 %v425
    %1334 = vmatprep.subr.mxu0 %v430
    %1335 = vmatpush1.msra.mxu0 %v429
    %1336 = vmatprep.subr.mxu0 %v434
    %1337 = vmatpush1.msra.mxu0 %v433
    %1338 = vmatprep.subr.mxu0 %v438
    %1339 = vmatpush1.msra.mxu0 %v437
    %1340 = vmatprep.subr.mxu0 %v442
    %1341 = vmatpush1.msra.mxu0 %v441
    %1342 = vmatprep.subr.mxu0 %v446
    %1343 = vmatpush1.msra.mxu0 %v445
    %1344 = vmatprep.subr.mxu0 %v450
    %1345 = vmatpush1.msra.mxu0 %v449
    %1346 = vmatprep.subr.mxu0 %v454
    %1347 = vmatpush1.msra.mxu0 %v453
    %1348 = vmatprep.subr.mxu0 %v458
    %1349 = vmatpush1.msra.mxu0 %v457
    %1350 = vmatprep.subr.mxu0 %v462
    %1351 = vmatpush1.msra.mxu0 %v461
    %1352 = vmatprep.subr.mxu0 0.0
    %1353 = vmatpush1.msra.mxu0 0.0
    %1354 = vmatprep.subr.mxu0 0.0
    %1355 = vmatpush1.msra.mxu0 0.0
    %1356 = vmatprep.subr.mxu0 0.0
    %1357 = vmatpush1.msra.mxu0 0.0
    %1358 = vmatprep.subr.mxu0 0.0
    %1359 = vmatpush1.msra.mxu0 0.0
    %1360 = vmatprep.subr.mxu0 0.0
    %1361 = vmatpush1.msra.mxu0 0.0
    %1362 = vmatprep.subr.mxu0 0.0
    %1363 = vmatpush1.msra.mxu0 0.0
    %1364 = vmatprep.subr.mxu0 0.0
    %1365 = vmatpush1.msra.mxu0 0.0
    %1366 = vmatprep.subr.mxu0 0.0
    %1367 = vmatpush1.msra.mxu0 0.0
    %1368 = vmatprep.subr.mxu0 0.0
    %1369 = vmatpush1.msra.mxu0 0.0
    %1370 = vmatprep.subr.mxu0 0.0
    %1371 = vmatpush1.msra.mxu0 0.0
    %1372 = vmatprep.subr.mxu0 0.0
    %1373 = vmatpush1.msra.mxu0 0.0
    %1374 = vmatprep.subr.mxu0 0.0
    %1375 = vmatpush1.msra.mxu0 0.0
    %1376 = vmatprep.subr.mxu0 0.0
    %1377 = vmatpush1.msra.mxu0 0.0
    %1378 = vmatprep.subr.mxu0 0.0
    %1379 = vmatpush1.msra.mxu0 0.0
    %1380 = vmatprep.subr.mxu0 0.0
    %1381 = vmatpush1.msra.mxu0 0.0
    %1382 = vmatprep.subr.mxu0 0.0
    %1383 = vmatpush1.msra.mxu0 0.0
    %1384 = vmatprep.mubr.f32.mxu0 0.0
    %1385 = vmatmul.mubr.f32.gmra.mrb[0].mxu0 %v1312
    %v1386 = vpop.f32.mrb[0].mxu0
    %v1387 = vadd.f32 0.0, %v1386
    %v1388 = vpop.f32.mrb[0].mxu0
    %v1389 = vadd.f32 0.0, %v1388
    %1390 = vdwg.mxu0
    %1391 = vmatprep.subr.mxu0 %v404
    %1392 = vmatpush1.msra.mxu0 %v403
    %1393 = vmatprep.subr.mxu0 %v408
    %1394 = vmatpush1.msra.mxu0 %v407
    %1395 = vmatprep.subr.mxu0 %v412
    %1396 = vmatpush1.msra.mxu0 %v411
    %1397 = vmatprep.subr.mxu0 %v416
    %1398 = vmatpush1.msra.mxu0 %v415
    %1399 = vmatprep.subr.mxu0 %v420
    %1400 = vmatpush1.msra.mxu0 %v419
    %1401 = vmatprep.subr.mxu0 %v424
    %1402 = vmatpush1.msra.mxu0 %v423
    %1403 = vmatprep.subr.mxu0 %v428
    %1404 = vmatpush1.msra.mxu0 %v427
    %1405 = vmatprep.subr.mxu0 %v432
    %1406 = vmatpush1.msra.mxu0 %v431
    %1407 = vmatprep.subr.mxu0 %v436
    %1408 = vmatpush1.msra.mxu0 %v435
    %1409 = vmatprep.subr.mxu0 %v440
    %1410 = vmatpush1.msra.mxu0 %v439
    %1411 = vmatprep.subr.mxu0 %v444
    %1412 = vmatpush1.msra.mxu0 %v443
    %1413 = vmatprep.subr.mxu0 %v448
    %1414 = vmatpush1.msra.mxu0 %v447
    %1415 = vmatprep.subr.mxu0 %v452
    %1416 = vmatpush1.msra.mxu0 %v451
    %1417 = vmatprep.subr.mxu0 %v456
    %1418 = vmatpush1.msra.mxu0 %v455
    %1419 = vmatprep.subr.mxu0 %v460
    %1420 = vmatpush1.msra.mxu0 %v459
    %1421 = vmatprep.subr.mxu0 %v464
    %1422 = vmatpush1.msra.mxu0 %v463
    %1423 = vmatprep.subr.mxu0 0.0
    %1424 = vmatpush1.msra.mxu0 0.0
    %1425 = vmatprep.subr.mxu0 0.0
    %1426 = vmatpush1.msra.mxu0 0.0
    %1427 = vmatprep.subr.mxu0 0.0
    %1428 = vmatpush1.msra.mxu0 0.0
    %1429 = vmatprep.subr.mxu0 0.0
    %1430 = vmatpush1.msra.mxu0 0.0
    %1431 = vmatprep.subr.mxu0 0.0
    %1432 = vmatpush1.msra.mxu0 0.0
    %1433 = vmatprep.subr.mxu0 0.0
    %1434 = vmatpush1.msra.mxu0 0.0
    %1435 = vmatprep.subr.mxu0 0.0
    %1436 = vmatpush1.msra.mxu0 0.0
    %1437 = vmatprep.subr.mxu0 0.0
    %1438 = vmatpush1.msra.mxu0 0.0
    %1439 = vmatprep.subr.mxu0 0.0
    %1440 = vmatpush1.msra.mxu0 0.0
    %1441 = vmatprep.subr.mxu0 0.0
    %1442 = vmatpush1.msra.mxu0 0.0
    %1443 = vmatprep.subr.mxu0 0.0
    %1444 = vmatpush1.msra.mxu0 0.0
    %1445 = vmatprep.subr.mxu0 0.0
    %1446 = vmatpush1.msra.mxu0 0.0
    %1447 = vmatprep.subr.mxu0 0.0
    %1448 = vmatpush1.msra.mxu0 0.0
    %1449 = vmatprep.subr.mxu0 0.0
    %1450 = vmatpush1.msra.mxu0 0.0
    %1451 = vmatprep.subr.mxu0 0.0
    %1452 = vmatpush1.msra.mxu0 0.0
    %1453 = vmatprep.subr.mxu0 0.0
    %1454 = vmatpush1.msra.mxu0 0.0
    %1455 = vmatprep.mubr.f32.mxu0 0.0
    %1456 = vmatmul.mubr.f32.gmra.mrb[0].mxu0 %v1312
    %v1457 = vpop.f32.mrb[0].mxu0
    %v1458 = vadd.f32 0.0, %v1457
    %v1459 = vpop.f32.mrb[0].mxu0
    %v1460 = vadd.f32 0.0, %v1459
    %1461 = vdwg.mxu0
    %v1462 = vadd.f32 %v1316, %v1387
    %v1463 = vadd.f32 %v1317, %v1389
    %v1464 = vadd.f32 %v1318, %v1458
    %v1465 = vadd.f32 %v1319, %v1460
    %v1466 = vmul.f32 %v1462, 0.5
    %v1467 = vtanh.pop %v1466
    %v1468 = vmul.f32 %v1467, 0.5
    %v1469 = vadd.f32 %v1468, 0.5
    %v1470 = vmul.f32 %v1463, 0.5
    %v1471 = vtanh.pop %v1470
    %v1472 = vmul.f32 %v1471, 0.5
    %v1473 = vadd.f32 %v1472, 0.5
    %v1474 = vtanh.pop %v1464
    %v1475 = vmul.f32 %v1465, 0.5
    %v1476 = vtanh.pop %v1475
    %v1477 = vmul.f32 %v1476, 0.5
    %v1478 = vadd.f32 %v1477, 0.5
    %v1479 = vmul.f32 %v1473, %v1310
    %v1480 = vmul.f32 %v1469, %v1474
    %v1481 = vadd.f32 %v1479, %v1480
    %v1482 = vtanh.pop %v1481
    %v1483 = vmul.f32 %v1478, %v1482
    %s1484 = smul.u32 6, 4
    %s1485 = smul.addr %s1484, 8
    %s1486 = scalar_lea.vmem [#allocation2], %s1485
    %v1487 = vld [vmem:[%s1486] sm:$0xff]
    %v1488 = vld [vmem:[%s1486 + $0x8] sm:$0xff]
    %v1489 = vld [vmem:[%s1486 + $0x10] sm:$0xff]
    %v1490 = vld [vmem:[%s1486 + $0x18] sm:$0xff]
    %1491 = vmatprep.subr.mxu0 %v402
    %1492 = vmatpush1.msra.mxu0 %v401
    %1493 = vmatprep.subr.mxu0 %v406
    %1494 = vmatpush1.msra.mxu0 %v405
    %1495 = vmatprep.subr.mxu0 %v410
    %1496 = vmatpush1.msra.mxu0 %v409
    %1497 = vmatprep.subr.mxu0 %v414
    %1498 = vmatpush1.msra.mxu0 %v413
    %1499 = vmatprep.subr.mxu0 %v418
    %1500 = vmatpush1.msra.mxu0 %v417
    %1501 = vmatprep.subr.mxu0 %v422
    %1502 = vmatpush1.msra.mxu0 %v421
    %1503 = vmatprep.subr.mxu0 %v426
    %1504 = vmatpush1.msra.mxu0 %v425
    %1505 = vmatprep.subr.mxu0 %v430
    %1506 = vmatpush1.msra.mxu0 %v429
    %1507 = vmatprep.subr.mxu0 %v434
    %1508 = vmatpush1.msra.mxu0 %v433
    %1509 = vmatprep.subr.mxu0 %v438
    %1510 = vmatpush1.msra.mxu0 %v437
    %1511 = vmatprep.subr.mxu0 %v442
    %1512 = vmatpush1.msra.mxu0 %v441
    %1513 = vmatprep.subr.mxu0 %v446
    %1514 = vmatpush1.msra.mxu0 %v445
    %1515 = vmatprep.subr.mxu0 %v450
    %1516 = vmatpush1.msra.mxu0 %v449
    %1517 = vmatprep.subr.mxu0 %v454
    %1518 = vmatpush1.msra.mxu0 %v453
    %1519 = vmatprep.subr.mxu0 %v458
    %1520 = vmatpush1.msra.mxu0 %v457
    %1521 = vmatprep.subr.mxu0 %v462
    %1522 = vmatpush1.msra.mxu0 %v461
    %1523 = vmatprep.subr.mxu0 0.0
    %1524 = vmatpush1.msra.mxu0 0.0
    %1525 = vmatprep.subr.mxu0 0.0
    %1526 = vmatpush1.msra.mxu0 0.0
    %1527 = vmatprep.subr.mxu0 0.0
    %1528 = vmatpush1.msra.mxu0 0.0
    %1529 = vmatprep.subr.mxu0 0.0
    %1530 = vmatpush1.msra.mxu0 0.0
    %1531 = vmatprep.subr.mxu0 0.0
    %1532 = vmatpush1.msra.mxu0 0.0
    %1533 = vmatprep.subr.mxu0 0.0
    %1534 = vmatpush1.msra.mxu0 0.0
    %1535 = vmatprep.subr.mxu0 0.0
    %1536 = vmatpush1.msra.mxu0 0.0
    %1537 = vmatprep.subr.mxu0 0.0
    %1538 = vmatpush1.msra.mxu0 0.0
    %1539 = vmatprep.subr.mxu0 0.0
    %1540 = vmatpush1.msra.mxu0 0.0
    %1541 = vmatprep.subr.mxu0 0.0
    %1542 = vmatpush1.msra.mxu0 0.0
    %1543 = vmatprep.subr.mxu0 0.0
    %1544 = vmatpush1.msra.mxu0 0.0
    %1545 = vmatprep.subr.mxu0 0.0
    %1546 = vmatpush1.msra.mxu0 0.0
    %1547 = vmatprep.subr.mxu0 0.0
    %1548 = vmatpush1.msra.mxu0 0.0
    %1549 = vmatprep.subr.mxu0 0.0
    %1550 = vmatpush1.msra.mxu0 0.0
    %1551 = vmatprep.subr.mxu0 0.0
    %1552 = vmatpush1.msra.mxu0 0.0
    %1553 = vmatprep.subr.mxu0 0.0
    %1554 = vmatpush1.msra.mxu0 0.0
    %1555 = vmatprep.mubr.f32.mxu0 0.0
    %1556 = vmatmul.mubr.f32.gmra.mrb[0].mxu0 %v1483
    %v1557 = vpop.f32.mrb[0].mxu0
    %v1558 = vadd.f32 0.0, %v1557
    %v1559 = vpop.f32.mrb[0].mxu0
    %v1560 = vadd.f32 0.0, %v1559
    %1561 = vdwg.mxu0
    %1562 = vmatprep.subr.mxu0 %v404
    %1563 = vmatpush1.msra.mxu0 %v403
    %1564 = vmatprep.subr.mxu0 %v408
    %1565 = vmatpush1.msra.mxu0 %v407
    %1566 = vmatprep.subr.mxu0 %v412
    %1567 = vmatpush1.msra.mxu0 %v411
    %1568 = vmatprep.subr.mxu0 %v416
    %1569 = vmatpush1.msra.mxu0 %v415
    %1570 = vmatprep.subr.mxu0 %v420
    %1571 = vmatpush1.msra.mxu0 %v419
    %1572 = vmatprep.subr.mxu0 %v424
    %1573 = vmatpush1.msra.mxu0 %v423
    %1574 = vmatprep.subr.mxu0 %v428
    %1575 = vmatpush1.msra.mxu0 %v427
    %1576 = vmatprep.subr.mxu0 %v432
    %1577 = vmatpush1.msra.mxu0 %v431
    %1578 = vmatprep.subr.mxu0 %v436
    %1579 = vmatpush1.msra.mxu0 %v435
    %1580 = vmatprep.subr.mxu0 %v440
    %1581 = vmatpush1.msra.mxu0 %v439
    %1582 = vmatprep.subr.mxu0 %v444
    %1583 = vmatpush1.msra.mxu0 %v443
    %1584 = vmatprep.subr.mxu0 %v448
    %1585 = vmatpush1.msra.mxu0 %v447
    %1586 = vmatprep.subr.mxu0 %v452
    %1587 = vmatpush1.msra.mxu0 %v451
    %1588 = vmatprep.subr.mxu0 %v456
    %1589 = vmatpush1.msra.mxu0 %v455
    %1590 = vmatprep.subr.mxu0 %v460
    %1591 = vmatpush1.msra.mxu0 %v459
    %1592 = vmatprep.subr.mxu0 %v464
    %1593 = vmatpush1.msra.mxu0 %v463
    %1594 = vmatprep.subr.mxu0 0.0
    %1595 = vmatpush1.msra.mxu0 0.0
    %1596 = vmatprep.subr.mxu0 0.0
    %1597 = vmatpush1.msra.mxu0 0.0
    %1598 = vmatprep.subr.mxu0 0.0
    %1599 = vmatpush1.msra.mxu0 0.0
    %1600 = vmatprep.subr.mxu0 0.0
    %1601 = vmatpush1.msra.mxu0 0.0
    %1602 = vmatprep.subr.mxu0 0.0
    %1603 = vmatpush1.msra.mxu0 0.0
    %1604 = vmatprep.subr.mxu0 0.0
    %1605 = vmatpush1.msra.mxu0 0.0
    %1606 = vmatprep.subr.mxu0 0.0
    %1607 = vmatpush1.msra.mxu0 0.0
    %1608 = vmatprep.subr.mxu0 0.0
    %1609 = vmatpush1.msra.mxu0 0.0
    %1610 = vmatprep.subr.mxu0 0.0
    %1611 = vmatpush1.msra.mxu0 0.0
    %1612 = vmatprep.subr.mxu0 0.0
    %1613 = vmatpush1.msra.mxu0 0.0
    %1614 = vmatprep.subr.mxu0 0.0
    %1615 = vmatpush1.msra.mxu0 0.0
    %1616 = vmatprep.subr.mxu0 0.0
    %1617 = vmatpush1.msra.mxu0 0.0
    %1618 = vmatprep.subr.mxu0 0.0
    %1619 = vmatpush1.msra.mxu0 0.0
    %1620 = vmatprep.subr.mxu0 0.0
    %1621 = vmatpush1.msra.mxu0 0.0
    %1622 = vmatprep.subr.mxu0 0.0
    %1623 = vmatpush1.msra.mxu0 0.0
    %1624 = vmatprep.subr.mxu0 0.0
    %1625 = vmatpush1.msra.mxu0 0.0
    %1626 = vmatprep.mubr.f32.mxu0 0.0
    %1627 = vmatmul.mubr.f32.gmra.mrb[0].mxu0 %v1483
    %v1628 = vpop.f32.mrb[0].mxu0
    %v1629 = vadd.f32 0.0, %v1628
    %v1630 = vpop.f32.mrb[0].mxu0
    %v1631 = vadd.f32 0.0, %v1630
    %1632 = vdwg.mxu0
    %v1633 = vadd.f32 %v1487, %v1558
    %v1634 = vadd.f32 %v1488, %v1560
    %v1635 = vadd.f32 %v1489, %v1629
    %v1636 = vadd.f32 %v1490, %v1631
    %v1637 = vmul.f32 %v1633, 0.5
    %v1638 = vtanh.pop %v1637
    %v1639 = vmul.f32 %v1638, 0.5
    %v1640 = vadd.f32 %v1639, 0.5
    %v1641 = vmul.f32 %v1634, 0.5
    %v1642 = vtanh.pop %v1641
    %v1643 = vmul.f32 %v1642, 0.5
    %v1644 = vadd.f32 %v1643, 0.5
    %v1645 = vtanh.pop %v1635
    %v1646 = vmul.f32 %v1636, 0.5
    %v1647 = vtanh.pop %v1646
    %v1648 = vmul.f32 %v1647, 0.5
    %v1649 = vadd.f32 %v1648, 0.5
    %v1650 = vmul.f32 %v1644, %v1481
    %v1651 = vmul.f32 %v1640, %v1645
    %v1652 = vadd.f32 %v1650, %v1651
    %v1653 = vtanh.pop %v1652
    %v1654 = vmul.f32 %v1649, %v1653
    %s1655 = smul.u32 7, 4
    %s1656 = smul.addr %s1655, 8
    %s1657 = scalar_lea.vmem [#allocation2], %s1656
    %v1658 = vld [vmem:[%s1657] sm:$0xff]
    %v1659 = vld [vmem:[%s1657 + $0x8] sm:$0xff]
    %v1660 = vld [vmem:[%s1657 + $0x10] sm:$0xff]
    %v1661 = vld [vmem:[%s1657 + $0x18] sm:$0xff]
    %1662 = vmatprep.subr.mxu0 %v402
    %1663 = vmatpush1.msra.mxu0 %v401
    %1664 = vmatprep.subr.mxu0 %v406
    %1665 = vmatpush1.msra.mxu0 %v405
    %1666 = vmatprep.subr.mxu0 %v410
    %1667 = vmatpush1.msra.mxu0 %v409
    %1668 = vmatprep.subr.mxu0 %v414
    %1669 = vmatpush1.msra.mxu0 %v413
    %1670 = vmatprep.subr.mxu0 %v418
    %1671 = vmatpush1.msra.mxu0 %v417
    %1672 = vmatprep.subr.mxu0 %v422
    %1673 = vmatpush1.msra.mxu0 %v421
    %1674 = vmatprep.subr.mxu0 %v426
    %1675 = vmatpush1.msra.mxu0 %v425
    %1676 = vmatprep.subr.mxu0 %v430
    %1677 = vmatpush1.msra.mxu0 %v429
    %1678 = vmatprep.subr.mxu0 %v434
    %1679 = vmatpush1.msra.mxu0 %v433
    %1680 = vmatprep.subr.mxu0 %v438
    %1681 = vmatpush1.msra.mxu0 %v437
    %1682 = vmatprep.subr.mxu0 %v442
    %1683 = vmatpush1.msra.mxu0 %v441
    %1684 = vmatprep.subr.mxu0 %v446
    %1685 = vmatpush1.msra.mxu0 %v445
    %1686 = vmatprep.subr.mxu0 %v450
    %1687 = vmatpush1.msra.mxu0 %v449
    %1688 = vmatprep.subr.mxu0 %v454
    %1689 = vmatpush1.msra.mxu0 %v453
    %1690 = vmatprep.subr.mxu0 %v458
    %1691 = vmatpush1.msra.mxu0 %v457
    %1692 = vmatprep.subr.mxu0 %v462
    %1693 = vmatpush1.msra.mxu0 %v461
    %1694 = vmatprep.subr.mxu0 0.0
    %1695 = vmatpush1.msra.mxu0 0.0
    %1696 = vmatprep.subr.mxu0 0.0
    %1697 = vmatpush1.msra.mxu0 0.0
    %1698 = vmatprep.subr.mxu0 0.0
    %1699 = vmatpush1.msra.mxu0 0.0
    %1700 = vmatprep.subr.mxu0 0.0
    %1701 = vmatpush1.msra.mxu0 0.0
    %1702 = vmatprep.subr.mxu0 0.0
    %1703 = vmatpush1.msra.mxu0 0.0
    %1704 = vmatprep.subr.mxu0 0.0
    %1705 = vmatpush1.msra.mxu0 0.0
    %1706 = vmatprep.subr.mxu0 0.0
    %1707 = vmatpush1.msra.mxu0 0.0
    %1708 = vmatprep.subr.mxu0 0.0
    %1709 = vmatpush1.msra.mxu0 0.0
    %1710 = vmatprep.subr.mxu0 0.0
    %1711 = vmatpush1.msra.mxu0 0.0
    %1712 = vmatprep.subr.mxu0 0.0
    %1713 = vmatpush1.msra.mxu0 0.0
    %1714 = vmatprep.subr.mxu0 0.0
    %1715 = vmatpush1.msra.mxu0 0.0
    %1716 = vmatprep.subr.mxu0 0.0
    %1717 = vmatpush1.msra.mxu0 0.0
    %1718 = vmatprep.subr.mxu0 0.0
    %1719 = vmatpush1.msra.mxu0 0.0
    %1720 = vmatprep.subr.mxu0 0.0
    %1721 = vmatpush1.msra.mxu0 0.0
    %1722 = vmatprep.subr.mxu0 0.0
    %1723 = vmatpush1.msra.mxu0 0.0
    %1724 = vmatprep.subr.mxu0 0.0
    %1725 = vmatpush1.msra.mxu0 0.0
    %1726 = vmatprep.mubr.f32.mxu0 0.0
    %1727 = vmatmul.mubr.f32.gmra.mrb[0].mxu0 %v1654
    %v1728 = vpop.f32.mrb[0].mxu0
    %v1729 = vadd.f32 0.0, %v1728
    %v1730 = vpop.f32.mrb[0].mxu0
    %v1731 = vadd.f32 0.0, %v1730
    %1732 = vdwg.mxu0
    %1733 = vmatprep.subr.mxu0 %v404
    %1734 = vmatpush1.msra.mxu0 %v403
    %1735 = vmatprep.subr.mxu0 %v408
    %1736 = vmatpush1.msra.mxu0 %v407
    %1737 = vmatprep.subr.mxu0 %v412
    %1738 = vmatpush1.msra.mxu0 %v411
    %1739 = vmatprep.subr.mxu0 %v416
    %1740 = vmatpush1.msra.mxu0 %v415
    %1741 = vmatprep.subr.mxu0 %v420
    %1742 = vmatpush1.msra.mxu0 %v419
    %1743 = vmatprep.subr.mxu0 %v424
    %1744 = vmatpush1.msra.mxu0 %v423
    %1745 = vmatprep.subr.mxu0 %v428
    %1746 = vmatpush1.msra.mxu0 %v427
    %1747 = vmatprep.subr.mxu0 %v432
    %1748 = vmatpush1.msra.mxu0 %v431
    %1749 = vmatprep.subr.mxu0 %v436
    %1750 = vmatpush1.msra.mxu0 %v435
    %1751 = vmatprep.subr.mxu0 %v440
    %1752 = vmatpush1.msra.mxu0 %v439
    %1753 = vmatprep.subr.mxu0 %v444
    %1754 = vmatpush1.msra.mxu0 %v443
    %1755 = vmatprep.subr.mxu0 %v448
    %1756 = vmatpush1.msra.mxu0 %v447
    %1757 = vmatprep.subr.mxu0 %v452
    %1758 = vmatpush1.msra.mxu0 %v451
    %1759 = vmatprep.subr.mxu0 %v456
    %1760 = vmatpush1.msra.mxu0 %v455
    %1761 = vmatprep.subr.mxu0 %v460
    %1762 = vmatpush1.msra.mxu0 %v459
    %1763 = vmatprep.subr.mxu0 %v464
    %1764 = vmatpush1.msra.mxu0 %v463
    %1765 = vmatprep.subr.mxu0 0.0
    %1766 = vmatpush1.msra.mxu0 0.0
    %1767 = vmatprep.subr.mxu0 0.0
    %1768 = vmatpush1.msra.mxu0 0.0
    %1769 = vmatprep.subr.mxu0 0.0
    %1770 = vmatpush1.msra.mxu0 0.0
    %1771 = vmatprep.subr.mxu0 0.0
    %1772 = vmatpush1.msra.mxu0 0.0
    %1773 = vmatprep.subr.mxu0 0.0
    %1774 = vmatpush1.msra.mxu0 0.0
    %1775 = vmatprep.subr.mxu0 0.0
    %1776 = vmatpush1.msra.mxu0 0.0
    %1777 = vmatprep.subr.mxu0 0.0
    %1778 = vmatpush1.msra.mxu0 0.0
    %1779 = vmatprep.subr.mxu0 0.0
    %1780 = vmatpush1.msra.mxu0 0.0
    %1781 = vmatprep.subr.mxu0 0.0
    %1782 = vmatpush1.msra.mxu0 0.0
    %1783 = vmatprep.subr.mxu0 0.0
    %1784 = vmatpush1.msra.mxu0 0.0
    %1785 = vmatprep.subr.mxu0 0.0
    %1786 = vmatpush1.msra.mxu0 0.0
    %1787 = vmatprep.subr.mxu0 0.0
    %1788 = vmatpush1.msra.mxu0 0.0
    %1789 = vmatprep.subr.mxu0 0.0
    %1790 = vmatpush1.msra.mxu0 0.0
    %1791 = vmatprep.subr.mxu0 0.0
    %1792 = vmatpush1.msra.mxu0 0.0
    %1793 = vmatprep.subr.mxu0 0.0
    %1794 = vmatpush1.msra.mxu0 0.0
    %1795 = vmatprep.subr.mxu0 0.0
    %1796 = vmatpush1.msra.mxu0 0.0
    %1797 = vmatprep.mubr.f32.mxu0 0.0
    %1798 = vmatmul.mubr.f32.gmra.mrb[0].mxu0 %v1654
    %v1799 = vpop.f32.mrb[0].mxu0
    %v1800 = vadd.f32 0.0, %v1799
    %v1801 = vpop.f32.mrb[0].mxu0
    %v1802 = vadd.f32 0.0, %v1801
    %1803 = vdwg.mxu0
    %v1804 = vadd.f32 %v1658, %v1729
    %v1805 = vadd.f32 %v1659, %v1731
    %v1806 = vadd.f32 %v1660, %v1800
    %v1807 = vadd.f32 %v1661, %v1802
    %v1808 = vmul.f32 %v1804, 0.5
    %v1809 = vtanh.pop %v1808
    %v1810 = vmul.f32 %v1809, 0.5
    %v1811 = vadd.f32 %v1810, 0.5
    %v1812 = vmul.f32 %v1805, 0.5
    %v1813 = vtanh.pop %v1812
    %v1814 = vmul.f32 %v1813, 0.5
    %v1815 = vadd.f32 %v1814, 0.5
    %v1816 = vtanh.pop %v1806
    %v1817 = vmul.f32 %v1807, 0.5
    %v1818 = vtanh.pop %v1817
    %v1819 = vmul.f32 %v1818, 0.5
    %v1820 = vadd.f32 %v1819, 0.5
    %v1821 = vmul.f32 %v1815, %v1652
    %v1822 = vmul.f32 %v1811, %v1816
    %v1823 = vadd.f32 %v1821, %v1822
    %v1824 = vtanh.pop %v1823
    %v1825 = vmul.f32 %v1820, %v1824
    %v1826 = vld [vmem:[#allocation8] sm:$0xff]
    %v1827 = vld [vmem:[#allocation8 + $0x8] sm:$0xff]
    %v1828 = vld [vmem:[#allocation8 + $0x10] sm:$0xff]
    %v1829 = vld [vmem:[#allocation8 + $0x18] sm:$0xff]
    %v1830 = vld [vmem:[#allocation8 + $0x20] sm:$0xff]
    %v1831 = vld [vmem:[#allocation8 + $0x28] sm:$0xff]
    %v1832 = vld [vmem:[#allocation8 + $0x30] sm:$0xff]
    %v1833 = vld [vmem:[#allocation8 + $0x38] sm:$0xff]
    %v1834 = vld [vmem:[#allocation8 + $0x40] sm:$0xff]
    %v1835 = vld [vmem:[#allocation8 + $0x48] sm:$0xff]
    %v1836 = vld [vmem:[#allocation8 + $0x50] sm:$0xff]
    %v1837 = vld [vmem:[#allocation8 + $0x58] sm:$0xff]
    %v1838 = vld [vmem:[#allocation8 + $0x60] sm:$0xff]
    %v1839 = vld [vmem:[#allocation8 + $0x68] sm:$0xff]
    %v1840 = vld [vmem:[#allocation8 + $0x70] sm:$0xff]
    %v1841 = vld [vmem:[#allocation8 + $0x78] sm:$0xff]
    %v1842 = vld [vmem:[%s5] sm:$0x1]
    %v1844 = vlaneseq
    %v1845 = vshrl.u32 %v1844, 7
    %v1846 = vsub.s32 0, %v1845
    %v1847 = vrot.slane %v1842, %v1846
    %1849 = vmatprep.subr.mxu0 0.0
    %1850 = vmatpush1.msra.mxu0 %v1826
    %1851 = vmatprep.subr.mxu0 0.0
    %1852 = vmatpush1.msra.mxu0 %v1827
    %1853 = vmatprep.subr.mxu0 0.0
    %1854 = vmatpush1.msra.mxu0 %v1828
    %1855 = vmatprep.subr.mxu0 0.0
    %1856 = vmatpush1.msra.mxu0 %v1829
    %1857 = vmatprep.subr.mxu0 0.0
    %1858 = vmatpush1.msra.mxu0 %v1830
    %1859 = vmatprep.subr.mxu0 0.0
    %1860 = vmatpush1.msra.mxu0 %v1831
    %1861 = vmatprep.subr.mxu0 0.0
    %1862 = vmatpush1.msra.mxu0 %v1832
    %1863 = vmatprep.subr.mxu0 0.0
    %1864 = vmatpush1.msra.mxu0 %v1833
    %1865 = vmatprep.subr.mxu0 0.0
    %1866 = vmatpush1.msra.mxu0 %v1834
    %1867 = vmatprep.subr.mxu0 0.0
    %1868 = vmatpush1.msra.mxu0 %v1835
    %1869 = vmatprep.subr.mxu0 0.0
    %1870 = vmatpush1.msra.mxu0 %v1836
    %1871 = vmatprep.subr.mxu0 0.0
    %1872 = vmatpush1.msra.mxu0 %v1837
    %1873 = vmatprep.subr.mxu0 0.0
    %1874 = vmatpush1.msra.mxu0 %v1838
    %1875 = vmatprep.subr.mxu0 0.0
    %1876 = vmatpush1.msra.mxu0 %v1839
    %1877 = vmatprep.subr.mxu0 0.0
    %1878 = vmatpush1.msra.mxu0 %v1840
    %1879 = vmatprep.subr.mxu0 0.0
    %1880 = vmatpush1.msra.mxu0 %v1841
    %1881 = vmatprep.subr.mxu0 0.0
    %1882 = vmatpush1.msra.mxu0 0.0
    %1883 = vmatprep.subr.mxu0 0.0
    %1884 = vmatpush1.msra.mxu0 0.0
    %1885 = vmatprep.subr.mxu0 0.0
    %1886 = vmatpush1.msra.mxu0 0.0
    %1887 = vmatprep.subr.mxu0 0.0
    %1888 = vmatpush1.msra.mxu0 0.0
    %1889 = vmatprep.subr.mxu0 0.0
    %1890 = vmatpush1.msra.mxu0 0.0
    %1891 = vmatprep.subr.mxu0 0.0
    %1892 = vmatpush1.msra.mxu0 0.0
    %1893 = vmatprep.subr.mxu0 0.0
    %1894 = vmatpush1.msra.mxu0 0.0
    %1895 = vmatprep.subr.mxu0 0.0
    %1896 = vmatpush1.msra.mxu0 0.0
    %1897 = vmatprep.subr.mxu0 0.0
    %1898 = vmatpush1.msra.mxu0 0.0
    %1899 = vmatprep.subr.mxu0 0.0
    %1900 = vmatpush1.msra.mxu0 0.0
    %1901 = vmatprep.subr.mxu0 0.0
    %1902 = vmatpush1.msra.mxu0 0.0
    %1903 = vmatprep.subr.mxu0 0.0
    %1904 = vmatpush1.msra.mxu0 0.0
    %1905 = vmatprep.subr.mxu0 0.0
    %1906 = vmatpush1.msra.mxu0 0.0
    %1907 = vmatprep.subr.mxu0 0.0
    %1908 = vmatpush1.msra.mxu0 0.0
    %1909 = vmatprep.subr.mxu0 0.0
    %1910 = vmatpush1.msra.mxu0 0.0
    %1911 = vmatprep.subr.mxu0 0.0
    %1912 = vmatpush1.msra.mxu0 0.0
    %1913 = vmatprep.mubr.f32.mxu0 0.0
    %1914 = vmatmul.mubr.f32.gmra.mrb[0].mxu0 %v1825
    %v1915 = vpop.f32.mrb[0].mxu0
    %v1916 = vadd.f32 %v1847, %v1915
    %v1917 = vpop.f32.mrb[0].mxu0
    %1918 = vdwg.mxu0
    %1919 = vmax.xlane.f32.xlu0 %v1916
    %v1920 = vpop.xlane.xlu0 %1919
    %v1921 = vsub.f32 %v1916, %v1920
    %v1922 = vmul.f32 %v1921, 1.442695
    %v1923 = vpow.pop %v1922
    %1924 = vadd.xlane.f32.xlu0 %v1923
    %v1925 = vpop.xlane.xlu0 %1924
    %v1926 = vrcp.pop %v1925
    %v1927 = vmul.f32 %v1923, %v1926
    %1928 = vst [vmem:[#allocation9] sm:$0xff] %v1927
    // Predicated region
    $region38: #{tpu_custom_call.1} parent=1 // pred_check
      _
    $region39: #{tpu_custom_call.1} parent=1 // pred_check_branch
      %1930 = sbr.rel (0) target = $region41
    $region40: #{tpu_custom_call.1} parent=1 // pred_region
      %s1932 = ssub.s32 128, 128
      %1933 = vsyncadd [#allocation5], %s1932
      %s1935 = sshll.u32 [#allocation9], 4
      %s1936 = int_to_ptr.vmem [resolvable:$true] %s1935
      %1938 = dma.vmem_to_hbm [thread:$0]  %s1936, 128, %s6, [#allocation5]
    $region41: #{tpu_custom_call.1} parent=1 // pred_fallthru
      _
    // Predicated region
    $region42: #{tpu_custom_call.1} parent=1 // pred_check
      _
    $region43: #{tpu_custom_call.1} parent=1 // pred_check_branch
      %1940 = sbr.rel (0) target = $region45
    $region44: #{tpu_custom_call.1} parent=1 // pred_region
      %1941 = dma.done [#allocation5], 128
    $region45: #{tpu_custom_call.1} parent=1 // pred_fallthru
      _
    %1942 = vsyncpa [#allocation4], 1
    %1943 = vsyncpa [#allocation7], 1
    %1944 = vsyncpa [#allocation5], 1

// kernel: tpu_custom_call.1
$region0: #{tpu_custom_call.1}
  #allocation0 [shape = 'u32[]', space=smem, size = 0x4, offset = 0x4, fixed_abs, tag = 'smem constant byte address 0x4 - core index']
  #allocation1 [shape = 'u32[144,128]{1,0:T(1,128)}', space=vmem, size = 0x12000, scoped, tag = 'internal scratch']
  #allocation2 [shape = 'f32[64,512]{1,0:T(8,128)}', space=vmem, size = 0x20000, scoped, tag = 'scratch operand']
  %s0 = inlined_call_operand.vmem [shape: f32[64,32], index: 0, kind: input, shape index: {}]
  %s1 = inlined_call_operand.hbm [shape: f32[32,512], index: 1, kind: input, shape index: {}]
  %s2 = inlined_call_operand.hbm [shape: f32[128,512], index: 2, kind: input, shape index: {}]
  %s3 = inlined_call_operand.vmem [shape: f32[1,512], index: 3, kind: input, shape index: {}]
  %s4 = inlined_call_operand.hbm [shape: f32[128,128], index: 4, kind: input, shape index: {}]
  %s5 = inlined_call_operand.vmem [shape: f32[1,128], index: 5, kind: input, shape index: {}]
  %s6 = inlined_call_operand.hbm [shape: f32[8,128], index: 6, kind: output, shape index: {}]
  %s7 = sld [smem:[#allocation0]]
  $region46: #{tpu_custom_call.1} parent=0
    _
  %s9 = ssub.s32 1, %s7
  %s10 = scalar_select 0, %s9, %s7
  $region1: #{tpu_custom_call.1} parent=0
    #allocation3 [shape = 'u8[65536]{0}', space=vmem, size = 0x10000, scoped, tag = 'input window, operand 1, single buffered']
    #allocation4 [shape = 's32[1]{0}', space=sflag, size = 0x4, scoped, tag = 'scoped memory for tpu_custom_call.1']
    #allocation5 [shape = 's32[1]{0}', space=sflag, size = 0x4, scoped, tag = 'scoped memory for tpu_custom_call.1']
    #allocation6 [shape = 'u8[262144]{0}', space=vmem, size = 0x40000, scoped, tag = 'input window, operand 2, single buffered']
    #allocation7 [shape = 's32[1]{0}', space=sflag, size = 0x4, scoped, tag = 'scoped memory for tpu_custom_call.1']
    #allocation8 [shape = 'u8[65536]{0}', space=vmem, size = 0x10000, scoped, tag = 'input window, operand 4, single buffered']
    #allocation9 [shape = 'u8[4096]{0}', space=vmem, size = 0x1000, scoped, tag = 'output window, operand 0, single buffered']
    %11 = vsyncpa [#allocation4], 0
    %12 = vsyncpa [#allocation7], 0
    %13 = vsyncpa [#allocation5], 0
    // Predicated region
    $region2: #{tpu_custom_call.1} parent=1 // pred_check
      _
    $region3: #{tpu_custom_call.1} parent=1 // pred_check_branch
      %15 = sbr.rel (0) target = $region5
    $region4: #{tpu_custom_call.1} parent=1 // pred_region
      _
    $region5: #{tpu_custom_call.1} parent=1 // pred_fallthru
      _
    // Predicated region
    $region6: #{tpu_custom_call.1} parent=1 // pred_check
      _
    $region7: #{tpu_custom_call.1} parent=1 // pred_check_branch
      %17 = sbr.rel (0) target = $region9
    $region8: #{tpu_custom_call.1} parent=1 // pred_region
      %s19 = ssub.s32 2048, 2048
      %20 = vsyncadd [#allocation4], %s19
      %s21 = sshll.u32 [#allocation3], 4
      %s22 = int_to_ptr.vmem [resolvable:$true] %s21
      %27 = dma.hbm_to_vmem [thread:$0]  %s1, 2048, %s22, [#allocation4], 512, 512, 32
    $region9: #{tpu_custom_call.1} parent=1 // pred_fallthru
      _
    // Predicated region
    $region10: #{tpu_custom_call.1} parent=1 // pred_check
      _
    $region11: #{tpu_custom_call.1} parent=1 // pred_check_branch
      %29 = sbr.rel (0) target = $region13
    $region12: #{tpu_custom_call.1} parent=1 // pred_region
      %s31 = ssub.s32 8192, 8192
      %32 = vsyncadd [#allocation7], %s31
      %s33 = sshll.u32 [#allocation6], 4
      %s34 = int_to_ptr.vmem [resolvable:$true] %s33
      %39 = dma.hbm_to_vmem [thread:$0]  %s2, 8192, %s34, [#allocation7], 512, 512, 32
    $region13: #{tpu_custom_call.1} parent=1 // pred_fallthru
      _
    // Predicated region
    $region14: #{tpu_custom_call.1} parent=1 // pred_check
      _
    $region15: #{tpu_custom_call.1} parent=1 // pred_check_branch
      %41 = sbr.rel (0) target = $region17
    $region16: #{tpu_custom_call.1} parent=1 // pred_region
      _
    $region17: #{tpu_custom_call.1} parent=1 // pred_fallthru
      _
    // Predicated region
    $region18: #{tpu_custom_call.1} parent=1 // pred_check
      _
    $region19: #{tpu_custom_call.1} parent=1 // pred_check_branch
      %43 = sbr.rel (0) target = $region21
    $region20: #{tpu_custom_call.1} parent=1 // pred_region
      %s45 = ssub.s32 2048, 2048
      %46 = vsyncadd [#allocation7], %s45
      %s47 = sshll.u32 [#allocation8], 4
      %s48 = int_to_ptr.vmem [resolvable:$true] %s47
      %53 = dma.hbm_to_vmem [thread:$0]  %s4, 2048, %s48, [#allocation7], 128, 128, 8
    $region21: #{tpu_custom_call.1} parent=1 // pred_fallthru
      _
    // Predicated region
    $region22: #{tpu_custom_call.1} parent=1 // pred_check
      _
    $region23: #{tpu_custom_call.1} parent=1 // pred_check_branch
      %55 = sbr.rel (0) target = $region25
    $region24: #{tpu_custom_call.1} parent=1 // pred_region
      _
    $region25: #{tpu_custom_call.1} parent=1 // pred_fallthru
      _
    // Predicated region
    $region26: #{tpu_custom_call.1} parent=1 // pred_check
      _
    $region27: #{tpu_custom_call.1} parent=1 // pred_check_branch
      %57 = sbr.rel (0) target = $region29
    $region28: #{tpu_custom_call.1} parent=1 // pred_region
      %58 = dma.done [#allocation4], 2048
    $region29: #{tpu_custom_call.1} parent=1 // pred_fallthru
      _
    // Predicated region
    $region30: #{tpu_custom_call.1} parent=1 // pred_check
      _
    $region31: #{tpu_custom_call.1} parent=1 // pred_check_branch
      %60 = sbr.rel (0) target = $region33
    $region32: #{tpu_custom_call.1} parent=1 // pred_region
      %61 = dma.done [#allocation7], 8192
    $region33: #{tpu_custom_call.1} parent=1 // pred_fallthru
      _
    // Predicated region
    $region34: #{tpu_custom_call.1} parent=1 // pred_check
      _
    $region35: #{tpu_custom_call.1} parent=1 // pred_check_branch
      %63 = sbr.rel (0) target = $region37
    $region36: #{tpu_custom_call.1} parent=1 // pred_region
      %64 = dma.done [#allocation7], 2048
    $region37: #{tpu_custom_call.1} parent=1 // pred_fallthru
      _
    %v65 = vld [vmem:[%s0] sm:$0xff]
    %v66 = vld [vmem:[%s0 + $0x8] sm:$0xff]
    %v67 = vld [vmem:[%s0 + $0x10] sm:$0xff]
    %v68 = vld [vmem:[%s0 + $0x18] sm:$0xff]
    %v69 = vld [vmem:[%s0 + $0x20] sm:$0xff]
    %v70 = vld [vmem:[%s0 + $0x28] sm:$0xff]
    %v71 = vld [vmem:[%s0 + $0x30] sm:$0xff]
    %v72 = vld [vmem:[%s0 + $0x38] sm:$0xff]
    %v73 = vld [vmem:[#allocation3] sm:$0xff]
    %v74 = vld [vmem:[#allocation3 + $0x8] sm:$0xff]
    %v75 = vld [vmem:[#allocation3 + $0x10] sm:$0xff]
    %v76 = vld [vmem:[#allocation3 + $0x18] sm:$0xff]
    %v77 = vld [vmem:[#allocation3 + $0x20] sm:$0xff]
    %v78 = vld [vmem:[#allocation3 + $0x28] sm:$0xff]
    %v79 = vld [vmem:[#allocation3 + $0x30] sm:$0xff]
    %v80 = vld [vmem:[#allocation3 + $0x38] sm:$0xff]
    %v81 = vld [vmem:[#allocation3 + $0x40] sm:$0xff]
    %v82 = vld [vmem:[#allocation3 + $0x48] sm:$0xff]
    %v83 = vld [vmem:[#allocation3 + $0x50] sm:$0xff]
    %v84 = vld [vmem:[#allocation3 + $0x58] sm:$0xff]
    %v85 = vld [vmem:[#allocation3 + $0x60] sm:$0xff]
    %v86 = vld [vmem:[#allocation3 + $0x68] sm:$0xff]
    %v87 = vld [vmem:[#allocation3 + $0x70] sm:$0xff]
    %v88 = vld [vmem:[#allocation3 + $0x78] sm:$0xff]
    %v89 = vld [vmem:[%s3] sm:$0xf]
    %v91 = vlaneseq
    %v92 = vshrl.u32 %v91, 7
    %v93 = vsub.s32 0, %v92
    %v94 = vrot.slane %v89, %v93
    %v95 = vlaneseq
    %v96 = vshrl.u32 %v95, 7
    %v97 = vsub.s32 1, %v96
    %v98 = vrot.slane %v89, %v97
    %v99 = vlaneseq
    %v100 = vshrl.u32 %v99, 7
    %v101 = vsub.s32 2, %v100
    %v102 = vrot.slane %v89, %v101
    %v103 = vlaneseq
    %v104 = vshrl.u32 %v103, 7
    %v105 = vsub.s32 3, %v104
    %v106 = vrot.slane %v89, %v105
    %vm111 = vcmask 261120
    %v113 = vsel %vm111, %v65, 0
    %v116 = vsel %vm111, %v66, 0
    %v119 = vsel %vm111, %v67, 0
    %v122 = vsel %vm111, %v68, 0
    %v125 = vsel %vm111, %v69, 0
    %v128 = vsel %vm111, %v70, 0
    %v131 = vsel %vm111, %v71, 0
    %v134 = vsel %vm111, %v72, 0
    %136 = vmatprep.subr.mxu0 %v74
    %137 = vmatpush1.msra.mxu0 %v73
    %138 = vmatprep.subr.mxu0 %v78
    %139 = vmatpush1.msra.mxu0 %v77
    %140 = vmatprep.subr.mxu0 %v82
    %141 = vmatpush1.msra.mxu0 %v81
    %142 = vmatprep.subr.mxu0 %v86
    %143 = vmatpush1.msra.mxu0 %v85
    %144 = vmatprep.subr.mxu0 0.0
    %145 = vmatpush1.msra.mxu0 0.0
    %146 = vmatprep.subr.mxu0 0.0
    %147 = vmatpush1.msra.mxu0 0.0
    %148 = vmatprep.subr.mxu0 0.0
    %149 = vmatpush1.msra.mxu0 0.0
    %150 = vmatprep.subr.mxu0 0.0
    %151 = vmatpush1.msra.mxu0 0.0
    %152 = vmatprep.subr.mxu0 0.0
    %153 = vmatpush1.msra.mxu0 0.0
    %154 = vmatprep.subr.mxu0 0.0
    %155 = vmatpush1.msra.mxu0 0.0
    %156 = vmatprep.subr.mxu0 0.0
    %157 = vmatpush1.msra.mxu0 0.0
    %158 = vmatprep.subr.mxu0 0.0
    %159 = vmatpush1.msra.mxu0 0.0
    %160 = vmatprep.subr.mxu0 0.0
    %161 = vmatpush1.msra.mxu0 0.0
    %162 = vmatprep.subr.mxu0 0.0
    %163 = vmatpush1.msra.mxu0 0.0
    %164 = vmatprep.subr.mxu0 0.0
    %165 = vmatpush1.msra.mxu0 0.0
    %166 = vmatprep.subr.mxu0 0.0
    %167 = vmatpush1.msra.mxu0 0.0
    %168 = vmatprep.subr.mxu0 0.0
    %169 = vmatpush1.msra.mxu0 0.0
    %170 = vmatprep.subr.mxu0 0.0
    %171 = vmatpush1.msra.mxu0 0.0
    %172 = vmatprep.subr.mxu0 0.0
    %173 = vmatpush1.msra.mxu0 0.0
    %174 = vmatprep.subr.mxu0 0.0
    %175 = vmatpush1.msra.mxu0 0.0
    %176 = vmatprep.subr.mxu0 0.0
    %177 = vmatpush1.msra.mxu0 0.0
    %178 = vmatprep.subr.mxu0 0.0
    %179 = vmatpush1.msra.mxu0 0.0
    %180 = vmatprep.subr.mxu0 0.0
    %181 = vmatpush1.msra.mxu0 0.0
    %182 = vmatprep.subr.mxu0 0.0
    %183 = vmatpush1.msra.mxu0 0.0
    %184 = vmatprep.subr.mxu0 0.0
    %185 = vmatpush1.msra.mxu0 0.0
    %186 = vmatprep.subr.mxu0 0.0
    %187 = vmatpush1.msra.mxu0 0.0
    %188 = vmatprep.subr.mxu0 0.0
    %189 = vmatpush1.msra.mxu0 0.0
    %190 = vmatprep.subr.mxu0 0.0
    %191 = vmatpush1.msra.mxu0 0.0
    %192 = vmatprep.subr.mxu0 0.0
    %193 = vmatpush1.msra.mxu0 0.0
    %194 = vmatprep.subr.mxu0 0.0
    %195 = vmatpush1.msra.mxu0 0.0
    %196 = vmatprep.subr.mxu0 0.0
    %197 = vmatpush1.msra.mxu0 0.0
    %198 = vmatprep.subr.mxu0 0.0
    %199 = vmatpush1.msra.mxu0 0.0
    %200 = vmatprep.mubr.f32.mxu0 0.0
    %201 = vmatmul.mubr.f32.gmra.mrb[0].mxu0 %v113
    %v202 = vpop.f32.mrb[0].mxu0
    %v203 = vadd.f32 %v94, %v202
    %v204 = vpop.f32.mrb[0].mxu0
    %v205 = vadd.f32 %v98, %v204
    %206 = vmatprep.mubr.f32.mxu0 0.0
    %207 = vmatmul.mubr.f32.gmra.mrb[0].mxu0 %v116
    %v208 = vpop.f32.mrb[0].mxu0
    %v209 = vadd.f32 %v94, %v208
    %v210 = vpop.f32.mrb[0].mxu0
    %v211 = vadd.f32 %v98, %v210
    %212 = vmatprep.mubr.f32.mxu0 0.0
    %213 = vmatmul.mubr.f32.gmra.mrb[0].mxu0 %v119
    %v214 = vpop.f32.mrb[0].mxu0
    %v215 = vadd.f32 %v94, %v214
    %v216 = vpop.f32.mrb[0].mxu0
    %v217 = vadd.f32 %v98, %v216
    %218 = vmatprep.mubr.f32.mxu0 0.0
    %219 = vmatmul.mubr.f32.gmra.mrb[0].mxu0 %v122
    %v220 = vpop.f32.mrb[0].mxu0
    %v221 = vadd.f32 %v94, %v220
    %v222 = vpop.f32.mrb[0].mxu0
    %v223 = vadd.f32 %v98, %v222
    %224 = vmatprep.mubr.f32.mxu0 0.0
    %225 = vmatmul.mubr.f32.gmra.mrb[0].mxu0 %v125
    %v226 = vpop.f32.mrb[0].mxu0
    %v227 = vadd.f32 %v94, %v226
    %v228 = vpop.f32.mrb[0].mxu0
    %v229 = vadd.f32 %v98, %v228
    %230 = vmatprep.mubr.f32.mxu0 0.0
    %231 = vmatmul.mubr.f32.gmra.mrb[0].mxu0 %v128
    %v232 = vpop.f32.mrb[0].mxu0
    %v233 = vadd.f32 %v94, %v232
    %v234 = vpop.f32.mrb[0].mxu0
    %v235 = vadd.f32 %v98, %v234
    %236 = vmatprep.mubr.f32.mxu0 0.0
    %237 = vmatmul.mubr.f32.gmra.mrb[0].mxu0 %v131
    %v238 = vpop.f32.mrb[0].mxu0
    %v239 = vadd.f32 %v94, %v238
    %v240 = vpop.f32.mrb[0].mxu0
    %v241 = vadd.f32 %v98, %v240
    %242 = vmatprep.mubr.f32.mxu0 0.0
    %243 = vmatmul.mubr.f32.gmra.mrb[0].mxu0 %v134
    %v244 = vpop.f32.mrb[0].mxu0
    %v245 = vadd.f32 %v94, %v244
    %v246 = vpop.f32.mrb[0].mxu0
    %v247 = vadd.f32 %v98, %v246
    %248 = vdwg.mxu0
    %249 = vmatprep.subr.mxu0 %v76
    %250 = vmatpush1.msra.mxu0 %v75
    %251 = vmatprep.subr.mxu0 %v80
    %252 = vmatpush1.msra.mxu0 %v79
    %253 = vmatprep.subr.mxu0 %v84
    %254 = vmatpush1.msra.mxu0 %v83
    %255 = vmatprep.subr.mxu0 %v88
    %256 = vmatpush1.msra.mxu0 %v87
    %257 = vmatprep.subr.mxu0 0.0
    %258 = vmatpush1.msra.mxu0 0.0
    %259 = vmatprep.subr.mxu0 0.0
    %260 = vmatpush1.msra.mxu0 0.0
    %261 = vmatprep.subr.mxu0 0.0
    %262 = vmatpush1.msra.mxu0 0.0
    %263 = vmatprep.subr.mxu0 0.0
    %264 = vmatpush1.msra.mxu0 0.0
    %265 = vmatprep.subr.mxu0 0.0
    %266 = vmatpush1.msra.mxu0 0.0
    %267 = vmatprep.subr.mxu0 0.0
    %268 = vmatpush1.msra.mxu0 0.0
    %269 = vmatprep.subr.mxu0 0.0
    %270 = vmatpush1.msra.mxu0 0.0
    %271 = vmatprep.subr.mxu0 0.0
    %272 = vmatpush1.msra.mxu0 0.0
    %273 = vmatprep.subr.mxu0 0.0
    %274 = vmatpush1.msra.mxu0 0.0
    %275 = vmatprep.subr.mxu0 0.0
    %276 = vmatpush1.msra.mxu0 0.0
    %277 = vmatprep.subr.mxu0 0.0
    %278 = vmatpush1.msra.mxu0 0.0
    %279 = vmatprep.subr.mxu0 0.0
    %280 = vmatpush1.msra.mxu0 0.0
    %281 = vmatprep.subr.mxu0 0.0
    %282 = vmatpush1.msra.mxu0 0.0
    %283 = vmatprep.subr.mxu0 0.0
    %284 = vmatpush1.msra.mxu0 0.0
    %285 = vmatprep.subr.mxu0 0.0
    %286 = vmatpush1.msra.mxu0 0.0
    %287 = vmatprep.subr.mxu0 0.0
    %288 = vmatpush1.msra.mxu0 0.0
    %289 = vmatprep.subr.mxu0 0.0
    %290 = vmatpush1.msra.mxu0 0.0
    %291 = vmatprep.subr.mxu0 0.0
    %292 = vmatpush1.msra.mxu0 0.0
    %293 = vmatprep.subr.mxu0 0.0
    %294 = vmatpush1.msra.mxu0 0.0
    %295 = vmatprep.subr.mxu0 0.0
    %296 = vmatpush1.msra.mxu0 0.0
    %297 = vmatprep.subr.mxu0 0.0
    %298 = vmatpush1.msra.mxu0 0.0
    %299 = vmatprep.subr.mxu0 0.0
    %300 = vmatpush1.msra.mxu0 0.0
    %301 = vmatprep.subr.mxu0 0.0
    %302 = vmatpush1.msra.mxu0 0.0
    %303 = vmatprep.subr.mxu0 0.0
    %304 = vmatpush1.msra.mxu0 0.0
    %305 = vmatprep.subr.mxu0 0.0
    %306 = vmatpush1.msra.mxu0 0.0
    %307 = vmatprep.subr.mxu0 0.0
    %308 = vmatpush1.msra.mxu0 0.0
    %309 = vmatprep.subr.mxu0 0.0
    %310 = vmatpush1.msra.mxu0 0.0
    %311 = vmatprep.subr.mxu0 0.0
    %312 = vmatpush1.msra.mxu0 0.0
    %313 = vmatprep.mubr.f32.mxu0 0.0
    %314 = vmatmul.mubr.f32.gmra.mrb[0].mxu0 %v113
    %v315 = vpop.f32.mrb[0].mxu0
    %v316 = vadd.f32 %v102, %v315
    %v317 = vpop.f32.mrb[0].mxu0
    %v318 = vadd.f32 %v106, %v317
    %319 = vmatprep.mubr.f32.mxu0 0.0
    %320 = vmatmul.mubr.f32.gmra.mrb[0].mxu0 %v116
    %v321 = vpop.f32.mrb[0].mxu0
    %v322 = vadd.f32 %v102, %v321
    %v323 = vpop.f32.mrb[0].mxu0
    %v324 = vadd.f32 %v106, %v323
    %325 = vmatprep.mubr.f32.mxu0 0.0
    %326 = vmatmul.mubr.f32.gmra.mrb[0].mxu0 %v119
    %v327 = vpop.f32.mrb[0].mxu0
    %v328 = vadd.f32 %v102, %v327
    %v329 = vpop.f32.mrb[0].mxu0
    %v330 = vadd.f32 %v106, %v329
    %331 = vmatprep.mubr.f32.mxu0 0.0
    %332 = vmatmul.mubr.f32.gmra.mrb[0].mxu0 %v122
    %v333 = vpop.f32.mrb[0].mxu0
    %v334 = vadd.f32 %v102, %v333
    %v335 = vpop.f32.mrb[0].mxu0
    %v336 = vadd.f32 %v106, %v335
    %337 = vmatprep.mubr.f32.mxu0 0.0
    %338 = vmatmul.mubr.f32.gmra.mrb[0].mxu0 %v125
    %v339 = vpop.f32.mrb[0].mxu0
    %v340 = vadd.f32 %v102, %v339
    %v341 = vpop.f32.mrb[0].mxu0
    %v342 = vadd.f32 %v106, %v341
    %343 = vmatprep.mubr.f32.mxu0 0.0
    %344 = vmatmul.mubr.f32.gmra.mrb[0].mxu0 %v128
    %v345 = vpop.f32.mrb[0].mxu0
    %v346 = vadd.f32 %v102, %v345
    %v347 = vpop.f32.mrb[0].mxu0
    %v348 = vadd.f32 %v106, %v347
    %349 = vmatprep.mubr.f32.mxu0 0.0
    %350 = vmatmul.mubr.f32.gmra.mrb[0].mxu0 %v131
    %v351 = vpop.f32.mrb[0].mxu0
    %v352 = vadd.f32 %v102, %v351
    %v353 = vpop.f32.mrb[0].mxu0
    %v354 = vadd.f32 %v106, %v353
    %355 = vmatprep.mubr.f32.mxu0 0.0
    %356 = vmatmul.mubr.f32.gmra.mrb[0].mxu0 %v134
    %v357 = vpop.f32.mrb[0].mxu0
    %v358 = vadd.f32 %v102, %v357
    %v359 = vpop.f32.mrb[0].mxu0
    %v360 = vadd.f32 %v106, %v359
    %361 = vdwg.mxu0
    %362 = vst [vmem:[#allocation2] sm:$0xff] %v203
    %363 = vst [vmem:[#allocation2 + $0x8] sm:$0xff] %v205
    %364 = vst [vmem:[#allocation2 + $0x10] sm:$0xff] %v316
    %365 = vst [vmem:[#allocation2 + $0x18] sm:$0xff] %v318
    %366 = vst [vmem:[#allocation2 + $0x20] sm:$0xff] %v209
    %367 = vst [vmem:[#allocation2 + $0x28] sm:$0xff] %v211
    %368 = vst [vmem:[#allocation2 + $0x30] sm:$0xff] %v322
    %369 = vst [vmem:[#allocation2 + $0x38] sm:$0xff] %v324
    %370 = vst [vmem:[#allocation2 + $0x40] sm:$0xff] %v215
    %371 = vst [vmem:[#allocation2 + $0x48] sm:$0xff] %v217
    %372 = vst [vmem:[#allocation2 + $0x50] sm:$0xff] %v328
    %373 = vst [vmem:[#allocation2 + $0x58] sm:$0xff] %v330
    %374 = vst [vmem:[#allocation2 + $0x60] sm:$0xff] %v221
    %375 = vst [vmem:[#allocation2 + $0x68] sm:$0xff] %v223
    %376 = vst [vmem:[#allocation2 + $0x70] sm:$0xff] %v334
    %377 = vst [vmem:[#allocation2 + $0x78] sm:$0xff] %v336
    %378 = vst [vmem:[#allocation2 + $0x80] sm:$0xff] %v227
    %379 = vst [vmem:[#allocation2 + $0x88] sm:$0xff] %v229
    %380 = vst [vmem:[#allocation2 + $0x90] sm:$0xff] %v340
    %381 = vst [vmem:[#allocation2 + $0x98] sm:$0xff] %v342
    %382 = vst [vmem:[#allocation2 + $0xa0] sm:$0xff] %v233
    %383 = vst [vmem:[#allocation2 + $0xa8] sm:$0xff] %v235
    %384 = vst [vmem:[#allocation2 + $0xb0] sm:$0xff] %v346
    %385 = vst [vmem:[#allocation2 + $0xb8] sm:$0xff] %v348
    %386 = vst [vmem:[#allocation2 + $0xc0] sm:$0xff] %v239
    %387 = vst [vmem:[#allocation2 + $0xc8] sm:$0xff] %v241
    %388 = vst [vmem:[#allocation2 + $0xd0] sm:$0xff] %v352
    %389 = vst [vmem:[#allocation2 + $0xd8] sm:$0xff] %v354
    %390 = vst [vmem:[#allocation2 + $0xe0] sm:$0xff] %v245
    %391 = vst [vmem:[#allocation2 + $0xe8] sm:$0xff] %v247
    %392 = vst [vmem:[#allocation2 + $0xf0] sm:$0xff] %v358
    %393 = vst [vmem:[#allocation2 + $0xf8] sm:$0xff] %v360
    %s394 = smul.u32 0, 4
    %s395 = smul.addr %s394, 8
    %s396 = scalar_lea.vmem [#allocation2], %s395
    %v397 = vld [vmem:[%s396] sm:$0xff]
    %v398 = vld [vmem:[%s396 + $0x8] sm:$0xff]
    %v399 = vld [vmem:[%s396 + $0x10] sm:$0xff]
    %v400 = vld [vmem:[%s396 + $0x18] sm:$0xff]
    %v401 = vld [vmem:[#allocation6] sm:$0xff]
    %v402 = vld [vmem:[#allocation6 + $0x8] sm:$0xff]
    %v403 = vld [vmem:[#allocation6 + $0x10] sm:$0xff]
    %v404 = vld [vmem:[#allocation6 + $0x18] sm:$0xff]
    %v405 = vld [vmem:[#allocation6 + $0x20] sm:$0xff]
    %v406 = vld [vmem:[#allocation6 + $0x28] sm:$0xff]
    %v407 = vld [vmem:[#allocation6 + $0x30] sm:$0xff]
    %v408 = vld [vmem:[#allocation6 + $0x38] sm:$0xff]
    %v409 = vld [vmem:[#allocation6 + $0x40] sm:$0xff]
    %v410 = vld [vmem:[#allocation6 + $0x48] sm:$0xff]
    %v411 = vld [vmem:[#allocation6 + $0x50] sm:$0xff]
    %v412 = vld [vmem:[#allocation6 + $0x58] sm:$0xff]
    %v413 = vld [vmem:[#allocation6 + $0x60] sm:$0xff]
    %v414 = vld [vmem:[#allocation6 + $0x68] sm:$0xff]
    %v415 = vld [vmem:[#allocation6 + $0x70] sm:$0xff]
    %v416 = vld [vmem:[#allocation6 + $0x78] sm:$0xff]
    %v417 = vld [vmem:[#allocation6 + $0x80] sm:$0xff]
    %v418 = vld [vmem:[#allocation6 + $0x88] sm:$0xff]
    %v419 = vld [vmem:[#allocation6 + $0x90] sm:$0xff]
    %v420 = vld [vmem:[#allocation6 + $0x98] sm:$0xff]
    %v421 = vld [vmem:[#allocation6 + $0xa0] sm:$0xff]
    %v422 = vld [vmem:[#allocation6 + $0xa8] sm:$0xff]
    %v423 = vld [vmem:[#allocation6 + $0xb0] sm:$0xff]
    %v424 = vld [vmem:[#allocation6 + $0xb8] sm:$0xff]
    %v425 = vld [vmem:[#allocation6 + $0xc0] sm:$0xff]
    %v426 = vld [vmem:[#allocation6 + $0xc8] sm:$0xff]
    %v427 = vld [vmem:[#allocation6 + $0xd0] sm:$0xff]
    %v428 = vld [vmem:[#allocation6 + $0xd8] sm:$0xff]
    %v429 = vld [vmem:[#allocation6 + $0xe0] sm:$0xff]
    %v430 = vld [vmem:[#allocation6 + $0xe8] sm:$0xff]
    %v431 = vld [vmem:[#allocation6 + $0xf0] sm:$0xff]
    %v432 = vld [vmem:[#allocation6 + $0xf8] sm:$0xff]
    %v433 = vld [vmem:[#allocation6 + $0x100] sm:$0xff]
    %v434 = vld [vmem:[#allocation6 + $0x108] sm:$0xff]
    %v435 = vld [vmem:[#allocation6 + $0x110] sm:$0xff]
    %v436 = vld [vmem:[#allocation6 + $0x118] sm:$0xff]
    %v437 = vld [vmem:[#allocation6 + $0x120] sm:$0xff]
    %v438 = vld [vmem:[#allocation6 + $0x128] sm:$0xff]
    %v439 = vld [vmem:[#allocation6 + $0x130] sm:$0xff]
    %v440 = vld [vmem:[#allocation6 + $0x138] sm:$0xff]
    %v441 = vld [vmem:[#allocation6 + $0x140] sm:$0xff]
    %v442 = vld [vmem:[#allocation6 + $0x148] sm:$0xff]
    %v443 = vld [vmem:[#allocation6 + $0x150] sm:$0xff]
    %v444 = vld [vmem:[#allocation6 + $0x158] sm:$0xff]
    %v445 = vld [vmem:[#allocation6 + $0x160] sm:$0xff]
    %v446 = vld [vmem:[#allocation6 + $0x168] sm:$0xff]
    %v447 = vld [vmem:[#allocation6 + $0x170] sm:$0xff]
    %v448 = vld [vmem:[#allocation6 + $0x178] sm:$0xff]
    %v449 = vld [vmem:[#allocation6 + $0x180] sm:$0xff]
    %v450 = vld [vmem:[#allocation6 + $0x188] sm:$0xff]
    %v451 = vld [vmem:[#allocation6 + $0x190] sm:$0xff]
    %v452 = vld [vmem:[#allocation6 + $0x198] sm:$0xff]
    %v453 = vld [vmem:[#allocation6 + $0x1a0] sm:$0xff]
    %v454 = vld [vmem:[#allocation6 + $0x1a8] sm:$0xff]
    %v455 = vld [vmem:[#allocation6 + $0x1b0] sm:$0xff]
    %v456 = vld [vmem:[#allocation6 + $0x1b8] sm:$0xff]
    %v457 = vld [vmem:[#allocation6 + $0x1c0] sm:$0xff]
    %v458 = vld [vmem:[#allocation6 + $0x1c8] sm:$0xff]
    %v459 = vld [vmem:[#allocation6 + $0x1d0] sm:$0xff]
    %v460 = vld [vmem:[#allocation6 + $0x1d8] sm:$0xff]
    %v461 = vld [vmem:[#allocation6 + $0x1e0] sm:$0xff]
    %v462 = vld [vmem:[#allocation6 + $0x1e8] sm:$0xff]
    %v463 = vld [vmem:[#allocation6 + $0x1f0] sm:$0xff]
    %v464 = vld [vmem:[#allocation6 + $0x1f8] sm:$0xff]
    %465 = vmatprep.subr.mxu0 %v402
    %466 = vmatpush1.msra.mxu0 %v401
    %467 = vmatprep.subr.mxu0 %v406
    %468 = vmatpush1.msra.mxu0 %v405
    %469 = vmatprep.subr.mxu0 %v410
    %470 = vmatpush1.msra.mxu0 %v409
    %471 = vmatprep.subr.mxu0 %v414
    %472 = vmatpush1.msra.mxu0 %v413
    %473 = vmatprep.subr.mxu0 %v418
    %474 = vmatpush1.msra.mxu0 %v417
    %475 = vmatprep.subr.mxu0 %v422
    %476 = vmatpush1.msra.mxu0 %v421
    %477 = vmatprep.subr.mxu0 %v426
    %478 = vmatpush1.msra.mxu0 %v425
    %479 = vmatprep.subr.mxu0 %v430
    %480 = vmatpush1.msra.mxu0 %v429
    %481 = vmatprep.subr.mxu0 %v434
    %482 = vmatpush1.msra.mxu0 %v433
    %483 = vmatprep.subr.mxu0 %v438
    %484 = vmatpush1.msra.mxu0 %v437
    %485 = vmatprep.subr.mxu0 %v442
    %486 = vmatpush1.msra.mxu0 %v441
    %487 = vmatprep.subr.mxu0 %v446
    %488 = vmatpush1.msra.mxu0 %v445
    %489 = vmatprep.subr.mxu0 %v450
    %490 = vmatpush1.msra.mxu0 %v449
    %491 = vmatprep.subr.mxu0 %v454
    %492 = vmatpush1.msra.mxu0 %v453
    %493 = vmatprep.subr.mxu0 %v458
    %494 = vmatpush1.msra.mxu0 %v457
    %495 = vmatprep.subr.mxu0 %v462
    %496 = vmatpush1.msra.mxu0 %v461
    %497 = vmatprep.subr.mxu0 0.0
    %498 = vmatpush1.msra.mxu0 0.0
    %499 = vmatprep.subr.mxu0 0.0
    %500 = vmatpush1.msra.mxu0 0.0
    %501 = vmatprep.subr.mxu0 0.0
    %502 = vmatpush1.msra.mxu0 0.0
    %503 = vmatprep.subr.mxu0 0.0
    %504 = vmatpush1.msra.mxu0 0.0
    %505 = vmatprep.subr.mxu0 0.0
    %506 = vmatpush1.msra.mxu0 0.0
    %507 = vmatprep.subr.mxu0 0.0
    %508 = vmatpush1.msra.mxu0 0.0
    %509 = vmatprep.subr.mxu0 0.0
    %510 = vmatpush1.msra.mxu0 0.0
    %511 = vmatprep.subr.mxu0 0.0
    %512 = vmatpush1.msra.mxu0 0.0
    %513 = vmatprep.subr.mxu0 0.0
    %514 = vmatpush1.msra.mxu0 0.0
    %515 = vmatprep.subr.mxu0 0.0
    %516 = vmatpush1.msra.mxu0 0.0
    %517 = vmatprep.subr.mxu0 0.0
    %518 = vmatpush1.msra.mxu0 0.0
    %519 = vmatprep.subr.mxu0 0.0
    %520 = vmatpush1.msra.mxu0 0.0
    %521 = vmatprep.subr.mxu0 0.0
    %522 = vmatpush1.msra.mxu0 0.0
    %523 = vmatprep.subr.mxu0 0.0
    %524 = vmatpush1.msra.mxu0 0.0
    %525 = vmatprep.subr.mxu0 0.0
    %526 = vmatpush1.msra.mxu0 0.0
    %527 = vmatprep.subr.mxu0 0.0
    %528 = vmatpush1.msra.mxu0 0.0
    %529 = vmatprep.mubr.f32.mxu0 0.0
    %530 = vmatmul.mubr.f32.gmra.mrb[0].mxu0 0.0
    %v531 = vpop.f32.mrb[0].mxu0
    %v532 = vadd.f32 0.0, %v531
    %v533 = vpop.f32.mrb[0].mxu0
    %v534 = vadd.f32 0.0, %v533
    %535 = vdwg.mxu0
    %536 = vmatprep.subr.mxu0 %v404
    %537 = vmatpush1.msra.mxu0 %v403
    %538 = vmatprep.subr.mxu0 %v408
    %539 = vmatpush1.msra.mxu0 %v407
    %540 = vmatprep.subr.mxu0 %v412
    %541 = vmatpush1.msra.mxu0 %v411
    %542 = vmatprep.subr.mxu0 %v416
    %543 = vmatpush1.msra.mxu0 %v415
    %544 = vmatprep.subr.mxu0 %v420
    %545 = vmatpush1.msra.mxu0 %v419
    %546 = vmatprep.subr.mxu0 %v424
    %547 = vmatpush1.msra.mxu0 %v423
    %548 = vmatprep.subr.mxu0 %v428
    %549 = vmatpush1.msra.mxu0 %v427
    %550 = vmatprep.subr.mxu0 %v432
    %551 = vmatpush1.msra.mxu0 %v431
    %552 = vmatprep.subr.mxu0 %v436
    %553 = vmatpush1.msra.mxu0 %v435
    %554 = vmatprep.subr.mxu0 %v440
    %555 = vmatpush1.msra.mxu0 %v439
    %556 = vmatprep.subr.mxu0 %v444
    %557 = vmatpush1.msra.mxu0 %v443
    %558 = vmatprep.subr.mxu0 %v448
    %559 = vmatpush1.msra.mxu0 %v447
    %560 = vmatprep.subr.mxu0 %v452
    %561 = vmatpush1.msra.mxu0 %v451
    %562 = vmatprep.subr.mxu0 %v456
    %563 = vmatpush1.msra.mxu0 %v455
    %564 = vmatprep.subr.mxu0 %v460
    %565 = vmatpush1.msra.mxu0 %v459
    %566 = vmatprep.subr.mxu0 %v464
    %567 = vmatpush1.msra.mxu0 %v463
    %568 = vmatprep.subr.mxu0 0.0
    %569 = vmatpush1.msra.mxu0 0.0
    %570 = vmatprep.subr.mxu0 0.0
    %571 = vmatpush1.msra.mxu0 0.0
    %572 = vmatprep.subr.mxu0 0.0
    %573 = vmatpush1.msra.mxu0 0.0
    %574 = vmatprep.subr.mxu0 0.0
    %575 = vmatpush1.msra.mxu0 0.0
    %576 = vmatprep.subr.mxu0 0.0
    %577 = vmatpush1.msra.mxu0 0.0
    %578 = vmatprep.subr.mxu0 0.0
    %579 = vmatpush1.msra.mxu0 0.0
    %580 = vmatprep.subr.mxu0 0.0
    %581 = vmatpush1.msra.mxu0 0.0
    %582 = vmatprep.subr.mxu0 0.0
    %583 = vmatpush1.msra.mxu0 0.0
    %584 = vmatprep.subr.mxu0 0.0
    %585 = vmatpush1.msra.mxu0 0.0
    %586 = vmatprep.subr.mxu0 0.0
    %587 = vmatpush1.msra.mxu0 0.0
    %588 = vmatprep.subr.mxu0 0.0
    %589 = vmatpush1.msra.mxu0 0.0
    %590 = vmatprep.subr.mxu0 0.0
    %591 = vmatpush1.msra.mxu0 0.0
    %592 = vmatprep.subr.mxu0 0.0
    %593 = vmatpush1.msra.mxu0 0.0
    %594 = vmatprep.subr.mxu0 0.0
    %595 = vmatpush1.msra.mxu0 0.0
    %596 = vmatprep.subr.mxu0 0.0
    %597 = vmatpush1.msra.mxu0 0.0
    %598 = vmatprep.subr.mxu0 0.0
    %599 = vmatpush1.msra.mxu0 0.0
    %600 = vmatprep.mubr.f32.mxu0 0.0
    %601 = vmatmul.mubr.f32.gmra.mrb[0].mxu0 0.0
    %v602 = vpop.f32.mrb[0].mxu0
    %v603 = vadd.f32 0.0, %v602
    %v604 = vpop.f32.mrb[0].mxu0
    %v605 = vadd.f32 0.0, %v604
    %606 = vdwg.mxu0
    %v607 = vadd.f32 %v397, %v532
    %v608 = vadd.f32 %v398, %v534
    %v609 = vadd.f32 %v399, %v603
    %v610 = vadd.f32 %v400, %v605
    %v611 = vmul.f32 %v607, 0.5
    %v612 = vtanh.pop %v611
    %v613 = vmul.f32 %v612, 0.5
    %v614 = vadd.f32 %v613, 0.5
    %v615 = vmul.f32 %v608, 0.5
    %v616 = vtanh.pop %v615
    %v617 = vmul.f32 %v616, 0.5
    %v618 = vadd.f32 %v617, 0.5
    %v619 = vtanh.pop %v609
    %v620 = vmul.f32 %v610, 0.5
    %v621 = vtanh.pop %v620
    %v622 = vmul.f32 %v621, 0.5
    %v623 = vadd.f32 %v622, 0.5
    %v624 = vmul.f32 %v618, 0.0
    %v625 = vmul.f32 %v614, %v619
    %v626 = vadd.f32 %v624, %v625
    %v627 = vtanh.pop %v626
    %v628 = vmul.f32 %v623, %v627
    %s629 = smul.u32 1, 4
    %s630 = smul.addr %s629, 8
    %s631 = scalar_lea.vmem [#allocation2], %s630
    %v632 = vld [vmem:[%s631] sm:$0xff]
    %v633 = vld [vmem:[%s631 + $0x8] sm:$0xff]
    %v634 = vld [vmem:[%s631 + $0x10] sm:$0xff]
    %v635 = vld [vmem:[%s631 + $0x18] sm:$0xff]
    %636 = vmatprep.subr.mxu0 %v402
    %637 = vmatpush1.msra.mxu0 %v401
    %638 = vmatprep.subr.mxu0 %v406
    %639 = vmatpush1.msra.mxu0 %v405
    %640 = vmatprep.subr.mxu0 %v410
    %641 = vmatpush1.msra.mxu0 %v409
    %642 = vmatprep.subr.mxu0 %v414
    %643 = vmatpush1.msra.mxu0 %v413
    %644 = vmatprep.subr.mxu0 %v418
    %645 = vmatpush1.msra.mxu0 %v417
    %646 = vmatprep.subr.mxu0 %v422
    %647 = vmatpush1.msra.mxu0 %v421
    %648 = vmatprep.subr.mxu0 %v426
    %649 = vmatpush1.msra.mxu0 %v425
    %650 = vmatprep.subr.mxu0 %v430
    %651 = vmatpush1.msra.mxu0 %v429
    %652 = vmatprep.subr.mxu0 %v434
    %653 = vmatpush1.msra.mxu0 %v433
    %654 = vmatprep.subr.mxu0 %v438
    %655 = vmatpush1.msra.mxu0 %v437
    %656 = vmatprep.subr.mxu0 %v442
    %657 = vmatpush1.msra.mxu0 %v441
    %658 = vmatprep.subr.mxu0 %v446
    %659 = vmatpush1.msra.mxu0 %v445
    %660 = vmatprep.subr.mxu0 %v450
    %661 = vmatpush1.msra.mxu0 %v449
    %662 = vmatprep.subr.mxu0 %v454
    %663 = vmatpush1.msra.mxu0 %v453
    %664 = vmatprep.subr.mxu0 %v458
    %665 = vmatpush1.msra.mxu0 %v457
    %666 = vmatprep.subr.mxu0 %v462
    %667 = vmatpush1.msra.mxu0 %v461
    %668 = vmatprep.subr.mxu0 0.0
    %669 = vmatpush1.msra.mxu0 0.0
    %670 = vmatprep.subr.mxu0 0.0
    %671 = vmatpush1.msra.mxu0 0.0
    %672 = vmatprep.subr.mxu0 0.0
    %673 = vmatpush1.msra.mxu0 0.0
    %674 = vmatprep.subr.mxu0 0.0
    %675 = vmatpush1.msra.mxu0 0.0
    %676 = vmatprep.subr.mxu0 0.0
    %677 = vmatpush1.msra.mxu0 0.0
    %678 = vmatprep.subr.mxu0 0.0
    %679 = vmatpush1.msra.mxu0 0.0
    %680 = vmatprep.subr.mxu0 0.0
    %681 = vmatpush1.msra.mxu0 0.0
    %682 = vmatprep.subr.mxu0 0.0
    %683 = vmatpush1.msra.mxu0 0.0
    %684 = vmatprep.subr.mxu0 0.0
    %685 = vmatpush1.msra.mxu0 0.0
    %686 = vmatprep.subr.mxu0 0.0
    %687 = vmatpush1.msra.mxu0 0.0
    %688 = vmatprep.subr.mxu0 0.0
    %689 = vmatpush1.msra.mxu0 0.0
    %690 = vmatprep.subr.mxu0 0.0
    %691 = vmatpush1.msra.mxu0 0.0
    %692 = vmatprep.subr.mxu0 0.0
    %693 = vmatpush1.msra.mxu0 0.0
    %694 = vmatprep.subr.mxu0 0.0
    %695 = vmatpush1.msra.mxu0 0.0
    %696 = vmatprep.subr.mxu0 0.0
    %697 = vmatpush1.msra.mxu0 0.0
    %698 = vmatprep.subr.mxu0 0.0
    %699 = vmatpush1.msra.mxu0 0.0
    %700 = vmatprep.mubr.f32.mxu0 0.0
    %701 = vmatmul.mubr.f32.gmra.mrb[0].mxu0 %v628
    %v702 = vpop.f32.mrb[0].mxu0
    %v703 = vadd.f32 0.0, %v702
    %v704 = vpop.f32.mrb[0].mxu0
    %v705 = vadd.f32 0.0, %v704
    %706 = vdwg.mxu0
    %707 = vmatprep.subr.mxu0 %v404
    %708 = vmatpush1.msra.mxu0 %v403
    %709 = vmatprep.subr.mxu0 %v408
    %710 = vmatpush1.msra.mxu0 %v407
    %711 = vmatprep.subr.mxu0 %v412
    %712 = vmatpush1.msra.mxu0 %v411
    %713 = vmatprep.subr.mxu0 %v416
    %714 = vmatpush1.msra.mxu0 %v415
    %715 = vmatprep.subr.mxu0 %v420
    %716 = vmatpush1.msra.mxu0 %v419
    %717 = vmatprep.subr.mxu0 %v424
    %718 = vmatpush1.msra.mxu0 %v423
    %719 = vmatprep.subr.mxu0 %v428
    %720 = vmatpush1.msra.mxu0 %v427
    %721 = vmatprep.subr.mxu0 %v432
    %722 = vmatpush1.msra.mxu0 %v431
    %723 = vmatprep.subr.mxu0 %v436
    %724 = vmatpush1.msra.mxu0 %v435
    %725 = vmatprep.subr.mxu0 %v440
    %726 = vmatpush1.msra.mxu0 %v439
    %727 = vmatprep.subr.mxu0 %v444
    %728 = vmatpush1.msra.mxu0 %v443
    %729 = vmatprep.subr.mxu0 %v448
    %730 = vmatpush1.msra.mxu0 %v447
    %731 = vmatprep.subr.mxu0 %v452
    %732 = vmatpush1.msra.mxu0 %v451
    %733 = vmatprep.subr.mxu0 %v456
    %734 = vmatpush1.msra.mxu0 %v455
    %735 = vmatprep.subr.mxu0 %v460
    %736 = vmatpush1.msra.mxu0 %v459
    %737 = vmatprep.subr.mxu0 %v464
    %738 = vmatpush1.msra.mxu0 %v463
    %739 = vmatprep.subr.mxu0 0.0
    %740 = vmatpush1.msra.mxu0 0.0
    %741 = vmatprep.subr.mxu0 0.0
    %742 = vmatpush1.msra.mxu0 0.0
    %743 = vmatprep.subr.mxu0 0.0
    %744 = vmatpush1.msra.mxu0 0.0
    %745 = vmatprep.subr.mxu0 0.0
    %746 = vmatpush1.msra.mxu0 0.0
    %747 = vmatprep.subr.mxu0 0.0
    %748 = vmatpush1.msra.mxu0 0.0
    %749 = vmatprep.subr.mxu0 0.0
    %750 = vmatpush1.msra.mxu0 0.0
    %751 = vmatprep.subr.mxu0 0.0
    %752 = vmatpush1.msra.mxu0 0.0
    %753 = vmatprep.subr.mxu0 0.0
    %754 = vmatpush1.msra.mxu0 0.0
    %755 = vmatprep.subr.mxu0 0.0
    %756 = vmatpush1.msra.mxu0 0.0
    %757 = vmatprep.subr.mxu0 0.0
    %758 = vmatpush1.msra.mxu0 0.0
    %759 = vmatprep.subr.mxu0 0.0
    %760 = vmatpush1.msra.mxu0 0.0
    %761 = vmatprep.subr.mxu0 0.0
    %762 = vmatpush1.msra.mxu0 0.0
    %763 = vmatprep.subr.mxu0 0.0
    %764 = vmatpush1.msra.mxu0 0.0
    %765 = vmatprep.subr.mxu0 0.0
    %766 = vmatpush1.msra.mxu0 0.0
    %767 = vmatprep.subr.mxu0 0.0
    %768 = vmatpush1.msra.mxu0 0.0
    %769 = vmatprep.subr.mxu0 0.0
    %770 = vmatpush1.msra.mxu0 0.0
    %771 = vmatprep.mubr.f32.mxu0 0.0
    %772 = vmatmul.mubr.f32.gmra.mrb[0].mxu0 %v628
    %v773 = vpop.f32.mrb[0].mxu0
    %v774 = vadd.f32 0.0, %v773
    %v775 = vpop.f32.mrb[0].mxu0
    %v776 = vadd.f32 0.0, %v775
    %777 = vdwg.mxu0
    %v778 = vadd.f32 %v632, %v703
    %v779 = vadd.f32 %v633, %v705
    %v780 = vadd.f32 %v634, %v774
    %v781 = vadd.f32 %v635, %v776
    %v782 = vmul.f32 %v778, 0.5
    %v783 = vtanh.pop %v782
    %v784 = vmul.f32 %v783, 0.5
    %v785 = vadd.f32 %v784, 0.5
    %v786 = vmul.f32 %v779, 0.5
    %v787 = vtanh.pop %v786
    %v788 = vmul.f32 %v787, 0.5
    %v789 = vadd.f32 %v788, 0.5
    %v790 = vtanh.pop %v780
    %v791 = vmul.f32 %v781, 0.5
    %v792 = vtanh.pop %v791
    %v793 = vmul.f32 %v792, 0.5
    %v794 = vadd.f32 %v793, 0.5
    %v795 = vmul.f32 %v789, %v626
    %v796 = vmul.f32 %v785, %v790
    %v797 = vadd.f32 %v795, %v796
    %v798 = vtanh.pop %v797
    %v799 = vmul.f32 %v794, %v798
    %s800 = smul.u32 2, 4
    %s801 = smul.addr %s800, 8
    %s802 = scalar_lea.vmem [#allocation2], %s801
    %v803 = vld [vmem:[%s802] sm:$0xff]
    %v804 = vld [vmem:[%s802 + $0x8] sm:$0xff]
    %v805 = vld [vmem:[%s802 + $0x10] sm:$0xff]
    %v806 = vld [vmem:[%s802 + $0x18] sm:$0xff]
    %807 = vmatprep.subr.mxu0 %v402
    %808 = vmatpush1.msra.mxu0 %v401
    %809 = vmatprep.subr.mxu0 %v406
    %810 = vmatpush1.msra.mxu0 %v405
    %811 = vmatprep.subr.mxu0 %v410
    %812 = vmatpush1.msra.mxu0 %v409
    %813 = vmatprep.subr.mxu0 %v414
    %814 = vmatpush1.msra.mxu0 %v413
    %815 = vmatprep.subr.mxu0 %v418
    %816 = vmatpush1.msra.mxu0 %v417
    %817 = vmatprep.subr.mxu0 %v422
    %818 = vmatpush1.msra.mxu0 %v421
    %819 = vmatprep.subr.mxu0 %v426
    %820 = vmatpush1.msra.mxu0 %v425
    %821 = vmatprep.subr.mxu0 %v430
    %822 = vmatpush1.msra.mxu0 %v429
    %823 = vmatprep.subr.mxu0 %v434
    %824 = vmatpush1.msra.mxu0 %v433
    %825 = vmatprep.subr.mxu0 %v438
    %826 = vmatpush1.msra.mxu0 %v437
    %827 = vmatprep.subr.mxu0 %v442
    %828 = vmatpush1.msra.mxu0 %v441
    %829 = vmatprep.subr.mxu0 %v446
    %830 = vmatpush1.msra.mxu0 %v445
    %831 = vmatprep.subr.mxu0 %v450
    %832 = vmatpush1.msra.mxu0 %v449
    %833 = vmatprep.subr.mxu0 %v454
    %834 = vmatpush1.msra.mxu0 %v453
    %835 = vmatprep.subr.mxu0 %v458
    %836 = vmatpush1.msra.mxu0 %v457
    %837 = vmatprep.subr.mxu0 %v462
    %838 = vmatpush1.msra.mxu0 %v461
    %839 = vmatprep.subr.mxu0 0.0
    %840 = vmatpush1.msra.mxu0 0.0
    %841 = vmatprep.subr.mxu0 0.0
    %842 = vmatpush1.msra.mxu0 0.0
    %843 = vmatprep.subr.mxu0 0.0
    %844 = vmatpush1.msra.mxu0 0.0
    %845 = vmatprep.subr.mxu0 0.0
    %846 = vmatpush1.msra.mxu0 0.0
    %847 = vmatprep.subr.mxu0 0.0
    %848 = vmatpush1.msra.mxu0 0.0
    %849 = vmatprep.subr.mxu0 0.0
    %850 = vmatpush1.msra.mxu0 0.0
    %851 = vmatprep.subr.mxu0 0.0
    %852 = vmatpush1.msra.mxu0 0.0
    %853 = vmatprep.subr.mxu0 0.0
    %854 = vmatpush1.msra.mxu0 0.0
    %855 = vmatprep.subr.mxu0 0.0
    %856 = vmatpush1.msra.mxu0 0.0
    %857 = vmatprep.subr.mxu0 0.0
    %858 = vmatpush1.msra.mxu0 0.0
    %859 = vmatprep.subr.mxu0 0.0
    %860 = vmatpush1.msra.mxu0 0.0
    %861 = vmatprep.subr.mxu0 0.0
    %862 = vmatpush1.msra.mxu0 0.0
    %863 = vmatprep.subr.mxu0 0.0
    %864 = vmatpush1.msra.mxu0 0.0
    %865 = vmatprep.subr.mxu0 0.0
    %866 = vmatpush1.msra.mxu0 0.0
    %867 = vmatprep.subr.mxu0 0.0
    %868 = vmatpush1.msra.mxu0 0.0
    %869 = vmatprep.subr.mxu0 0.0
    %870 = vmatpush1.msra.mxu0 0.0
    %871 = vmatprep.mubr.f32.mxu0 0.0
    %872 = vmatmul.mubr.f32.gmra.mrb[0].mxu0 %v799
    %v873 = vpop.f32.mrb[0].mxu0
    %v874 = vadd.f32 0.0, %v873
    %v875 = vpop.f32.mrb[0].mxu0
    %v876 = vadd.f32 0.0, %v875
    %877 = vdwg.mxu0
    %878 = vmatprep.subr.mxu0 %v404
    %879 = vmatpush1.msra.mxu0 %v403
    %880 = vmatprep.subr.mxu0 %v408
    %881 = vmatpush1.msra.mxu0 %v407
    %882 = vmatprep.subr.mxu0 %v412
    %883 = vmatpush1.msra.mxu0 %v411
    %884 = vmatprep.subr.mxu0 %v416
    %885 = vmatpush1.msra.mxu0 %v415
    %886 = vmatprep.subr.mxu0 %v420
    %887 = vmatpush1.msra.mxu0 %v419
    %888 = vmatprep.subr.mxu0 %v424
    %889 = vmatpush1.msra.mxu0 %v423
    %890 = vmatprep.subr.mxu0 %v428
    %891 = vmatpush1.msra.mxu0 %v427
    %892 = vmatprep.subr.mxu0 %v432
    %893 = vmatpush1.msra.mxu0 %v431
    %894 = vmatprep.subr.mxu0 %v436
    %895 = vmatpush1.msra.mxu0 %v435
    %896 = vmatprep.subr.mxu0 %v440
    %897 = vmatpush1.msra.mxu0 %v439
    %898 = vmatprep.subr.mxu0 %v444
    %899 = vmatpush1.msra.mxu0 %v443
    %900 = vmatprep.subr.mxu0 %v448
    %901 = vmatpush1.msra.mxu0 %v447
    %902 = vmatprep.subr.mxu0 %v452
    %903 = vmatpush1.msra.mxu0 %v451
    %904 = vmatprep.subr.mxu0 %v456
    %905 = vmatpush1.msra.mxu0 %v455
    %906 = vmatprep.subr.mxu0 %v460
    %907 = vmatpush1.msra.mxu0 %v459
    %908 = vmatprep.subr.mxu0 %v464
    %909 = vmatpush1.msra.mxu0 %v463
    %910 = vmatprep.subr.mxu0 0.0
    %911 = vmatpush1.msra.mxu0 0.0
    %912 = vmatprep.subr.mxu0 0.0
    %913 = vmatpush1.msra.mxu0 0.0
    %914 = vmatprep.subr.mxu0 0.0
    %915 = vmatpush1.msra.mxu0 0.0
    %916 = vmatprep.subr.mxu0 0.0
    %917 = vmatpush1.msra.mxu0 0.0
    %918 = vmatprep.subr.mxu0 0.0
    %919 = vmatpush1.msra.mxu0 0.0
    %920 = vmatprep.subr.mxu0 0.0
    %921 = vmatpush1.msra.mxu0 0.0
    %922 = vmatprep.subr.mxu0 0.0
    %923 = vmatpush1.msra.mxu0 0.0
    %924 = vmatprep.subr.mxu0 0.0
    %925 = vmatpush1.msra.mxu0 0.0
    %926 = vmatprep.subr.mxu0 0.0
    %927 = vmatpush1.msra.mxu0 0.0
    %928 = vmatprep.subr.mxu0 0.0
    %929 = vmatpush1.msra.mxu0 0.0
    %930 = vmatprep.subr.mxu0 0.0
    %931 = vmatpush1.msra.mxu0 0.0
    %932 = vmatprep.subr.mxu0 0.0
    %933 = vmatpush1.msra.mxu0 0.0
    %934 = vmatprep.subr.mxu0 0.0
    %935 = vmatpush1.msra.mxu0 0.0
    %936 = vmatprep.subr.mxu0 0.0
    %937 = vmatpush1.msra.mxu0 0.0
    %938 = vmatprep.subr.mxu0 0.0
    %939 = vmatpush1.msra.mxu0 0.0
    %940 = vmatprep.subr.mxu0 0.0
    %941 = vmatpush1.msra.mxu0 0.0
    %942 = vmatprep.mubr.f32.mxu0 0.0
    %943 = vmatmul.mubr.f32.gmra.mrb[0].mxu0 %v799
    %v944 = vpop.f32.mrb[0].mxu0
    %v945 = vadd.f32 0.0, %v944
    %v946 = vpop.f32.mrb[0].mxu0
    %v947 = vadd.f32 0.0, %v946
    %948 = vdwg.mxu0
    %v949 = vadd.f32 %v803, %v874
    %v950 = vadd.f32 %v804, %v876
    %v951 = vadd.f32 %v805, %v945
    %v952 = vadd.f32 %v806, %v947
    %v953 = vmul.f32 %v949, 0.5
    %v954 = vtanh.pop %v953
    %v955 = vmul.f32 %v954, 0.5
    %v956 = vadd.f32 %v955, 0.5
    %v957 = vmul.f32 %v950, 0.5
    %v958 = vtanh.pop %v957
    %v959 = vmul.f32 %v958, 0.5
    %v960 = vadd.f32 %v959, 0.5
    %v961 = vtanh.pop %v951
    %v962 = vmul.f32 %v952, 0.5
    %v963 = vtanh.pop %v962
    %v964 = vmul.f32 %v963, 0.5
    %v965 = vadd.f32 %v964, 0.5
    %v966 = vmul.f32 %v960, %v797
    %v967 = vmul.f32 %v956, %v961
    %v968 = vadd.f32 %v966, %v967
    %v969 = vtanh.pop %v968
    %v970 = vmul.f32 %v965, %v969
    %s971 = smul.u32 3, 4
    %s972 = smul.addr %s971, 8
    %s973 = scalar_lea.vmem [#allocation2], %s972
    %v974 = vld [vmem:[%s973] sm:$0xff]
    %v975 = vld [vmem:[%s973 + $0x8] sm:$0xff]
    %v976 = vld [vmem:[%s973 + $0x10] sm:$0xff]
    %v977 = vld [vmem:[%s973 + $0x18] sm:$0xff]
    %978 = vmatprep.subr.mxu0 %v402
    %979 = vmatpush1.msra.mxu0 %v401
    %980 = vmatprep.subr.mxu0 %v406
    %981 = vmatpush1.msra.mxu0 %v405
    %982 = vmatprep.subr.mxu0 %v410
    %983 = vmatpush1.msra.mxu0 %v409
    %984 = vmatprep.subr.mxu0 %v414
    %985 = vmatpush1.msra.mxu0 %v413
    %986 = vmatprep.subr.mxu0 %v418
    %987 = vmatpush1.msra.mxu0 %v417
    %988 = vmatprep.subr.mxu0 %v422
    %989 = vmatpush1.msra.mxu0 %v421
    %990 = vmatprep.subr.mxu0 %v426
    %991 = vmatpush1.msra.mxu0 %v425
    %992 = vmatprep.subr.mxu0 %v430
    %993 = vmatpush1.msra.mxu0 %v429
    %994 = vmatprep.subr.mxu0 %v434
    %995 = vmatpush1.msra.mxu0 %v433
    %996 = vmatprep.subr.mxu0 %v438
    %997 = vmatpush1.msra.mxu0 %v437
    %998 = vmatprep.subr.mxu0 %v442
    %999 = vmatpush1.msra.mxu0 %v441
    %1000 = vmatprep.subr.mxu0 %v446
    %1001 = vmatpush1.msra.mxu0 %v445
    %1002 = vmatprep.subr.mxu0 %v450
    %1003 = vmatpush1.msra.mxu0 %v449
    %1004 = vmatprep.subr.mxu0 %v454
    %1005 = vmatpush1.msra.mxu0 %v453
    %1006 = vmatprep.subr.mxu0 %v458
    %1007 = vmatpush1.msra.mxu0 %v457
    %1008 = vmatprep.subr.mxu0 %v462
    %1009 = vmatpush1.msra.mxu0 %v461
    %1010 = vmatprep.subr.mxu0 0.0
    %1011 = vmatpush1.msra.mxu0 0.0
    %1012 = vmatprep.subr.mxu0 0.0
    %1013 = vmatpush1.msra.mxu0 0.0
    %1014 = vmatprep.subr.mxu0 0.0
    %1015 = vmatpush1.msra.mxu0 0.0
    %1016 = vmatprep.subr.mxu0 0.0
    %1017 = vmatpush1.msra.mxu0 0.0
    %1018 = vmatprep.subr.mxu0 0.0
    %1019 = vmatpush1.msra.mxu0 0.0
    %1020 = vmatprep.subr.mxu0 0.0
    %1021 = vmatpush1.msra.mxu0 0.0
    %1022 = vmatprep.subr.mxu0 0.0
    %1023 = vmatpush1.msra.mxu0 0.0
    %1024 = vmatprep.subr.mxu0 0.0
    %1025 = vmatpush1.msra.mxu0 0.0
    %1026 = vmatprep.subr.mxu0 0.0
    %1027 = vmatpush1.msra.mxu0 0.0
    %1028 = vmatprep.subr.mxu0 0.0
    %1029 = vmatpush1.msra.mxu0 0.0
    %1030 = vmatprep.subr.mxu0 0.0
    %1031 = vmatpush1.msra.mxu0 0.0
    %1032 = vmatprep.subr.mxu0 0.0
    %1033 = vmatpush1.msra.mxu0 0.0
    %1034 = vmatprep.subr.mxu0 0.0
    %1035 = vmatpush1.msra.mxu0 0.0
    %1036 = vmatprep.subr.mxu0 0.0
    %1037 = vmatpush1.msra.mxu0 0.0
    %1038 = vmatprep.subr.mxu0 0.0
    %1039 = vmatpush1.msra.mxu0 0.0
    %1040 = vmatprep.subr.mxu0 0.0
    %1041 = vmatpush1.msra.mxu0 0.0
    %1042 = vmatprep.mubr.f32.mxu0 0.0
    %1043 = vmatmul.mubr.f32.gmra.mrb[0].mxu0 %v970
    %v1044 = vpop.f32.mrb[0].mxu0
    %v1045 = vadd.f32 0.0, %v1044
    %v1046 = vpop.f32.mrb[0].mxu0
    %v1047 = vadd.f32 0.0, %v1046
    %1048 = vdwg.mxu0
    %1049 = vmatprep.subr.mxu0 %v404
    %1050 = vmatpush1.msra.mxu0 %v403
    %1051 = vmatprep.subr.mxu0 %v408
    %1052 = vmatpush1.msra.mxu0 %v407
    %1053 = vmatprep.subr.mxu0 %v412
    %1054 = vmatpush1.msra.mxu0 %v411
    %1055 = vmatprep.subr.mxu0 %v416
    %1056 = vmatpush1.msra.mxu0 %v415
    %1057 = vmatprep.subr.mxu0 %v420
    %1058 = vmatpush1.msra.mxu0 %v419
    %1059 = vmatprep.subr.mxu0 %v424
    %1060 = vmatpush1.msra.mxu0 %v423
    %1061 = vmatprep.subr.mxu0 %v428
    %1062 = vmatpush1.msra.mxu0 %v427
    %1063 = vmatprep.subr.mxu0 %v432
    %1064 = vmatpush1.msra.mxu0 %v431
    %1065 = vmatprep.subr.mxu0 %v436
    %1066 = vmatpush1.msra.mxu0 %v435
    %1067 = vmatprep.subr.mxu0 %v440
    %1068 = vmatpush1.msra.mxu0 %v439
    %1069 = vmatprep.subr.mxu0 %v444
    %1070 = vmatpush1.msra.mxu0 %v443
    %1071 = vmatprep.subr.mxu0 %v448
    %1072 = vmatpush1.msra.mxu0 %v447
    %1073 = vmatprep.subr.mxu0 %v452
    %1074 = vmatpush1.msra.mxu0 %v451
    %1075 = vmatprep.subr.mxu0 %v456
    %1076 = vmatpush1.msra.mxu0 %v455
    %1077 = vmatprep.subr.mxu0 %v460
    %1078 = vmatpush1.msra.mxu0 %v459
    %1079 = vmatprep.subr.mxu0 %v464
    %1080 = vmatpush1.msra.mxu0 %v463
    %1081 = vmatprep.subr.mxu0 0.0
    %1082 = vmatpush1.msra.mxu0 0.0
    %1083 = vmatprep.subr.mxu0 0.0
    %1084 = vmatpush1.msra.mxu0 0.0
    %1085 = vmatprep.subr.mxu0 0.0
    %1086 = vmatpush1.msra.mxu0 0.0
    %1087 = vmatprep.subr.mxu0 0.0
    %1088 = vmatpush1.msra.mxu0 0.0
    %1089 = vmatprep.subr.mxu0 0.0
    %1090 = vmatpush1.msra.mxu0 0.0
    %1091 = vmatprep.subr.mxu0 0.0
    %1092 = vmatpush1.msra.mxu0 0.0
    %1093 = vmatprep.subr.mxu0 0.0
    %1094 = vmatpush1.msra.mxu0 0.0
    %1095 = vmatprep.subr.mxu0 0.0
    %1096 = vmatpush1.msra.mxu0 0.0
    %1097 = vmatprep.subr.mxu0 0.0
    %1098 = vmatpush1.msra.mxu0 0.0
    %1099 = vmatprep.subr.mxu0 0.0
    %1100 = vmatpush1.msra.mxu0 0.0
    %1101 = vmatprep.subr.mxu0 0.0
    %1102 = vmatpush1.msra.mxu0 0.0
    %1103 = vmatprep.subr.mxu0 0.0
    %1104 = vmatpush1.msra.mxu0 0.0
    %1105 = vmatprep.subr.mxu0 0.0
    %1106 = vmatpush1.msra.mxu0 0.0
    %1107 = vmatprep.subr.mxu0 0.0
    %1108 = vmatpush1.msra.mxu0 0.0
    %1109 = vmatprep.subr.mxu0 0.0
    %1110 = vmatpush1.msra.mxu0 0.0
    %1111 = vmatprep.subr.mxu0 0.0
    %1112 = vmatpush1.msra.mxu0 0.0
    %1113 = vmatprep.mubr.f32.mxu0 0.0
    %1114 = vmatmul.mubr.f32.gmra.mrb[0].mxu0 %v970
    %v1115 = vpop.f32.mrb[0].mxu0
    %v1116 = vadd.f32 0.0, %v1115
    %v1117 = vpop.f32.mrb[0].mxu0
    %v1118 = vadd.f32 0.0, %v1117
    %1119 = vdwg.mxu0
    %v1120 = vadd.f32 %v974, %v1045
    %v1121 = vadd.f32 %v975, %v1047
    %v1122 = vadd.f32 %v976, %v1116
    %v1123 = vadd.f32 %v977, %v1118
    %v1124 = vmul.f32 %v1120, 0.5
    %v1125 = vtanh.pop %v1124
    %v1126 = vmul.f32 %v1125, 0.5
    %v1127 = vadd.f32 %v1126, 0.5
    %v1128 = vmul.f32 %v1121, 0.5
    %v1129 = vtanh.pop %v1128
    %v1130 = vmul.f32 %v1129, 0.5
    %v1131 = vadd.f32 %v1130, 0.5
    %v1132 = vtanh.pop %v1122
    %v1133 = vmul.f32 %v1123, 0.5
    %v1134 = vtanh.pop %v1133
    %v1135 = vmul.f32 %v1134, 0.5
    %v1136 = vadd.f32 %v1135, 0.5
    %v1137 = vmul.f32 %v1131, %v968
    %v1138 = vmul.f32 %v1127, %v1132
    %v1139 = vadd.f32 %v1137, %v1138
    %v1140 = vtanh.pop %v1139
    %v1141 = vmul.f32 %v1136, %v1140
    %s1142 = smul.u32 4, 4
    %s1143 = smul.addr %s1142, 8
    %s1144 = scalar_lea.vmem [#allocation2], %s1143
    %v1145 = vld [vmem:[%s1144] sm:$0xff]
    %v1146 = vld [vmem:[%s1144 + $0x8] sm:$0xff]
    %v1147 = vld [vmem:[%s1144 + $0x10] sm:$0xff]
    %v1148 = vld [vmem:[%s1144 + $0x18] sm:$0xff]
    %1149 = vmatprep.subr.mxu0 %v402
    %1150 = vmatpush1.msra.mxu0 %v401
    %1151 = vmatprep.subr.mxu0 %v406
    %1152 = vmatpush1.msra.mxu0 %v405
    %1153 = vmatprep.subr.mxu0 %v410
    %1154 = vmatpush1.msra.mxu0 %v409
    %1155 = vmatprep.subr.mxu0 %v414
    %1156 = vmatpush1.msra.mxu0 %v413
    %1157 = vmatprep.subr.mxu0 %v418
    %1158 = vmatpush1.msra.mxu0 %v417
    %1159 = vmatprep.subr.mxu0 %v422
    %1160 = vmatpush1.msra.mxu0 %v421
    %1161 = vmatprep.subr.mxu0 %v426
    %1162 = vmatpush1.msra.mxu0 %v425
    %1163 = vmatprep.subr.mxu0 %v430
    %1164 = vmatpush1.msra.mxu0 %v429
    %1165 = vmatprep.subr.mxu0 %v434
    %1166 = vmatpush1.msra.mxu0 %v433
    %1167 = vmatprep.subr.mxu0 %v438
    %1168 = vmatpush1.msra.mxu0 %v437
    %1169 = vmatprep.subr.mxu0 %v442
    %1170 = vmatpush1.msra.mxu0 %v441
    %1171 = vmatprep.subr.mxu0 %v446
    %1172 = vmatpush1.msra.mxu0 %v445
    %1173 = vmatprep.subr.mxu0 %v450
    %1174 = vmatpush1.msra.mxu0 %v449
    %1175 = vmatprep.subr.mxu0 %v454
    %1176 = vmatpush1.msra.mxu0 %v453
    %1177 = vmatprep.subr.mxu0 %v458
    %1178 = vmatpush1.msra.mxu0 %v457
    %1179 = vmatprep.subr.mxu0 %v462
    %1180 = vmatpush1.msra.mxu0 %v461
    %1181 = vmatprep.subr.mxu0 0.0
    %1182 = vmatpush1.msra.mxu0 0.0
    %1183 = vmatprep.subr.mxu0 0.0
    %1184 = vmatpush1.msra.mxu0 0.0
    %1185 = vmatprep.subr.mxu0 0.0
    %1186 = vmatpush1.msra.mxu0 0.0
    %1187 = vmatprep.subr.mxu0 0.0
    %1188 = vmatpush1.msra.mxu0 0.0
    %1189 = vmatprep.subr.mxu0 0.0
    %1190 = vmatpush1.msra.mxu0 0.0
    %1191 = vmatprep.subr.mxu0 0.0
    %1192 = vmatpush1.msra.mxu0 0.0
    %1193 = vmatprep.subr.mxu0 0.0
    %1194 = vmatpush1.msra.mxu0 0.0
    %1195 = vmatprep.subr.mxu0 0.0
    %1196 = vmatpush1.msra.mxu0 0.0
    %1197 = vmatprep.subr.mxu0 0.0
    %1198 = vmatpush1.msra.mxu0 0.0
    %1199 = vmatprep.subr.mxu0 0.0
    %1200 = vmatpush1.msra.mxu0 0.0
    %1201 = vmatprep.subr.mxu0 0.0
    %1202 = vmatpush1.msra.mxu0 0.0
    %1203 = vmatprep.subr.mxu0 0.0
    %1204 = vmatpush1.msra.mxu0 0.0
    %1205 = vmatprep.subr.mxu0 0.0
    %1206 = vmatpush1.msra.mxu0 0.0
    %1207 = vmatprep.subr.mxu0 0.0
    %1208 = vmatpush1.msra.mxu0 0.0
    %1209 = vmatprep.subr.mxu0 0.0
    %1210 = vmatpush1.msra.mxu0 0.0
    %1211 = vmatprep.subr.mxu0 0.0
    %1212 = vmatpush1.msra.mxu0 0.0
    %1213 = vmatprep.mubr.f32.mxu0 0.0
    %1214 = vmatmul.mubr.f32.gmra.mrb[0].mxu0 %v1141
    %v1215 = vpop.f32.mrb[0].mxu0
    %v1216 = vadd.f32 0.0, %v1215
    %v1217 = vpop.f32.mrb[0].mxu0
    %v1218 = vadd.f32 0.0, %v1217
    %1219 = vdwg.mxu0
    %1220 = vmatprep.subr.mxu0 %v404
    %1221 = vmatpush1.msra.mxu0 %v403
    %1222 = vmatprep.subr.mxu0 %v408
    %1223 = vmatpush1.msra.mxu0 %v407
    %1224 = vmatprep.subr.mxu0 %v412
    %1225 = vmatpush1.msra.mxu0 %v411
    %1226 = vmatprep.subr.mxu0 %v416
    %1227 = vmatpush1.msra.mxu0 %v415
    %1228 = vmatprep.subr.mxu0 %v420
    %1229 = vmatpush1.msra.mxu0 %v419
    %1230 = vmatprep.subr.mxu0 %v424
    %1231 = vmatpush1.msra.mxu0 %v423
    %1232 = vmatprep.subr.mxu0 %v428
    %1233 = vmatpush1.msra.mxu0 %v427
    %1234 = vmatprep.subr.mxu0 %v432
    %1235 = vmatpush1.msra.mxu0 %v431
    %1236 = vmatprep.subr.mxu0 %v436
    %1237 = vmatpush1.msra.mxu0 %v435
    %1238 = vmatprep.subr.mxu0 %v440
    %1239 = vmatpush1.msra.mxu0 %v439
    %1240 = vmatprep.subr.mxu0 %v444
    %1241 = vmatpush1.msra.mxu0 %v443
    %1242 = vmatprep.subr.mxu0 %v448
    %1243 = vmatpush1.msra.mxu0 %v447
    %1244 = vmatprep.subr.mxu0 %v452
    %1245 = vmatpush1.msra.mxu0 %v451
    %1246 = vmatprep.subr.mxu0 %v456
    %1247 = vmatpush1.msra.mxu0 %v455
    %1248 = vmatprep.subr.mxu0 %v460
    %1249 = vmatpush1.msra.mxu0 %v459
    %1250 = vmatprep.subr.mxu0 %v464
    %1251 = vmatpush1.msra.mxu0 %v463
    %1252 = vmatprep.subr.mxu0 0.0
    %1253 = vmatpush1.msra.mxu0 0.0
    %1254 = vmatprep.subr.mxu0 0.0
    %1255 = vmatpush1.msra.mxu0 0.0
    %1256 = vmatprep.subr.mxu0 0.0
    %1257 = vmatpush1.msra.mxu0 0.0
    %1258 = vmatprep.subr.mxu0 0.0
    %1259 = vmatpush1.msra.mxu0 0.0
    %1260 = vmatprep.subr.mxu0 0.0
    %1261 = vmatpush1.msra.mxu0 0.0
    %1262 = vmatprep.subr.mxu0 0.0
    %1263 = vmatpush1.msra.mxu0 0.0
    %1264 = vmatprep.subr.mxu0 0.0
    %1265 = vmatpush1.msra.mxu0 0.0
    %1266 = vmatprep.subr.mxu0 0.0
    %1267 = vmatpush1.msra.mxu0 0.0
    %1268 = vmatprep.subr.mxu0 0.0
    %1269 = vmatpush1.msra.mxu0 0.0
    %1270 = vmatprep.subr.mxu0 0.0
    %1271 = vmatpush1.msra.mxu0 0.0
    %1272 = vmatprep.subr.mxu0 0.0
    %1273 = vmatpush1.msra.mxu0 0.0
    %1274 = vmatprep.subr.mxu0 0.0
    %1275 = vmatpush1.msra.mxu0 0.0
    %1276 = vmatprep.subr.mxu0 0.0
    %1277 = vmatpush1.msra.mxu0 0.0
    %1278 = vmatprep.subr.mxu0 0.0
    %1279 = vmatpush1.msra.mxu0 0.0
    %1280 = vmatprep.subr.mxu0 0.0
    %1281 = vmatpush1.msra.mxu0 0.0
    %1282 = vmatprep.subr.mxu0 0.0
    %1283 = vmatpush1.msra.mxu0 0.0
    %1284 = vmatprep.mubr.f32.mxu0 0.0
    %1285 = vmatmul.mubr.f32.gmra.mrb[0].mxu0 %v1141
    %v1286 = vpop.f32.mrb[0].mxu0
    %v1287 = vadd.f32 0.0, %v1286
    %v1288 = vpop.f32.mrb[0].mxu0
    %v1289 = vadd.f32 0.0, %v1288
    %1290 = vdwg.mxu0
    %v1291 = vadd.f32 %v1145, %v1216
    %v1292 = vadd.f32 %v1146, %v1218
    %v1293 = vadd.f32 %v1147, %v1287
    %v1294 = vadd.f32 %v1148, %v1289
    %v1295 = vmul.f32 %v1291, 0.5
    %v1296 = vtanh.pop %v1295
    %v1297 = vmul.f32 %v1296, 0.5
    %v1298 = vadd.f32 %v1297, 0.5
    %v1299 = vmul.f32 %v1292, 0.5
    %v1300 = vtanh.pop %v1299
    %v1301 = vmul.f32 %v1300, 0.5
    %v1302 = vadd.f32 %v1301, 0.5
    %v1303 = vtanh.pop %v1293
    %v1304 = vmul.f32 %v1294, 0.5
    %v1305 = vtanh.pop %v1304
    %v1306 = vmul.f32 %v1305, 0.5
    %v1307 = vadd.f32 %v1306, 0.5
    %v1308 = vmul.f32 %v1302, %v1139
    %v1309 = vmul.f32 %v1298, %v1303
    %v1310 = vadd.f32 %v1308, %v1309
    %v1311 = vtanh.pop %v1310
    %v1312 = vmul.f32 %v1307, %v1311
    %s1313 = smul.u32 5, 4
    %s1314 = smul.addr %s1313, 8
    %s1315 = scalar_lea.vmem [#allocation2], %s1314
    %v1316 = vld [vmem:[%s1315] sm:$0xff]
    %v1317 = vld [vmem:[%s1315 + $0x8] sm:$0xff]
    %v1318 = vld [vmem:[%s1315 + $0x10] sm:$0xff]
    %v1319 = vld [vmem:[%s1315 + $0x18] sm:$0xff]
    %1320 = vmatprep.subr.mxu0 %v402
    %1321 = vmatpush1.msra.mxu0 %v401
    %1322 = vmatprep.subr.mxu0 %v406
    %1323 = vmatpush1.msra.mxu0 %v405
    %1324 = vmatprep.subr.mxu0 %v410
    %1325 = vmatpush1.msra.mxu0 %v409
    %1326 = vmatprep.subr.mxu0 %v414
    %1327 = vmatpush1.msra.mxu0 %v413
    %1328 = vmatprep.subr.mxu0 %v418
    %1329 = vmatpush1.msra.mxu0 %v417
    %1330 = vmatprep.subr.mxu0 %v422
    %1331 = vmatpush1.msra.mxu0 %v421
    %1332 = vmatprep.subr.mxu0 %v426
    %1333 = vmatpush1.msra.mxu0 %v425
    %1334 = vmatprep.subr.mxu0 %v430
    %1335 = vmatpush1.msra.mxu0 %v429
    %1336 = vmatprep.subr.mxu0 %v434
    %1337 = vmatpush1.msra.mxu0 %v433
    %1338 = vmatprep.subr.mxu0 %v438
    %1339 = vmatpush1.msra.mxu0 %v437
    %1340 = vmatprep.subr.mxu0 %v442
    %1341 = vmatpush1.msra.mxu0 %v441
    %1342 = vmatprep.subr.mxu0 %v446
    %1343 = vmatpush1.msra.mxu0 %v445
    %1344 = vmatprep.subr.mxu0 %v450
    %1345 = vmatpush1.msra.mxu0 %v449
    %1346 = vmatprep.subr.mxu0 %v454
    %1347 = vmatpush1.msra.mxu0 %v453
    %1348 = vmatprep.subr.mxu0 %v458
    %1349 = vmatpush1.msra.mxu0 %v457
    %1350 = vmatprep.subr.mxu0 %v462
    %1351 = vmatpush1.msra.mxu0 %v461
    %1352 = vmatprep.subr.mxu0 0.0
    %1353 = vmatpush1.msra.mxu0 0.0
    %1354 = vmatprep.subr.mxu0 0.0
    %1355 = vmatpush1.msra.mxu0 0.0
    %1356 = vmatprep.subr.mxu0 0.0
    %1357 = vmatpush1.msra.mxu0 0.0
    %1358 = vmatprep.subr.mxu0 0.0
    %1359 = vmatpush1.msra.mxu0 0.0
    %1360 = vmatprep.subr.mxu0 0.0
    %1361 = vmatpush1.msra.mxu0 0.0
    %1362 = vmatprep.subr.mxu0 0.0
    %1363 = vmatpush1.msra.mxu0 0.0
    %1364 = vmatprep.subr.mxu0 0.0
    %1365 = vmatpush1.msra.mxu0 0.0
    %1366 = vmatprep.subr.mxu0 0.0
    %1367 = vmatpush1.msra.mxu0 0.0
    %1368 = vmatprep.subr.mxu0 0.0
    %1369 = vmatpush1.msra.mxu0 0.0
    %1370 = vmatprep.subr.mxu0 0.0
    %1371 = vmatpush1.msra.mxu0 0.0
    %1372 = vmatprep.subr.mxu0 0.0
    %1373 = vmatpush1.msra.mxu0 0.0
    %1374 = vmatprep.subr.mxu0 0.0
    %1375 = vmatpush1.msra.mxu0 0.0
    %1376 = vmatprep.subr.mxu0 0.0
    %1377 = vmatpush1.msra.mxu0 0.0
    %1378 = vmatprep.subr.mxu0 0.0
    %1379 = vmatpush1.msra.mxu0 0.0
    %1380 = vmatprep.subr.mxu0 0.0
    %1381 = vmatpush1.msra.mxu0 0.0
    %1382 = vmatprep.subr.mxu0 0.0
    %1383 = vmatpush1.msra.mxu0 0.0
    %1384 = vmatprep.mubr.f32.mxu0 0.0
    %1385 = vmatmul.mubr.f32.gmra.mrb[0].mxu0 %v1312
    %v1386 = vpop.f32.mrb[0].mxu0
    %v1387 = vadd.f32 0.0, %v1386
    %v1388 = vpop.f32.mrb[0].mxu0
    %v1389 = vadd.f32 0.0, %v1388
    %1390 = vdwg.mxu0
    %1391 = vmatprep.subr.mxu0 %v404
    %1392 = vmatpush1.msra.mxu0 %v403
    %1393 = vmatprep.subr.mxu0 %v408
    %1394 = vmatpush1.msra.mxu0 %v407
    %1395 = vmatprep.subr.mxu0 %v412
    %1396 = vmatpush1.msra.mxu0 %v411
    %1397 = vmatprep.subr.mxu0 %v416
    %1398 = vmatpush1.msra.mxu0 %v415
    %1399 = vmatprep.subr.mxu0 %v420
    %1400 = vmatpush1.msra.mxu0 %v419
    %1401 = vmatprep.subr.mxu0 %v424
    %1402 = vmatpush1.msra.mxu0 %v423
    %1403 = vmatprep.subr.mxu0 %v428
    %1404 = vmatpush1.msra.mxu0 %v427
    %1405 = vmatprep.subr.mxu0 %v432
    %1406 = vmatpush1.msra.mxu0 %v431
    %1407 = vmatprep.subr.mxu0 %v436
    %1408 = vmatpush1.msra.mxu0 %v435
    %1409 = vmatprep.subr.mxu0 %v440
    %1410 = vmatpush1.msra.mxu0 %v439
    %1411 = vmatprep.subr.mxu0 %v444
    %1412 = vmatpush1.msra.mxu0 %v443
    %1413 = vmatprep.subr.mxu0 %v448
    %1414 = vmatpush1.msra.mxu0 %v447
    %1415 = vmatprep.subr.mxu0 %v452
    %1416 = vmatpush1.msra.mxu0 %v451
    %1417 = vmatprep.subr.mxu0 %v456
    %1418 = vmatpush1.msra.mxu0 %v455
    %1419 = vmatprep.subr.mxu0 %v460
    %1420 = vmatpush1.msra.mxu0 %v459
    %1421 = vmatprep.subr.mxu0 %v464
    %1422 = vmatpush1.msra.mxu0 %v463
    %1423 = vmatprep.subr.mxu0 0.0
    %1424 = vmatpush1.msra.mxu0 0.0
    %1425 = vmatprep.subr.mxu0 0.0
    %1426 = vmatpush1.msra.mxu0 0.0
    %1427 = vmatprep.subr.mxu0 0.0
    %1428 = vmatpush1.msra.mxu0 0.0
    %1429 = vmatprep.subr.mxu0 0.0
    %1430 = vmatpush1.msra.mxu0 0.0
    %1431 = vmatprep.subr.mxu0 0.0
    %1432 = vmatpush1.msra.mxu0 0.0
    %1433 = vmatprep.subr.mxu0 0.0
    %1434 = vmatpush1.msra.mxu0 0.0
    %1435 = vmatprep.subr.mxu0 0.0
    %1436 = vmatpush1.msra.mxu0 0.0
    %1437 = vmatprep.subr.mxu0 0.0
    %1438 = vmatpush1.msra.mxu0 0.0
    %1439 = vmatprep.subr.mxu0 0.0
    %1440 = vmatpush1.msra.mxu0 0.0
    %1441 = vmatprep.subr.mxu0 0.0
    %1442 = vmatpush1.msra.mxu0 0.0
    %1443 = vmatprep.subr.mxu0 0.0
    %1444 = vmatpush1.msra.mxu0 0.0
    %1445 = vmatprep.subr.mxu0 0.0
    %1446 = vmatpush1.msra.mxu0 0.0
    %1447 = vmatprep.subr.mxu0 0.0
    %1448 = vmatpush1.msra.mxu0 0.0
    %1449 = vmatprep.subr.mxu0 0.0
    %1450 = vmatpush1.msra.mxu0 0.0
    %1451 = vmatprep.subr.mxu0 0.0
    %1452 = vmatpush1.msra.mxu0 0.0
    %1453 = vmatprep.subr.mxu0 0.0
    %1454 = vmatpush1.msra.mxu0 0.0
    %1455 = vmatprep.mubr.f32.mxu0 0.0
    %1456 = vmatmul.mubr.f32.gmra.mrb[0].mxu0 %v1312
    %v1457 = vpop.f32.mrb[0].mxu0
    %v1458 = vadd.f32 0.0, %v1457
    %v1459 = vpop.f32.mrb[0].mxu0
    %v1460 = vadd.f32 0.0, %v1459
    %1461 = vdwg.mxu0
    %v1462 = vadd.f32 %v1316, %v1387
    %v1463 = vadd.f32 %v1317, %v1389
    %v1464 = vadd.f32 %v1318, %v1458
    %v1465 = vadd.f32 %v1319, %v1460
    %v1466 = vmul.f32 %v1462, 0.5
    %v1467 = vtanh.pop %v1466
    %v1468 = vmul.f32 %v1467, 0.5
    %v1469 = vadd.f32 %v1468, 0.5
    %v1470 = vmul.f32 %v1463, 0.5
    %v1471 = vtanh.pop %v1470
    %v1472 = vmul.f32 %v1471, 0.5
    %v1473 = vadd.f32 %v1472, 0.5
    %v1474 = vtanh.pop %v1464
    %v1475 = vmul.f32 %v1465, 0.5
    %v1476 = vtanh.pop %v1475
    %v1477 = vmul.f32 %v1476, 0.5
    %v1478 = vadd.f32 %v1477, 0.5
    %v1479 = vmul.f32 %v1473, %v1310
    %v1480 = vmul.f32 %v1469, %v1474
    %v1481 = vadd.f32 %v1479, %v1480
    %v1482 = vtanh.pop %v1481
    %v1483 = vmul.f32 %v1478, %v1482
    %s1484 = smul.u32 6, 4
    %s1485 = smul.addr %s1484, 8
    %s1486 = scalar_lea.vmem [#allocation2], %s1485
    %v1487 = vld [vmem:[%s1486] sm:$0xff]
    %v1488 = vld [vmem:[%s1486 + $0x8] sm:$0xff]
    %v1489 = vld [vmem:[%s1486 + $0x10] sm:$0xff]
    %v1490 = vld [vmem:[%s1486 + $0x18] sm:$0xff]
    %1491 = vmatprep.subr.mxu0 %v402
    %1492 = vmatpush1.msra.mxu0 %v401
    %1493 = vmatprep.subr.mxu0 %v406
    %1494 = vmatpush1.msra.mxu0 %v405
    %1495 = vmatprep.subr.mxu0 %v410
    %1496 = vmatpush1.msra.mxu0 %v409
    %1497 = vmatprep.subr.mxu0 %v414
    %1498 = vmatpush1.msra.mxu0 %v413
    %1499 = vmatprep.subr.mxu0 %v418
    %1500 = vmatpush1.msra.mxu0 %v417
    %1501 = vmatprep.subr.mxu0 %v422
    %1502 = vmatpush1.msra.mxu0 %v421
    %1503 = vmatprep.subr.mxu0 %v426
    %1504 = vmatpush1.msra.mxu0 %v425
    %1505 = vmatprep.subr.mxu0 %v430
    %1506 = vmatpush1.msra.mxu0 %v429
    %1507 = vmatprep.subr.mxu0 %v434
    %1508 = vmatpush1.msra.mxu0 %v433
    %1509 = vmatprep.subr.mxu0 %v438
    %1510 = vmatpush1.msra.mxu0 %v437
    %1511 = vmatprep.subr.mxu0 %v442
    %1512 = vmatpush1.msra.mxu0 %v441
    %1513 = vmatprep.subr.mxu0 %v446
    %1514 = vmatpush1.msra.mxu0 %v445
    %1515 = vmatprep.subr.mxu0 %v450
    %1516 = vmatpush1.msra.mxu0 %v449
    %1517 = vmatprep.subr.mxu0 %v454
    %1518 = vmatpush1.msra.mxu0 %v453
    %1519 = vmatprep.subr.mxu0 %v458
    %1520 = vmatpush1.msra.mxu0 %v457
    %1521 = vmatprep.subr.mxu0 %v462
    %1522 = vmatpush1.msra.mxu0 %v461
    %1523 = vmatprep.subr.mxu0 0.0
    %1524 = vmatpush1.msra.mxu0 0.0
    %1525 = vmatprep.subr.mxu0 0.0
    %1526 = vmatpush1.msra.mxu0 0.0
    %1527 = vmatprep.subr.mxu0 0.0
    %1528 = vmatpush1.msra.mxu0 0.0
    %1529 = vmatprep.subr.mxu0 0.0
    %1530 = vmatpush1.msra.mxu0 0.0
    %1531 = vmatprep.subr.mxu0 0.0
    %1532 = vmatpush1.msra.mxu0 0.0
    %1533 = vmatprep.subr.mxu0 0.0
    %1534 = vmatpush1.msra.mxu0 0.0
    %1535 = vmatprep.subr.mxu0 0.0
    %1536 = vmatpush1.msra.mxu0 0.0
    %1537 = vmatprep.subr.mxu0 0.0
    %1538 = vmatpush1.msra.mxu0 0.0
    %1539 = vmatprep.subr.mxu0 0.0
    %1540 = vmatpush1.msra.mxu0 0.0
    %1541 = vmatprep.subr.mxu0 0.0
    %1542 = vmatpush1.msra.mxu0 0.0
    %1543 = vmatprep.subr.mxu0 0.0
    %1544 = vmatpush1.msra.mxu0 0.0
    %1545 = vmatprep.subr.mxu0 0.0
    %1546 = vmatpush1.msra.mxu0 0.0
    %1547 = vmatprep.subr.mxu0 0.0
    %1548 = vmatpush1.msra.mxu0 0.0
    %1549 = vmatprep.subr.mxu0 0.0
    %1550 = vmatpush1.msra.mxu0 0.0
    %1551 = vmatprep.subr.mxu0 0.0
    %1552 = vmatpush1.msra.mxu0 0.0
    %1553 = vmatprep.subr.mxu0 0.0
    %1554 = vmatpush1.msra.mxu0 0.0
    %1555 = vmatprep.mubr.f32.mxu0 0.0
    %1556 = vmatmul.mubr.f32.gmra.mrb[0].mxu0 %v1483
    %v1557 = vpop.f32.mrb[0].mxu0
    %v1558 = vadd.f32 0.0, %v1557
    %v1559 = vpop.f32.mrb[0].mxu0
    %v1560 = vadd.f32 0.0, %v1559
    %1561 = vdwg.mxu0
    %1562 = vmatprep.subr.mxu0 %v404
    %1563 = vmatpush1.msra.mxu0 %v403
    %1564 = vmatprep.subr.mxu0 %v408
    %1565 = vmatpush1.msra.mxu0 %v407
    %1566 = vmatprep.subr.mxu0 %v412
    %1567 = vmatpush1.msra.mxu0 %v411
    %1568 = vmatprep.subr.mxu0 %v416
    %1569 = vmatpush1.msra.mxu0 %v415
    %1570 = vmatprep.subr.mxu0 %v420
    %1571 = vmatpush1.msra.mxu0 %v419
    %1572 = vmatprep.subr.mxu0 %v424
    %1573 = vmatpush1.msra.mxu0 %v423
    %1574 = vmatprep.subr.mxu0 %v428
    %1575 = vmatpush1.msra.mxu0 %v427
    %1576 = vmatprep.subr.mxu0 %v432
    %1577 = vmatpush1.msra.mxu0 %v431
    %1578 = vmatprep.subr.mxu0 %v436
    %1579 = vmatpush1.msra.mxu0 %v435
    %1580 = vmatprep.subr.mxu0 %v440
    %1581 = vmatpush1.msra.mxu0 %v439
    %1582 = vmatprep.subr.mxu0 %v444
    %1583 = vmatpush1.msra.mxu0 %v443
    %1584 = vmatprep.subr.mxu0 %v448
    %1585 = vmatpush1.msra.mxu0 %v447
    %1586 = vmatprep.subr.mxu0 %v452
    %1587 = vmatpush1.msra.mxu0 %v451
    %1588 = vmatprep.subr.mxu0 %v456
    %1589 = vmatpush1.msra.mxu0 %v455
    %1590 = vmatprep.subr.mxu0 %v460
    %1591 = vmatpush1.msra.mxu0 %v459
    %1592 = vmatprep.subr.mxu0 %v464
    %1593 = vmatpush1.msra.mxu0 %v463
    %1594 = vmatprep.subr.mxu0 0.0
    %1595 = vmatpush1.msra.mxu0 0.0
    %1596 = vmatprep.subr.mxu0 0.0
    %1597 = vmatpush1.msra.mxu0 0.0
    %1598 = vmatprep.subr.mxu0 0.0
    %1599 = vmatpush1.msra.mxu0 0.0
    %1600 = vmatprep.subr.mxu0 0.0
    %1601 = vmatpush1.msra.mxu0 0.0
    %1602 = vmatprep.subr.mxu0 0.0
    %1603 = vmatpush1.msra.mxu0 0.0
    %1604 = vmatprep.subr.mxu0 0.0
    %1605 = vmatpush1.msra.mxu0 0.0
    %1606 = vmatprep.subr.mxu0 0.0
    %1607 = vmatpush1.msra.mxu0 0.0
    %1608 = vmatprep.subr.mxu0 0.0
    %1609 = vmatpush1.msra.mxu0 0.0
    %1610 = vmatprep.subr.mxu0 0.0
    %1611 = vmatpush1.msra.mxu0 0.0
    %1612 = vmatprep.subr.mxu0 0.0
    %1613 = vmatpush1.msra.mxu0 0.0
    %1614 = vmatprep.subr.mxu0 0.0
    %1615 = vmatpush1.msra.mxu0 0.0
    %1616 = vmatprep.subr.mxu0 0.0
    %1617 = vmatpush1.msra.mxu0 0.0
    %1618 = vmatprep.subr.mxu0 0.0
    %1619 = vmatpush1.msra.mxu0 0.0
    %1620 = vmatprep.subr.mxu0 0.0
    %1621 = vmatpush1.msra.mxu0 0.0
    %1622 = vmatprep.subr.mxu0 0.0
    %1623 = vmatpush1.msra.mxu0 0.0
    %1624 = vmatprep.subr.mxu0 0.0
    %1625 = vmatpush1.msra.mxu0 0.0
    %1626 = vmatprep.mubr.f32.mxu0 0.0
    %1627 = vmatmul.mubr.f32.gmra.mrb[0].mxu0 %v1483
    %v1628 = vpop.f32.mrb[0].mxu0
    %v1629 = vadd.f32 0.0, %v1628
    %v1630 = vpop.f32.mrb[0].mxu0
    %v1631 = vadd.f32 0.0, %v1630
    %1632 = vdwg.mxu0
    %v1633 = vadd.f32 %v1487, %v1558
    %v1634 = vadd.f32 %v1488, %v1560
    %v1635 = vadd.f32 %v1489, %v1629
    %v1636 = vadd.f32 %v1490, %v1631
    %v1637 = vmul.f32 %v1633, 0.5
    %v1638 = vtanh.pop %v1637
    %v1639 = vmul.f32 %v1638, 0.5
    %v1640 = vadd.f32 %v1639, 0.5
    %v1641 = vmul.f32 %v1634, 0.5
    %v1642 = vtanh.pop %v1641
    %v1643 = vmul.f32 %v1642, 0.5
    %v1644 = vadd.f32 %v1643, 0.5
    %v1645 = vtanh.pop %v1635
    %v1646 = vmul.f32 %v1636, 0.5
    %v1647 = vtanh.pop %v1646
    %v1648 = vmul.f32 %v1647, 0.5
    %v1649 = vadd.f32 %v1648, 0.5
    %v1650 = vmul.f32 %v1644, %v1481
    %v1651 = vmul.f32 %v1640, %v1645
    %v1652 = vadd.f32 %v1650, %v1651
    %v1653 = vtanh.pop %v1652
    %v1654 = vmul.f32 %v1649, %v1653
    %s1655 = smul.u32 7, 4
    %s1656 = smul.addr %s1655, 8
    %s1657 = scalar_lea.vmem [#allocation2], %s1656
    %v1658 = vld [vmem:[%s1657] sm:$0xff]
    %v1659 = vld [vmem:[%s1657 + $0x8] sm:$0xff]
    %v1660 = vld [vmem:[%s1657 + $0x10] sm:$0xff]
    %v1661 = vld [vmem:[%s1657 + $0x18] sm:$0xff]
    %1662 = vmatprep.subr.mxu0 %v402
    %1663 = vmatpush1.msra.mxu0 %v401
    %1664 = vmatprep.subr.mxu0 %v406
    %1665 = vmatpush1.msra.mxu0 %v405
    %1666 = vmatprep.subr.mxu0 %v410
    %1667 = vmatpush1.msra.mxu0 %v409
    %1668 = vmatprep.subr.mxu0 %v414
    %1669 = vmatpush1.msra.mxu0 %v413
    %1670 = vmatprep.subr.mxu0 %v418
    %1671 = vmatpush1.msra.mxu0 %v417
    %1672 = vmatprep.subr.mxu0 %v422
    %1673 = vmatpush1.msra.mxu0 %v421
    %1674 = vmatprep.subr.mxu0 %v426
    %1675 = vmatpush1.msra.mxu0 %v425
    %1676 = vmatprep.subr.mxu0 %v430
    %1677 = vmatpush1.msra.mxu0 %v429
    %1678 = vmatprep.subr.mxu0 %v434
    %1679 = vmatpush1.msra.mxu0 %v433
    %1680 = vmatprep.subr.mxu0 %v438
    %1681 = vmatpush1.msra.mxu0 %v437
    %1682 = vmatprep.subr.mxu0 %v442
    %1683 = vmatpush1.msra.mxu0 %v441
    %1684 = vmatprep.subr.mxu0 %v446
    %1685 = vmatpush1.msra.mxu0 %v445
    %1686 = vmatprep.subr.mxu0 %v450
    %1687 = vmatpush1.msra.mxu0 %v449
    %1688 = vmatprep.subr.mxu0 %v454
    %1689 = vmatpush1.msra.mxu0 %v453
    %1690 = vmatprep.subr.mxu0 %v458
    %1691 = vmatpush1.msra.mxu0 %v457
    %1692 = vmatprep.subr.mxu0 %v462
    %1693 = vmatpush1.msra.mxu0 %v461
    %1694 = vmatprep.subr.mxu0 0.0
    %1695 = vmatpush1.msra.mxu0 0.0
    %1696 = vmatprep.subr.mxu0 0.0
    %1697 = vmatpush1.msra.mxu0 0.0
    %1698 = vmatprep.subr.mxu0 0.0
    %1699 = vmatpush1.msra.mxu0 0.0
    %1700 = vmatprep.subr.mxu0 0.0
    %1701 = vmatpush1.msra.mxu0 0.0
    %1702 = vmatprep.subr.mxu0 0.0
    %1703 = vmatpush1.msra.mxu0 0.0
    %1704 = vmatprep.subr.mxu0 0.0
    %1705 = vmatpush1.msra.mxu0 0.0
    %1706 = vmatprep.subr.mxu0 0.0
    %1707 = vmatpush1.msra.mxu0 0.0
    %1708 = vmatprep.subr.mxu0 0.0
    %1709 = vmatpush1.msra.mxu0 0.0
    %1710 = vmatprep.subr.mxu0 0.0
    %1711 = vmatpush1.msra.mxu0 0.0
    %1712 = vmatprep.subr.mxu0 0.0
    %1713 = vmatpush1.msra.mxu0 0.0
    %1714 = vmatprep.subr.mxu0 0.0
    %1715 = vmatpush1.msra.mxu0 0.0
    %1716 = vmatprep.subr.mxu0 0.0
    %1717 = vmatpush1.msra.mxu0 0.0
    %1718 = vmatprep.subr.mxu0 0.0
    %1719 = vmatpush1.msra.mxu0 0.0
    %1720 = vmatprep.subr.mxu0 0.0
    %1721 = vmatpush1.msra.mxu0 0.0
    %1722 = vmatprep.subr.mxu0 0.0
    %1723 = vmatpush1.msra.mxu0 0.0
    %1724 = vmatprep.subr.mxu0 0.0
    %1725 = vmatpush1.msra.mxu0 0.0
    %1726 = vmatprep.mubr.f32.mxu0 0.0
    %1727 = vmatmul.mubr.f32.gmra.mrb[0].mxu0 %v1654
    %v1728 = vpop.f32.mrb[0].mxu0
    %v1729 = vadd.f32 0.0, %v1728
    %v1730 = vpop.f32.mrb[0].mxu0
    %v1731 = vadd.f32 0.0, %v1730
    %1732 = vdwg.mxu0
    %1733 = vmatprep.subr.mxu0 %v404
    %1734 = vmatpush1.msra.mxu0 %v403
    %1735 = vmatprep.subr.mxu0 %v408
    %1736 = vmatpush1.msra.mxu0 %v407
    %1737 = vmatprep.subr.mxu0 %v412
    %1738 = vmatpush1.msra.mxu0 %v411
    %1739 = vmatprep.subr.mxu0 %v416
    %1740 = vmatpush1.msra.mxu0 %v415
    %1741 = vmatprep.subr.mxu0 %v420
    %1742 = vmatpush1.msra.mxu0 %v419
    %1743 = vmatprep.subr.mxu0 %v424
    %1744 = vmatpush1.msra.mxu0 %v423
    %1745 = vmatprep.subr.mxu0 %v428
    %1746 = vmatpush1.msra.mxu0 %v427
    %1747 = vmatprep.subr.mxu0 %v432
    %1748 = vmatpush1.msra.mxu0 %v431
    %1749 = vmatprep.subr.mxu0 %v436
    %1750 = vmatpush1.msra.mxu0 %v435
    %1751 = vmatprep.subr.mxu0 %v440
    %1752 = vmatpush1.msra.mxu0 %v439
    %1753 = vmatprep.subr.mxu0 %v444
    %1754 = vmatpush1.msra.mxu0 %v443
    %1755 = vmatprep.subr.mxu0 %v448
    %1756 = vmatpush1.msra.mxu0 %v447
    %1757 = vmatprep.subr.mxu0 %v452
    %1758 = vmatpush1.msra.mxu0 %v451
    %1759 = vmatprep.subr.mxu0 %v456
    %1760 = vmatpush1.msra.mxu0 %v455
    %1761 = vmatprep.subr.mxu0 %v460
    %1762 = vmatpush1.msra.mxu0 %v459
    %1763 = vmatprep.subr.mxu0 %v464
    %1764 = vmatpush1.msra.mxu0 %v463
    %1765 = vmatprep.subr.mxu0 0.0
    %1766 = vmatpush1.msra.mxu0 0.0
    %1767 = vmatprep.subr.mxu0 0.0
    %1768 = vmatpush1.msra.mxu0 0.0
    %1769 = vmatprep.subr.mxu0 0.0
    %1770 = vmatpush1.msra.mxu0 0.0
    %1771 = vmatprep.subr.mxu0 0.0
    %1772 = vmatpush1.msra.mxu0 0.0
    %1773 = vmatprep.subr.mxu0 0.0
    %1774 = vmatpush1.msra.mxu0 0.0
    %1775 = vmatprep.subr.mxu0 0.0
    %1776 = vmatpush1.msra.mxu0 0.0
    %1777 = vmatprep.subr.mxu0 0.0
    %1778 = vmatpush1.msra.mxu0 0.0
    %1779 = vmatprep.subr.mxu0 0.0
    %1780 = vmatpush1.msra.mxu0 0.0
    %1781 = vmatprep.subr.mxu0 0.0
    %1782 = vmatpush1.msra.mxu0 0.0
    %1783 = vmatprep.subr.mxu0 0.0
    %1784 = vmatpush1.msra.mxu0 0.0
    %1785 = vmatprep.subr.mxu0 0.0
    %1786 = vmatpush1.msra.mxu0 0.0
    %1787 = vmatprep.subr.mxu0 0.0
    %1788 = vmatpush1.msra.mxu0 0.0
    %1789 = vmatprep.subr.mxu0 0.0
    %1790 = vmatpush1.msra.mxu0 0.0
    %1791 = vmatprep.subr.mxu0 0.0
    %1792 = vmatpush1.msra.mxu0 0.0
    %1793 = vmatprep.subr.mxu0 0.0
    %1794 = vmatpush1.msra.mxu0 0.0
    %1795 = vmatprep.subr.mxu0 0.0
    %1796 = vmatpush1.msra.mxu0 0.0
    %1797 = vmatprep.mubr.f32.mxu0 0.0
    %1798 = vmatmul.mubr.f32.gmra.mrb[0].mxu0 %v1654
    %v1799 = vpop.f32.mrb[0].mxu0
    %v1800 = vadd.f32 0.0, %v1799
    %v1801 = vpop.f32.mrb[0].mxu0
    %v1802 = vadd.f32 0.0, %v1801
    %1803 = vdwg.mxu0
    %v1804 = vadd.f32 %v1658, %v1729
    %v1805 = vadd.f32 %v1659, %v1731
    %v1806 = vadd.f32 %v1660, %v1800
    %v1807 = vadd.f32 %v1661, %v1802
    %v1808 = vmul.f32 %v1804, 0.5
    %v1809 = vtanh.pop %v1808
    %v1810 = vmul.f32 %v1809, 0.5
    %v1811 = vadd.f32 %v1810, 0.5
    %v1812 = vmul.f32 %v1805, 0.5
    %v1813 = vtanh.pop %v1812
    %v1814 = vmul.f32 %v1813, 0.5
    %v1815 = vadd.f32 %v1814, 0.5
    %v1816 = vtanh.pop %v1806
    %v1817 = vmul.f32 %v1807, 0.5
    %v1818 = vtanh.pop %v1817
    %v1819 = vmul.f32 %v1818, 0.5
    %v1820 = vadd.f32 %v1819, 0.5
    %v1821 = vmul.f32 %v1815, %v1652
    %v1822 = vmul.f32 %v1811, %v1816
    %v1823 = vadd.f32 %v1821, %v1822
    %v1824 = vtanh.pop %v1823
    %v1825 = vmul.f32 %v1820, %v1824
    %v1826 = vld [vmem:[#allocation8] sm:$0xff]
    %v1827 = vld [vmem:[#allocation8 + $0x8] sm:$0xff]
    %v1828 = vld [vmem:[#allocation8 + $0x10] sm:$0xff]
    %v1829 = vld [vmem:[#allocation8 + $0x18] sm:$0xff]
    %v1830 = vld [vmem:[#allocation8 + $0x20] sm:$0xff]
    %v1831 = vld [vmem:[#allocation8 + $0x28] sm:$0xff]
    %v1832 = vld [vmem:[#allocation8 + $0x30] sm:$0xff]
    %v1833 = vld [vmem:[#allocation8 + $0x38] sm:$0xff]
    %v1834 = vld [vmem:[#allocation8 + $0x40] sm:$0xff]
    %v1835 = vld [vmem:[#allocation8 + $0x48] sm:$0xff]
    %v1836 = vld [vmem:[#allocation8 + $0x50] sm:$0xff]
    %v1837 = vld [vmem:[#allocation8 + $0x58] sm:$0xff]
    %v1838 = vld [vmem:[#allocation8 + $0x60] sm:$0xff]
    %v1839 = vld [vmem:[#allocation8 + $0x68] sm:$0xff]
    %v1840 = vld [vmem:[#allocation8 + $0x70] sm:$0xff]
    %v1841 = vld [vmem:[#allocation8 + $0x78] sm:$0xff]
    %v1842 = vld [vmem:[%s5] sm:$0x1]
    %v1844 = vlaneseq
    %v1845 = vshrl.u32 %v1844, 7
    %v1846 = vsub.s32 0, %v1845
    %v1847 = vrot.slane %v1842, %v1846
    %1849 = vmatprep.subr.mxu0 0.0
    %1850 = vmatpush1.msra.mxu0 %v1826
    %1851 = vmatprep.subr.mxu0 0.0
    %1852 = vmatpush1.msra.mxu0 %v1827
    %1853 = vmatprep.subr.mxu0 0.0
    %1854 = vmatpush1.msra.mxu0 %v1828
    %1855 = vmatprep.subr.mxu0 0.0
    %1856 = vmatpush1.msra.mxu0 %v1829
    %1857 = vmatprep.subr.mxu0 0.0
    %1858 = vmatpush1.msra.mxu0 %v1830
    %1859 = vmatprep.subr.mxu0 0.0
    %1860 = vmatpush1.msra.mxu0 %v1831
    %1861 = vmatprep.subr.mxu0 0.0
    %1862 = vmatpush1.msra.mxu0 %v1832
    %1863 = vmatprep.subr.mxu0 0.0
    %1864 = vmatpush1.msra.mxu0 %v1833
    %1865 = vmatprep.subr.mxu0 0.0
    %1866 = vmatpush1.msra.mxu0 %v1834
    %1867 = vmatprep.subr.mxu0 0.0
    %1868 = vmatpush1.msra.mxu0 %v1835
    %1869 = vmatprep.subr.mxu0 0.0
    %1870 = vmatpush1.msra.mxu0 %v1836
    %1871 = vmatprep.subr.mxu0 0.0
    %1872 = vmatpush1.msra.mxu0 %v1837
    %1873 = vmatprep.subr.mxu0 0.0
    %1874 = vmatpush1.msra.mxu0 %v1838
    %1875 = vmatprep.subr.mxu0 0.0
    %1876 = vmatpush1.msra.mxu0 %v1839
    %1877 = vmatprep.subr.mxu0 0.0
    %1878 = vmatpush1.msra.mxu0 %v1840
    %1879 = vmatprep.subr.mxu0 0.0
    %1880 = vmatpush1.msra.mxu0 %v1841
    %1881 = vmatprep.subr.mxu0 0.0
    %1882 = vmatpush1.msra.mxu0 0.0
    %1883 = vmatprep.subr.mxu0 0.0
    %1884 = vmatpush1.msra.mxu0 0.0
    %1885 = vmatprep.subr.mxu0 0.0
    %1886 = vmatpush1.msra.mxu0 0.0
    %1887 = vmatprep.subr.mxu0 0.0
    %1888 = vmatpush1.msra.mxu0 0.0
    %1889 = vmatprep.subr.mxu0 0.0
    %1890 = vmatpush1.msra.mxu0 0.0
    %1891 = vmatprep.subr.mxu0 0.0
    %1892 = vmatpush1.msra.mxu0 0.0
    %1893 = vmatprep.subr.mxu0 0.0
    %1894 = vmatpush1.msra.mxu0 0.0
    %1895 = vmatprep.subr.mxu0 0.0
    %1896 = vmatpush1.msra.mxu0 0.0
    %1897 = vmatprep.subr.mxu0 0.0
    %1898 = vmatpush1.msra.mxu0 0.0
    %1899 = vmatprep.subr.mxu0 0.0
    %1900 = vmatpush1.msra.mxu0 0.0
    %1901 = vmatprep.subr.mxu0 0.0
    %1902 = vmatpush1.msra.mxu0 0.0
    %1903 = vmatprep.subr.mxu0 0.0
    %1904 = vmatpush1.msra.mxu0 0.0
    %1905 = vmatprep.subr.mxu0 0.0
    %1906 = vmatpush1.msra.mxu0 0.0
    %1907 = vmatprep.subr.mxu0 0.0
    %1908 = vmatpush1.msra.mxu0 0.0
    %1909 = vmatprep.subr.mxu0 0.0
    %1910 = vmatpush1.msra.mxu0 0.0
    %1911 = vmatprep.subr.mxu0 0.0
    %1912 = vmatpush1.msra.mxu0 0.0
    %1913 = vmatprep.mubr.f32.mxu0 0.0
    %1914 = vmatmul.mubr.f32.gmra.mrb[0].mxu0 %v1825
    %v1915 = vpop.f32.mrb[0].mxu0
    %v1916 = vadd.f32 %v1847, %v1915
    %v1917 = vpop.f32.mrb[0].mxu0
    %1918 = vdwg.mxu0
    %1919 = vmax.xlane.f32.xlu0 %v1916
    %v1920 = vpop.xlane.xlu0 %1919
    %v1921 = vsub.f32 %v1916, %v1920
    %v1922 = vmul.f32 %v1921, 1.442695
    %v1923 = vpow.pop %v1922
    %1924 = vadd.xlane.f32.xlu0 %v1923
    %v1925 = vpop.xlane.xlu0 %1924
    %v1926 = vrcp.pop %v1925
    %v1927 = vmul.f32 %v1923, %v1926
    %1928 = vst [vmem:[#allocation9] sm:$0xff] %v1927
    // Predicated region
    $region38: #{tpu_custom_call.1} parent=1 // pred_check
      _
    $region39: #{tpu_custom_call.1} parent=1 // pred_check_branch
      %1930 = sbr.rel (0) target = $region41
    $region40: #{tpu_custom_call.1} parent=1 // pred_region
      %s1932 = ssub.s32 128, 128
      %1933 = vsyncadd [#allocation5], %s1932
      %s1935 = sshll.u32 [#allocation9], 4
      %s1936 = int_to_ptr.vmem [resolvable:$true] %s1935
      %1938 = dma.vmem_to_hbm [thread:$0]  %s1936, 128, %s6, [#allocation5]
    $region41: #{tpu_custom_call.1} parent=1 // pred_fallthru
      _
    // Predicated region
    $region42: #{tpu_custom_call.1} parent=1 // pred_check
      _
    $region43: #{tpu_custom_call.1} parent=1 // pred_check_branch
      %1940 = sbr.rel (0) target = $region45
    $region44: #{tpu_custom_call.1} parent=1 // pred_region
      %1941 = dma.done [#allocation5], 128
    $region45: #{tpu_custom_call.1} parent=1 // pred_fallthru
      _
    %1942 = vsyncpa [#allocation4], 1
    %1943 = vsyncpa [#allocation7], 1
    %1944 = vsyncpa [#allocation5], 1

</llo_original>
